<compile_context>
chip_gen: v7x
topology: tpu7x:2x2x1
jax: 0.10.0
libtpu: 0.0.40
codegen_flags: <defaults>
</compile_context>

<pallas_src>
import functools

import jax
import jax.numpy as jnp
from jax.experimental import pallas as pl
from jax.experimental.pallas import tpu as pltpu

_LANE = 128


def _ceil_to(x, m):
    return ((x + m - 1) // m) * m


def _pick_tile(n, candidates):
    for t in candidates:
        if t <= n and n % t == 0:
            return t
    return n


def _vmem_limit_bytes():
    # ~3/4 of physical VMEM, capped at 96 MiB (128 MiB on v5e/v6e, 64 MiB v7x).
    try:
        cap = pltpu.get_tpu_info().vmem_capacity_bytes
    except Exception:
        cap = 64 * 1024 * 1024
    return int(min(cap * 3 // 4, 96 * 1024 * 1024))


# ---------------------------------------------------------------------------
# Kernel 1: feature projection  XW = X @ W   (done once, outside the A loop)
# ---------------------------------------------------------------------------
def _project_kernel(x_ref, w_ref, o_ref):
    o_ref[...] = jnp.dot(
        x_ref[...], w_ref[...], preferred_element_type=jnp.float32
    ).astype(o_ref.dtype)


def project(x, w, *, tm):
    n, f = x.shape
    h = w.shape[1]
    return pl.pallas_call(
        _project_kernel,
        out_shape=jax.ShapeDtypeStruct((n, h), jnp.bfloat16),
        grid_spec=pltpu.PrefetchScalarGridSpec(
            num_scalar_prefetch=0,
            grid=(n // tm,),
            in_specs=[
                pl.BlockSpec((tm, f), lambda i: (i, 0)),
                pl.BlockSpec((f, h), lambda i: (0, 0)),
            ],
            out_specs=pl.BlockSpec((tm, h), lambda i: (i, 0)),
        ),
        compiler_params=pltpu.CompilerParams(
            dimension_semantics=("parallel",),
            vmem_limit_bytes=_vmem_limit_bytes(),
        ),
    )(x, w)


# ---------------------------------------------------------------------------
# Kernel 2: tiled aggregation  acc = A_tile @ XW_tile  (+ bias / relu / fused
# projection of the NEXT layer in the epilogue).
# ---------------------------------------------------------------------------
def _aggregate_kernel(*refs, apply_relu, fuse_next):
    if fuse_next:
        a_ref, xw_ref, b_ref, wn_ref, o_ref, acc_ref = refs
    else:
        a_ref, xw_ref, b_ref, o_ref, acc_ref = refs
        wn_ref = None

    k = pl.program_id(1)

    @pl.when(k == 0)
    def _():
        acc_ref[...] = jnp.zeros_like(acc_ref)

    acc_ref[...] += jnp.dot(
        a_ref[...], xw_ref[...], preferred_element_type=jnp.float32
    )

    @pl.when(k == pl.num_programs(1) - 1)
    def _():
        h = acc_ref[...] + b_ref[...]          # epilogue in f32 on accumulator
        if apply_relu:
            h = jnp.maximum(h, 0.0)
        if fuse_next:
            # Fused next-layer projection: H1 @ W2 (H1 never leaves VMEM).
            h = jnp.dot(h.astype(wn_ref.dtype), wn_ref[...],
                        preferred_element_type=jnp.float32)
        o_ref[...] = h.astype(o_ref.dtype)


def aggregate(a_hat, xw, b, w_next, *, apply_relu, out_dtype, tm, tk):
    n = a_hat.shape[0]
    h = xw.shape[1]
    fuse_next = w_next is not None
    out_w = w_next.shape[1] if fuse_next else h

    in_specs = [
        pl.BlockSpec((tm, tk), lambda i, k: (i, k)),   # A row/col tile (bf16)
        pl.BlockSpec((tk, h), lambda i, k: (k, 0)),    # XW contraction tile
        pl.BlockSpec((1, h), lambda i, k: (0, 0)),     # bias (f32)
    ]
    args = [a_hat, xw, b]
    if fuse_next:
        in_specs.append(pl.BlockSpec(w_next.shape, lambda i, k: (0, 0)))
        args.append(w_next)

    kernel = functools.partial(
        _aggregate_kernel, apply_relu=apply_relu, fuse_next=fuse_next)

    return pl.pallas_call(
        kernel,
        out_shape=jax.ShapeDtypeStruct((n, out_w), out_dtype),
        grid_spec=pltpu.PrefetchScalarGridSpec(
            num_scalar_prefetch=0,
            grid=(n // tm, n // tk),                   # reduction axis last
            in_specs=in_specs,
            out_specs=pl.BlockSpec((tm, out_w), lambda i, k: (i, 0)),
            scratch_shapes=[pltpu.VMEM((tm, h), jnp.float32)],
        ),
        compiler_params=pltpu.CompilerParams(
            dimension_semantics=("parallel", "arbitrary"),
            vmem_limit_bytes=_vmem_limit_bytes(),
        ),
    )(*args)


# ---------------------------------------------------------------------------
# Graph glue (plain JAX): dense normalized adjacency from edge_index.
# ---------------------------------------------------------------------------
def normalized_adjacency(edge_index, num_nodes):
    """D^{-1/2}(A+I)D^{-1/2}; A[dst, src] = 1 (message src -> dst, as in PyG).

    Duplicate edges sum into A (same as PyG without coalescing).
    """
    src = edge_index[0]
    dst = edge_index[1]
    a = jnp.zeros((num_nodes, num_nodes), jnp.float32)
    a = a.at[dst, src].add(1.0)
    a = a + jnp.eye(num_nodes, dtype=jnp.float32)      # self loops
    deg = a.sum(axis=1)
    d_inv_sqrt = jnp.where(deg > 0.0, 1.0 / jnp.sqrt(deg), 0.0)
    return d_inv_sqrt[:, None] * a * d_inv_sqrt[None, :]


@jax.jit
def gcn_forward(x, edge_index, w1, b1, w2, b2):
    """Mirrors GCNModel.forward(data) with data.x = x, data.edge_index = edge_index."""
    if x.ndim == 1:
        x = x[:, None]
    n, f_in = x.shape
    hid = w1.shape[1]
    n_cls = w2.shape[1]

    # Pad node count to a tile multiple and every feature dim to a multiple of
    # 128 (lane-dense outputs, full MXU columns). Zero padding is exact: padded
    # A rows/cols are zero so padded nodes never contribute, and padded weight
    # columns produce zero outputs that are sliced off.
    n_pad = _ceil_to(n, _LANE)
    tm = _pick_tile(n_pad, (256, 128))
    tk = _pick_tile(n_pad, (256, 128))
    f_pad = _ceil_to(f_in, _LANE)
    h_pad = _ceil_to(hid, _LANE)
    c_pad = _ceil_to(n_cls, _LANE)

    a_hat = normalized_adjacency(edge_index, n)
    a_bf16 = (jnp.zeros((n_pad, n_pad), jnp.float32)
              .at[:n, :n].set(a_hat).astype(jnp.bfloat16))

    x_p = (jnp.zeros((n_pad, f_pad), jnp.float32)
           .at[:n, :f_in].set(x.astype(jnp.float32)).astype(jnp.bfloat16))
    w1_p = (jnp.zeros((f_pad, h_pad), jnp.float32)
            .at[:f_in, :hid].set(w1).astype(jnp.bfloat16))
    b1_p = jnp.zeros((1, h_pad), jnp.float32).at[0, :hid].set(b1)
    w2_p = (jnp.zeros((h_pad, c_pad), jnp.float32)
            .at[:hid, :n_cls].set(w2).astype(jnp.bfloat16))
    b2_p = jnp.zeros((1, c_pad), jnp.float32).at[0, :n_cls].set(b2)

    # 1) XW1 = X @ W1 (once; O(N*F*H), not repeated per A row tile).
    xw1 = project(x_p, w1_p, tm=tm)
    # 2) XW2 = relu(A_hat @ XW1 + b1) @ W2   (layer-1 agg + layer-2 proj fused).
    xw2 = aggregate(a_bf16, xw1, b1_p, w2_p,
                    apply_relu=True, out_dtype=jnp.bfloat16, tm=tm, tk=tk)
    # 3) out = A_hat @ XW2 + b2.
    out_p = aggregate(a_bf16, xw2, b2_p, None,
                      apply_relu=False, out_dtype=jnp.float32, tm=tm, tk=tk)
    return out_p[:n, :n_cls]


def gcn_reference(x, edge_index, w1, b1, w2, b2):
    """Pure-JAX f32 reference (same math, no Pallas)."""
    if x.ndim == 1:
        x = x[:, None]
    a_hat = normalized_adjacency(edge_index, x.shape[0])
    h1 = jnp.maximum(a_hat @ (x @ w1) + b1, 0.0)
    return a_hat @ (h1 @ w2) + b2


if __name__ == "__main__":
    # Deterministic example: 512 nodes (exercises both grid axes: 2 row tiles,
    # 2 contraction steps), 16 in-features, 32 hidden, 8 classes.
    N, F_IN, HID, NUM_CLASSES = 512, 16, 32, 8

    key = jax.random.PRNGKey(0)
    k_x, k_w1, k_w2 = jax.random.split(key, 3)

    x = jax.random.normal(k_x, (N, F_IN), dtype=jnp.float32)

    # Undirected ring graph: edges (i, i+1) in both directions.
    idx = jnp.arange(N, dtype=jnp.int32)
    src = jnp.concatenate([idx, (idx + 1) % N])
    dst = jnp.concatenate([(idx + 1) % N, idx])
    edge_index = jnp.stack([src, dst]).astype(jnp.int32)   # (2, 2N)

    # Deterministic Glorot-style parameter init (shapes from GCNConv(in, out)).
    w1 = jax.random.normal(k_w1, (F_IN, HID), jnp.float32) * (1.0 / jnp.sqrt(F_IN))
    b1 = jnp.zeros((HID,), jnp.float32)
    w2 = jax.random.normal(k_w2, (HID, NUM_CLASSES), jnp.float32) * (1.0 / jnp.sqrt(HID))
    b2 = jnp.zeros((NUM_CLASSES,), jnp.float32)

    out = gcn_forward(x, edge_index, w1, b1, w2, b2)
    jax.block_until_ready(out)
    assert out.shape == (N, NUM_CLASSES) and out.dtype == jnp.float32

    # Sanity check vs f32 reference (loose tolerance: bf16 inputs on the A path).
    ref = gcn_reference(x, edge_index, w1, b1, w2, b2)
    assert jnp.allclose(out, ref, atol=5e-2, rtol=5e-2), "mismatch vs reference"

    print("KERNEL_OK")
</pallas_src>

<mosaic_0001>
module attributes {stable_mosaic.version = 11 : i64} {
  func.func private @main(%arg0: i32) attributes {dimension_semantics = [#tpu.dimension_semantics<core_parallel>], iteration_bounds = array<i64: 2>, tpu.core_type = #tpu.core_type<sc_scalar_subcore>, window_params = []} {
    return
  }
}

module attributes {stable_mosaic.version = 11 : i64} {
  func.func private @main(%arg0: i32) attributes {dimension_semantics = [#tpu.dimension_semantics<core_parallel>], iteration_bounds = array<i64: 2>, tpu.core_type = #tpu.core_type<sc_scalar_subcore>, window_params = []} {
    return
  }
}

module attributes {stable_mosaic.version = 11 : i64} {
  func.func @_project_kernel(%arg0: i32, %arg1: memref<256x128xbf16, #tpu.memory_space<vmem>>, %arg2: memref<128x128xbf16, #tpu.memory_space<vmem>>, %arg3: memref<256x128xbf16, #tpu.memory_space<vmem>>) attributes {dimension_semantics = [#tpu.dimension_semantics<parallel>], iteration_bounds = array<i64: 2>, scalar_prefetch = 0 : i64, scratch_operands = 0 : i64, tpu.core_type = #tpu.core_type<tc>, window_params = [{transform_indices = @transform_0, window_bounds = array<i64: 256, 128>}, {pipeline_mode = #tpu.pipeline_mode<synchronous>, transform_indices = @transform_1, window_bounds = array<i64: 128, 128>}, {transform_indices = @transform_2, window_bounds = array<i64: 256, 128>}]} {
    %c0 = arith.constant 0 : index
    %c0_0 = arith.constant 0 : index
    %0 = vector.load %arg1[%c0, %c0_0] : memref<256x128xbf16, #tpu.memory_space<vmem>>, vector<256x128xbf16>
    %c0_1 = arith.constant 0 : index
    %c0_2 = arith.constant 0 : index
    %1 = vector.load %arg2[%c0_1, %c0_2] : memref<128x128xbf16, #tpu.memory_space<vmem>>, vector<128x128xbf16>
    %cst = arith.constant dense<0.000000e+00> : vector<256x128xf32>
    %2 = tpu.matmul %0, %1, %cst {dimension_numbers = #tpu.dot_dimension_numbers<[1], [0], [0], [1], [0, 0, 1, 1], [], []>} : vector<256x128xbf16>, vector<128x128xbf16>, vector<256x128xf32> -> vector<256x128xf32>
    %3 = arith.truncf %2 : vector<256x128xf32> to vector<256x128xbf16>
    %c0_3 = arith.constant 0 : index
    %c0_4 = arith.constant 0 : index
    %4 = vector.load %arg3[%c0_3, %c0_4] : memref<256x128xbf16, #tpu.memory_space<vmem>>, vector<256x128xbf16>
    tpu.vector_store %arg3[%c0_3, %c0_4], %3 {strides = array<i32>} : memref<256x128xbf16, #tpu.memory_space<vmem>>, vector<256x128xbf16>,
    return
  }
  func.func @transform_0(%arg0: i32) -> (i32, i32) {
    %c0_i32 = arith.constant 0 : i32
    %c0_i32_0 = arith.constant 0 : i32
    return %arg0, %c0_i32 : i32, i32
  }
  func.func @transform_1(%arg0: i32) -> (i32, i32) {
    %c0_i32 = arith.constant 0 : i32
    %c0_i32_0 = arith.constant 0 : i32
    %c0_i32_1 = arith.constant 0 : i32
    return %c0_i32, %c0_i32_0 : i32, i32
  }
  func.func @transform_2(%arg0: i32) -> (i32, i32) {
    %c0_i32 = arith.constant 0 : i32
    %c0_i32_0 = arith.constant 0 : i32
    return %arg0, %c0_i32 : i32, i32
  }
}

module attributes {stable_mosaic.version = 11 : i64} {
  func.func @_aggregate_kernel(%arg0: i32, %arg1: i32, %arg2: memref<256x256xbf16, #tpu.memory_space<vmem>>, %arg3: memref<256x128xbf16, #tpu.memory_space<vmem>>, %arg4: memref<1x128xf32, #tpu.memory_space<vmem>>, %arg5: memref<128x128xbf16, #tpu.memory_space<vmem>>, %arg6: memref<256x128xbf16, #tpu.memory_space<vmem>>, %arg7: memref<256x128xf32, #tpu.memory_space<vmem>>) attributes {dimension_semantics = [#tpu.dimension_semantics<parallel>, #tpu.dimension_semantics<arbitrary>], iteration_bounds = array<i64: 2, 2>, scalar_prefetch = 0 : i64, scratch_operands = 1 : i64, tpu.core_type = #tpu.core_type<tc>, window_params = [{transform_indices = @transform_0, window_bounds = array<i64: 256, 256>}, {transform_indices = @transform_1, window_bounds = array<i64: 256, 128>}, {pipeline_mode = #tpu.pipeline_mode<synchronous>, transform_indices = @transform_2, window_bounds = array<i64: 1, 128>}, {pipeline_mode = #tpu.pipeline_mode<synchronous>, transform_indices = @transform_3, window_bounds = array<i64: 128, 128>}, {transform_indices = @transform_4, window_bounds = array<i64: 256, 128>}]} {
    %c0_i32 = arith.constant 0 : i32
    %0 = arith.cmpi eq, %arg1, %c0_i32 : i32
    %1 = arith.extui %0 : i1 to i32
    %c0_i32_0 = arith.constant 0 : i32
    %2 = arith.cmpi ne, %1, %c0_i32_0 : i32
    scf.if %2 {
      %cst_9 = arith.constant 0.000000e+00 : f32
      %12 = vector.broadcast %cst_9 : f32 to vector<256x128xf32>
      %c0_10 = arith.constant 0 : index
      %c0_11 = arith.constant 0 : index
      %13 = vector.load %arg7[%c0_10, %c0_11] : memref<256x128xf32, #tpu.memory_space<vmem>>, vector<256x128xf32>
      tpu.vector_store %arg7[%c0_10, %c0_11], %12 {strides = array<i32>} : memref<256x128xf32, #tpu.memory_space<vmem>>, vector<256x128xf32>,
    } else {
    }
    %c0 = arith.constant 0 : index
    %c0_1 = arith.constant 0 : index
    %3 = vector.load %arg7[%c0, %c0_1] : memref<256x128xf32, #tpu.memory_space<vmem>>, vector<256x128xf32>
    %c0_2 = arith.constant 0 : index
    %c0_3 = arith.constant 0 : index
    %4 = vector.load %arg2[%c0_2, %c0_3] : memref<256x256xbf16, #tpu.memory_space<vmem>>, vector<256x256xbf16>
    %c0_4 = arith.constant 0 : index
    %c0_5 = arith.constant 0 : index
    %5 = vector.load %arg3[%c0_4, %c0_5] : memref<256x128xbf16, #tpu.memory_space<vmem>>, vector<256x128xbf16>
    %cst = arith.constant dense<0.000000e+00> : vector<256x128xf32>
    %6 = tpu.matmul %4, %5, %cst {dimension_numbers = #tpu.dot_dimension_numbers<[1], [0], [0], [1], [0, 0, 1, 1], [], []>} : vector<256x256xbf16>, vector<256x128xbf16>, vector<256x128xf32> -> vector<256x128xf32>
    %7 = arith.addf %3, %6 : vector<256x128xf32>
    %c0_6 = arith.constant 0 : index
    %c0_7 = arith.constant 0 : index
    %8 = vector.load %arg7[%c0_6, %c0_7] : memref<256x128xf32, #tpu.memory_space<vmem>>, vector<256x128xf32>
    tpu.vector_store %arg7[%c0_6, %c0_7], %7 {strides = array<i32>} : memref<256x128xf32, #tpu.memory_space<vmem>>, vector<256x128xf32>,
    %c1_i32 = arith.constant 1 : i32
    %9 = arith.cmpi eq, %arg1, %c1_i32 : i32
    %10 = arith.extui %9 : i1 to i32
    %c0_i32_8 = arith.constant 0 : i32
    %11 = arith.cmpi ne, %10, %c0_i32_8 : i32
    scf.if %11 {
      %c0_9 = arith.constant 0 : index
      %c0_10 = arith.constant 0 : index
      %12 = vector.load %arg7[%c0_9, %c0_10] : memref<256x128xf32, #tpu.memory_space<vmem>>, vector<256x128xf32>
      %c0_11 = arith.constant 0 : index
      %c0_12 = arith.constant 0 : index
      %13 = vector.load %arg4[%c0_11, %c0_12] : memref<1x128xf32, #tpu.memory_space<vmem>>, vector<1x128xf32>
      %14 = vector.broadcast %13 : vector<1x128xf32> to vector<256x128xf32>
      %15 = arith.addf %12, %14 : vector<256x128xf32>
      %cst_13 = arith.constant 0.000000e+00 : f32
      %16 = vector.broadcast %cst_13 : f32 to vector<256x128xf32>
      %17 = arith.maximumf %15, %16 : vector<256x128xf32>
      %18 = arith.truncf %17 : vector<256x128xf32> to vector<256x128xbf16>
      %c0_14 = arith.constant 0 : index
      %c0_15 = arith.constant 0 : index
      %19 = vector.load %arg5[%c0_14, %c0_15] : memref<128x128xbf16, #tpu.memory_space<vmem>>, vector<128x128xbf16>
      %cst_16 = arith.constant dense<0.000000e+00> : vector<256x128xf32>
      %20 = tpu.matmul %18, %19, %cst_16 {dimension_numbers = #tpu.dot_dimension_numbers<[1], [0], [0], [1], [0, 0, 1, 1], [], []>} : vector<256x128xbf16>, vector<128x128xbf16>, vector<256x128xf32> -> vector<256x128xf32>
      %21 = arith.truncf %20 : vector<256x128xf32> to vector<256x128xbf16>
      %c0_17 = arith.constant 0 : index
      %c0_18 = arith.constant 0 : index
      %22 = vector.load %arg6[%c0_17, %c0_18] : memref<256x128xbf16, #tpu.memory_space<vmem>>, vector<256x128xbf16>
      tpu.vector_store %arg6[%c0_17, %c0_18], %21 {strides = array<i32>} : memref<256x128xbf16, #tpu.memory_space<vmem>>, vector<256x128xbf16>,
    } else {
    }
    return
  }
  func.func @transform_0(%arg0: i32, %arg1: i32) -> (i32, i32) {
    %c0_i32 = arith.constant 0 : i32
    return %arg0, %arg1 : i32, i32
  }
  func.func @transform_1(%arg0: i32, %arg1: i32) -> (i32, i32) {
    %c0_i32 = arith.constant 0 : i32
    %c0_i32_0 = arith.constant 0 : i32
    return %arg1, %c0_i32 : i32, i32
  }
  func.func @transform_2(%arg0: i32, %arg1: i32) -> (i32, i32) {
    %c0_i32 = arith.constant 0 : i32
    %c0_i32_0 = arith.constant 0 : i32
    %c0_i32_1 = arith.constant 0 : i32
    return %c0_i32, %c0_i32_0 : i32, i32
  }
  func.func @transform_3(%arg0: i32, %arg1: i32) -> (i32, i32) {
    %c0_i32 = arith.constant 0 : i32
    %c0_i32_0 = arith.constant 0 : i32
    %c0_i32_1 = arith.constant 0 : i32
    return %c0_i32, %c0_i32_0 : i32, i32
  }
  func.func @transform_4(%arg0: i32, %arg1: i32) -> (i32, i32) {
    %c0_i32 = arith.constant 0 : i32
    %c0_i32_0 = arith.constant 0 : i32
    return %arg0, %c0_i32 : i32, i32
  }
}

module attributes {stable_mosaic.version = 11 : i64} {
  func.func @_aggregate_kernel(%arg0: i32, %arg1: i32, %arg2: memref<256x256xbf16, #tpu.memory_space<vmem>>, %arg3: memref<256x128xbf16, #tpu.memory_space<vmem>>, %arg4: memref<1x128xf32, #tpu.memory_space<vmem>>, %arg5: memref<256x128xf32, #tpu.memory_space<vmem>>, %arg6: memref<256x128xf32, #tpu.memory_space<vmem>>) attributes {dimension_semantics = [#tpu.dimension_semantics<parallel>, #tpu.dimension_semantics<arbitrary>], iteration_bounds = array<i64: 2, 2>, scalar_prefetch = 0 : i64, scratch_operands = 1 : i64, tpu.core_type = #tpu.core_type<tc>, window_params = [{transform_indices = @transform_0, window_bounds = array<i64: 256, 256>}, {transform_indices = @transform_1, window_bounds = array<i64: 256, 128>}, {pipeline_mode = #tpu.pipeline_mode<synchronous>, transform_indices = @transform_2, window_bounds = array<i64: 1, 128>}, {transform_indices = @transform_3, window_bounds = array<i64: 256, 128>}]} {
    %c0_i32 = arith.constant 0 : i32
    %0 = arith.cmpi eq, %arg1, %c0_i32 : i32
    %1 = arith.extui %0 : i1 to i32
    %c0_i32_0 = arith.constant 0 : i32
    %2 = arith.cmpi ne, %1, %c0_i32_0 : i32
    scf.if %2 {
      %cst_9 = arith.constant 0.000000e+00 : f32
      %12 = vector.broadcast %cst_9 : f32 to vector<256x128xf32>
      %c0_10 = arith.constant 0 : index
      %c0_11 = arith.constant 0 : index
      %13 = vector.load %arg6[%c0_10, %c0_11] : memref<256x128xf32, #tpu.memory_space<vmem>>, vector<256x128xf32>
      tpu.vector_store %arg6[%c0_10, %c0_11], %12 {strides = array<i32>} : memref<256x128xf32, #tpu.memory_space<vmem>>, vector<256x128xf32>,
    } else {
    }
    %c0 = arith.constant 0 : index
    %c0_1 = arith.constant 0 : index
    %3 = vector.load %arg6[%c0, %c0_1] : memref<256x128xf32, #tpu.memory_space<vmem>>, vector<256x128xf32>
    %c0_2 = arith.constant 0 : index
    %c0_3 = arith.constant 0 : index
    %4 = vector.load %arg2[%c0_2, %c0_3] : memref<256x256xbf16, #tpu.memory_space<vmem>>, vector<256x256xbf16>
    %c0_4 = arith.constant 0 : index
    %c0_5 = arith.constant 0 : index
    %5 = vector.load %arg3[%c0_4, %c0_5] : memref<256x128xbf16, #tpu.memory_space<vmem>>, vector<256x128xbf16>
    %cst = arith.constant dense<0.000000e+00> : vector<256x128xf32>
    %6 = tpu.matmul %4, %5, %cst {dimension_numbers = #tpu.dot_dimension_numbers<[1], [0], [0], [1], [0, 0, 1, 1], [], []>} : vector<256x256xbf16>, vector<256x128xbf16>, vector<256x128xf32> -> vector<256x128xf32>
    %7 = arith.addf %3, %6 : vector<256x128xf32>
    %c0_6 = arith.constant 0 : index
    %c0_7 = arith.constant 0 : index
    %8 = vector.load %arg6[%c0_6, %c0_7] : memref<256x128xf32, #tpu.memory_space<vmem>>, vector<256x128xf32>
    tpu.vector_store %arg6[%c0_6, %c0_7], %7 {strides = array<i32>} : memref<256x128xf32, #tpu.memory_space<vmem>>, vector<256x128xf32>,
    %c1_i32 = arith.constant 1 : i32
    %9 = arith.cmpi eq, %arg1, %c1_i32 : i32
    %10 = arith.extui %9 : i1 to i32
    %c0_i32_8 = arith.constant 0 : i32
    %11 = arith.cmpi ne, %10, %c0_i32_8 : i32
    scf.if %11 {
      %c0_9 = arith.constant 0 : index
      %c0_10 = arith.constant 0 : index
      %12 = vector.load %arg6[%c0_9, %c0_10] : memref<256x128xf32, #tpu.memory_space<vmem>>, vector<256x128xf32>
      %c0_11 = arith.constant 0 : index
      %c0_12 = arith.constant 0 : index
      %13 = vector.load %arg4[%c0_11, %c0_12] : memref<1x128xf32, #tpu.memory_space<vmem>>, vector<1x128xf32>
      %14 = vector.broadcast %13 : vector<1x128xf32> to vector<256x128xf32>
      %15 = arith.addf %12, %14 : vector<256x128xf32>
      %c0_13 = arith.constant 0 : index
      %c0_14 = arith.constant 0 : index
      %16 = vector.load %arg5[%c0_13, %c0_14] : memref<256x128xf32, #tpu.memory_space<vmem>>, vector<256x128xf32>
      tpu.vector_store %arg5[%c0_13, %c0_14], %15 {strides = array<i32>} : memref<256x128xf32, #tpu.memory_space<vmem>>, vector<256x128xf32>,
    } else {
    }
    return
  }
  func.func @transform_0(%arg0: i32, %arg1: i32) -> (i32, i32) {
    %c0_i32 = arith.constant 0 : i32
    return %arg0, %arg1 : i32, i32
  }
  func.func @transform_1(%arg0: i32, %arg1: i32) -> (i32, i32) {
    %c0_i32 = arith.constant 0 : i32
    %c0_i32_0 = arith.constant 0 : i32
    return %arg1, %c0_i32 : i32, i32
  }
  func.func @transform_2(%arg0: i32, %arg1: i32) -> (i32, i32) {
    %c0_i32 = arith.constant 0 : i32
    %c0_i32_0 = arith.constant 0 : i32
    %c0_i32_1 = arith.constant 0 : i32
    return %c0_i32, %c0_i32_0 : i32, i32
  }
  func.func @transform_3(%arg0: i32, %arg1: i32) -> (i32, i32) {
    %c0_i32 = arith.constant 0 : i32
    %c0_i32_0 = arith.constant 0 : i32
    return %arg0, %c0_i32 : i32, i32
  }
}

</mosaic_0001>

<llo_original>
// kernel: gcn_forward.3
$region0: #{gcn_forward.3}
  #allocation0 [shape = 'u32[]', space=smem, size = 0x4, offset = 0x4, fixed_abs, tag = 'smem constant byte address 0x4 - core index']
  #allocation1 [shape = 'u32[144,128]{1,0:T(1,128)}', space=vmem, size = 0x12000, scoped, tag = 'internal scratch']
  %s0 = inlined_call_operand.vmem [shape: bf16[512,128], index: 0, kind: input, shape index: {}]
  %s1 = inlined_call_operand.vmem [shape: bf16[128,128], index: 1, kind: input, shape index: {}]
  %s2 = inlined_call_operand.vmem [shape: bf16[512,128], index: 2, kind: output, shape index: {}]
  %s3 = sld [smem:[#allocation0]]
  $region41: #{gcn_forward.3} parent=0
    _
  %s5 = ssub.s32 1, %s3
  %s6 = scalar_select 0, %s5, %s3
  loop: start=0, step=1, limit=4
  $region2: #{gcn_forward.3} parent=0 // loop_pre_header
    _
  $region3: #{gcn_forward.3} parent=0 // loop_header
    %s8 = sphi 0, %s12
    %p9 = scmp.ge.s32.totalorder %s8, 4
    %s18 = sphi 0, %s20
    %s21 = sphi 0, %s18
    %s22 = sphi 0, %s21
    %s38 = sphi 0, %s22
    %s42 = sphi 0, %s42
    %s44 = sphi 0, %s42
    %s45 = sphi 0, %s44
    %s59 = sphi 0, %s45
    %s65 = sphi 0, %s67
    %s68 = sphi 0, %s65
    %s69 = sphi 0, %s68
    %s85 = sphi 0, %s69
  $region4: #{gcn_forward.3} parent=0 // loop_header_branch
    %11 = sbr.rel (%p9) target = $region8
  $region5: #{gcn_forward.3} parent=0 // loop_body
    %s13 = ssub.s32 %s8, 1
    %s14 = ssub.s32 %s8, 2
    %s15 = sadd.s32 %s8, 1
    %s16 = ssub.s32 %s8, %s15
    %p17 = scmp.eq.s32.totalorder %s16, 0
    %s19 = sadd.s32 %s18, 1
    %s20 = scalar_select %p17, %s18, %s19
    %p23 = pneg %p17
    %p24 = scmp.eq.s32.totalorder %s8, 1
    %p25 = por %p23, %p24
    %p26 = scmp.ne.s32.totalorder %s18, %s21
    %p27 = scmp.eq.s32.totalorder %s8, 0
    %p28 = por %p26, %p27
    %p29 = scmp.ne.s32.totalorder %s18, %s21
    %p30 = scmp.eq.s32.totalorder %s13, 1
    %p31 = por %p29, %p30
    %p32 = scmp.ne.s32.totalorder %s21, %s22
    %p33 = scmp.eq.s32.totalorder %s13, 0
    %p34 = por %p32, %p33
    %p35 = scmp.ne.s32.totalorder %s21, %s22
    %p36 = scmp.eq.s32.totalorder %s14, 1
    %p37 = por %p35, %p36
    %p39 = scmp.ne.s32.totalorder %s22, %s38
    %p40 = scmp.eq.s32.totalorder %s14, 0
    %p41 = por %p39, %p40
    %s43 = sadd.s32 %s42, 1
    %p46 = scmp.eq.s32.totalorder %s8, 1
    %p47 = scmp.ne.s32.totalorder %s42, %s44
    %p48 = scmp.eq.s32.totalorder %s8, 0
    %p49 = por %p47, %p48
    %p50 = scmp.ne.s32.totalorder %s42, %s44
    %p51 = scmp.eq.s32.totalorder %s13, 1
    %p52 = por %p50, %p51
    %p53 = scmp.ne.s32.totalorder %s44, %s45
    %p54 = scmp.eq.s32.totalorder %s13, 0
    %p55 = por %p53, %p54
    %p56 = scmp.ne.s32.totalorder %s44, %s45
    %p57 = scmp.eq.s32.totalorder %s14, 1
    %p58 = por %p56, %p57
    %p60 = scmp.ne.s32.totalorder %s45, %s59
    %p61 = scmp.eq.s32.totalorder %s14, 0
    %p62 = por %p60, %p61
    %s63 = ssub.s32 %s8, %s15
    %p64 = scmp.eq.s32.totalorder %s63, 0
    %s66 = sadd.s32 %s65, 1
    %s67 = scalar_select %p64, %s65, %s66
    %p70 = pneg %p64
    %p71 = scmp.eq.s32.totalorder %s8, 1
    %p72 = por %p70, %p71
    %p73 = scmp.ne.s32.totalorder %s65, %s68
    %p74 = scmp.eq.s32.totalorder %s8, 0
    %p75 = por %p73, %p74
    %p76 = scmp.ne.s32.totalorder %s65, %s68
    %p77 = scmp.eq.s32.totalorder %s13, 1
    %p78 = por %p76, %p77
    %p79 = scmp.ne.s32.totalorder %s68, %s69
    %p80 = scmp.eq.s32.totalorder %s13, 0
    %p81 = por %p79, %p80
    %p82 = scmp.ne.s32.totalorder %s68, %s69
    %p83 = scmp.eq.s32.totalorder %s14, 1
    %p84 = por %p82, %p83
    %p86 = scmp.ne.s32.totalorder %s69, %s85
    %p87 = scmp.eq.s32.totalorder %s14, 0
    %p88 = por %p86, %p87
    %p89 = scmp.le.s32.totalorder 1, %s8
    %p90 = scmp.lt.s32.totalorder %s8, 3
    %p91 = pnand %p89, %p90
    %p92 = pneg %p91
    // Predicated region
    $region9: #{gcn_forward.3} parent=5 // pred_check
      _
    $region10: #{gcn_forward.3} parent=5 // pred_check_branch
      %94 = sbr.rel (%p91) target = $region12
    $region11: #{gcn_forward.3} parent=5 // pred_region
      %s95 = ssub.s32 %s8, 1
      // Predicated region
      $region13: #{gcn_forward.3} parent=11 // pred_check
        %p96 = pneg %p55
      $region14: #{gcn_forward.3} parent=11 // pred_check_branch
        %98 = sbr.rel (%p96) target = $region16
      $region15: #{gcn_forward.3} parent=11 // pred_region
        _
      $region16: #{gcn_forward.3} parent=11 // pred_fallthru
        _
    $region12: #{gcn_forward.3} parent=5 // pred_fallthru
      _
    %p99 = scmp.lt.s32.totalorder %s8, 2
    // Predicated region
    $region17: #{gcn_forward.3} parent=5 // pred_check
      %p100 = pneg %p99
    $region18: #{gcn_forward.3} parent=5 // pred_check_branch
      %102 = sbr.rel (%p100) target = $region20
    $region19: #{gcn_forward.3} parent=5 // pred_region
      // Predicated region
      $region21: #{gcn_forward.3} parent=19 // pred_check
        %p103 = pneg %p28
      $region22: #{gcn_forward.3} parent=19 // pred_check_branch
        %105 = sbr.rel (%p103) target = $region24
      $region23: #{gcn_forward.3} parent=19 // pred_region
        %s106 = smul.u32 32, %s8
        %p107 = scmp.lt.s32.totalorder %s106, 63
        %s108 = scalar_select %p107, %s106, 63
        %s109 = smul.addr %s108, 4
        %s110 = scalar_lea.vmem %s0, %s109
        %s111 = smul.u32 32, %s8
      $region24: #{gcn_forward.3} parent=19 // pred_fallthru
        _
    $region20: #{gcn_forward.3} parent=5 // pred_fallthru
      _
    %p112 = scmp.le.s32.totalorder 1, %s8
    %p113 = scmp.lt.s32.totalorder %s8, 3
    %p114 = pnand %p112, %p113
    %p115 = pneg %p114
    // Predicated region
    $region25: #{gcn_forward.3} parent=5 // pred_check
      _
    $region26: #{gcn_forward.3} parent=5 // pred_check_branch
      %117 = sbr.rel (%p114) target = $region28
    $region27: #{gcn_forward.3} parent=5 // pred_region
      %s118 = ssub.s32 %s8, 1
      %s119 = smul.u32 32, %s13
      %p120 = scmp.lt.s32.totalorder %s119, 63
      %s121 = scalar_select %p120, %s119, 63
      %s122 = smul.addr %s121, 4
      %s123 = scalar_lea.vmem %s0, %s122
      %p124 = pneg %p34
      %p125 = pneg %p31
      %p126 = pneg %p55
      %p127 = pneg %p52
      %p128 = pneg %p81
      %p129 = pneg %p78
      %s130 = smul.u32 32, %s13
      %p131 = scmp.lt.s32.totalorder %s130, 63
      %s132 = scalar_select %p131, %s130, 63
      %s133 = smul.addr %s132, 4
      %s134 = scalar_lea.vmem %s2, %s133
      %s135 = smul.u32 32, %s13
      %p136 = scmp.lt.s32.totalorder %s135, 63
      %s137 = scalar_select %p136, %s135, 63
      %s138 = smul.addr %s137, 4
      %s139 = scalar_lea.vmem %s0, %s138
      %s140 = smul.u32 32, %s13
      %s141 = smul.u32 32, %s13
      %p142 = scmp.lt.s32.totalorder %s141, 63
      %s143 = scalar_select %p142, %s141, 63
      %s144 = smul.addr %s143, 4
      %s145 = scalar_lea.vmem %s2, %s144
      %s146 = smul.u32 32, %s13
      %v148 = vld [vmem:[%s139] sm:$0xf]
      %v149 = vld [vmem:[%s139 + $0x4] sm:$0xf]
      %v150 = vld [vmem:[%s139 + $0x8] sm:$0xf]
      %v151 = vld [vmem:[%s139 + $0xc] sm:$0xf]
      %v152 = vld [vmem:[%s139 + $0x10] sm:$0xf]
      %v153 = vld [vmem:[%s139 + $0x14] sm:$0xf]
      %v154 = vld [vmem:[%s139 + $0x18] sm:$0xf]
      %v155 = vld [vmem:[%s139 + $0x1c] sm:$0xf]
      %v156 = vld [vmem:[%s139 + $0x20] sm:$0xf]
      %v157 = vld [vmem:[%s139 + $0x24] sm:$0xf]
      %v158 = vld [vmem:[%s139 + $0x28] sm:$0xf]
      %v159 = vld [vmem:[%s139 + $0x2c] sm:$0xf]
      %v160 = vld [vmem:[%s139 + $0x30] sm:$0xf]
      %v161 = vld [vmem:[%s139 + $0x34] sm:$0xf]
      %v162 = vld [vmem:[%s139 + $0x38] sm:$0xf]
      %v163 = vld [vmem:[%s139 + $0x3c] sm:$0xf]
      %v164 = vld [vmem:[%s139 + $0x40] sm:$0xf]
      %v165 = vld [vmem:[%s139 + $0x44] sm:$0xf]
      %v166 = vld [vmem:[%s139 + $0x48] sm:$0xf]
      %v167 = vld [vmem:[%s139 + $0x4c] sm:$0xf]
      %v168 = vld [vmem:[%s139 + $0x50] sm:$0xf]
      %v169 = vld [vmem:[%s139 + $0x54] sm:$0xf]
      %v170 = vld [vmem:[%s139 + $0x58] sm:$0xf]
      %v171 = vld [vmem:[%s139 + $0x5c] sm:$0xf]
      %v172 = vld [vmem:[%s139 + $0x60] sm:$0xf]
      %v173 = vld [vmem:[%s139 + $0x64] sm:$0xf]
      %v174 = vld [vmem:[%s139 + $0x68] sm:$0xf]
      %v175 = vld [vmem:[%s139 + $0x6c] sm:$0xf]
      %v176 = vld [vmem:[%s139 + $0x70] sm:$0xf]
      %v177 = vld [vmem:[%s139 + $0x74] sm:$0xf]
      %v178 = vld [vmem:[%s139 + $0x78] sm:$0xf]
      %v179 = vld [vmem:[%s139 + $0x7c] sm:$0xf]
      %v180 = vld [vmem:[%s1] sm:$0xf]
      %v181 = vld [vmem:[%s1 + $0x4] sm:$0xf]
      %v182 = vld [vmem:[%s1 + $0x8] sm:$0xf]
      %v183 = vld [vmem:[%s1 + $0xc] sm:$0xf]
      %v184 = vld [vmem:[%s1 + $0x10] sm:$0xf]
      %v185 = vld [vmem:[%s1 + $0x14] sm:$0xf]
      %v186 = vld [vmem:[%s1 + $0x18] sm:$0xf]
      %v187 = vld [vmem:[%s1 + $0x1c] sm:$0xf]
      %v188 = vld [vmem:[%s1 + $0x20] sm:$0xf]
      %v189 = vld [vmem:[%s1 + $0x24] sm:$0xf]
      %v190 = vld [vmem:[%s1 + $0x28] sm:$0xf]
      %v191 = vld [vmem:[%s1 + $0x2c] sm:$0xf]
      %v192 = vld [vmem:[%s1 + $0x30] sm:$0xf]
      %v193 = vld [vmem:[%s1 + $0x34] sm:$0xf]
      %v194 = vld [vmem:[%s1 + $0x38] sm:$0xf]
      %v195 = vld [vmem:[%s1 + $0x3c] sm:$0xf]
      %v228 = vunpack.c.l.b16 %v148
      %v229 = vunpack.c.l.b16 %v149
      %v230 = vunpack.c.l.b16 %v150
      %v231 = vunpack.c.l.b16 %v151
      %v232 = vunpack.c.l.b16 %v152
      %v233 = vunpack.c.l.b16 %v153
      %v234 = vunpack.c.l.b16 %v154
      %v235 = vunpack.c.l.b16 %v155
      %v236 = vunpack.c.l.b16 %v156
      %v237 = vunpack.c.l.b16 %v157
      %v238 = vunpack.c.l.b16 %v158
      %v239 = vunpack.c.l.b16 %v159
      %v240 = vunpack.c.l.b16 %v160
      %v241 = vunpack.c.l.b16 %v161
      %v242 = vunpack.c.l.b16 %v162
      %v243 = vunpack.c.l.b16 %v163
      %v244 = vunpack.c.l.b16 %v164
      %v245 = vunpack.c.l.b16 %v165
      %v246 = vunpack.c.l.b16 %v166
      %v247 = vunpack.c.l.b16 %v167
      %v248 = vunpack.c.l.b16 %v168
      %v249 = vunpack.c.l.b16 %v169
      %v250 = vunpack.c.l.b16 %v170
      %v251 = vunpack.c.l.b16 %v171
      %v252 = vunpack.c.l.b16 %v172
      %v253 = vunpack.c.l.b16 %v173
      %v254 = vunpack.c.l.b16 %v174
      %v255 = vunpack.c.l.b16 %v175
      %v256 = vunpack.c.l.b16 %v176
      %v257 = vunpack.c.l.b16 %v177
      %v258 = vunpack.c.l.b16 %v178
      %v259 = vunpack.c.l.b16 %v179
      %v260 = vpack.c.b16 %v229, %v228
      %v261 = vpack.c.b16 %v231, %v230
      %v262 = vpack.c.b16 %v233, %v232
      %v263 = vpack.c.b16 %v235, %v234
      %v264 = vpack.c.b16 %v237, %v236
      %v265 = vpack.c.b16 %v239, %v238
      %v266 = vpack.c.b16 %v241, %v240
      %v267 = vpack.c.b16 %v243, %v242
      %v268 = vpack.c.b16 %v245, %v244
      %v269 = vpack.c.b16 %v247, %v246
      %v270 = vpack.c.b16 %v249, %v248
      %v271 = vpack.c.b16 %v251, %v250
      %v272 = vpack.c.b16 %v253, %v252
      %v273 = vpack.c.b16 %v255, %v254
      %v274 = vpack.c.b16 %v257, %v256
      %v275 = vpack.c.b16 %v259, %v258
      %v308 = vunpack.c.l.b16 %v180
      %v309 = vunpack.c.l.b16 %v181
      %v310 = vunpack.c.l.b16 %v182
      %v311 = vunpack.c.l.b16 %v183
      %v312 = vunpack.c.l.b16 %v184
      %v313 = vunpack.c.l.b16 %v185
      %v314 = vunpack.c.l.b16 %v186
      %v315 = vunpack.c.l.b16 %v187
      %v316 = vunpack.c.l.b16 %v188
      %v317 = vunpack.c.l.b16 %v189
      %v318 = vunpack.c.l.b16 %v190
      %v319 = vunpack.c.l.b16 %v191
      %v320 = vunpack.c.l.b16 %v192
      %v321 = vunpack.c.l.b16 %v193
      %v322 = vunpack.c.l.b16 %v194
      %v323 = vunpack.c.l.b16 %v195
      %v324 = vpack.c.b16 %v309, %v308
      %v325 = vpack.c.b16 %v311, %v310
      %v326 = vpack.c.b16 %v313, %v312
      %v327 = vpack.c.b16 %v315, %v314
      %v328 = vpack.c.b16 %v317, %v316
      %v329 = vpack.c.b16 %v319, %v318
      %v330 = vpack.c.b16 %v321, %v320
      %v331 = vpack.c.b16 %v323, %v322
      %340 = vmatprep.subr.bf16.mxu0 0
      %341 = vmatpush1.bf16.msra.mxu0 %v324
      %342 = vmatprep.subr.bf16.mxu0 0
      %343 = vmatpush1.bf16.msra.mxu0 %v325
      %344 = vmatprep.subr.bf16.mxu0 0
      %345 = vmatpush1.bf16.msra.mxu0 %v326
      %346 = vmatprep.subr.bf16.mxu0 0
      %347 = vmatpush1.bf16.msra.mxu0 %v327
      %348 = vmatprep.subr.bf16.mxu0 0
      %349 = vmatpush1.bf16.msra.mxu0 %v328
      %350 = vmatprep.subr.bf16.mxu0 0
      %351 = vmatpush1.bf16.msra.mxu0 %v329
      %352 = vmatprep.subr.bf16.mxu0 0
      %353 = vmatpush1.bf16.msra.mxu0 %v330
      %354 = vmatprep.subr.bf16.mxu0 0
      %355 = vmatpush1.bf16.msra.mxu0 %v331
      %356 = vmatprep.subr.bf16.mxu0 0
      %357 = vmatpush1.bf16.msra.mxu0 0
      %358 = vmatprep.subr.bf16.mxu0 0
      %359 = vmatpush1.bf16.msra.mxu0 0
      %360 = vmatprep.subr.bf16.mxu0 0
      %361 = vmatpush1.bf16.msra.mxu0 0
      %362 = vmatprep.subr.bf16.mxu0 0
      %363 = vmatpush1.bf16.msra.mxu0 0
      %364 = vmatprep.subr.bf16.mxu0 0
      %365 = vmatpush1.bf16.msra.mxu0 0
      %366 = vmatprep.subr.bf16.mxu0 0
      %367 = vmatpush1.bf16.msra.mxu0 0
      %368 = vmatprep.subr.bf16.mxu0 0
      %369 = vmatpush1.bf16.msra.mxu0 0
      %370 = vmatprep.subr.bf16.mxu0 0
      %371 = vmatpush1.bf16.msra.mxu0 0
      %372 = vmatprep.mubr.bf16.mxu0 0
      %373 = vmatmul.mubr.bf16.gmra.mrb[0].mxu0 %v260
      %v374 = vpop.f32.mrb[0].mxu0
      %v375 = vadd.f32 0.0, %v374
      %v376 = vpop.f32.mrb[0].mxu0
      %v377 = vpop.f32.mrb[0].mxu0
      %v378 = vadd.f32 0.0, %v377
      %v379 = vpop.f32.mrb[0].mxu0
      %380 = vmatprep.mubr.bf16.mxu0 0
      %381 = vmatmul.mubr.bf16.gmra.mrb[0].mxu0 %v261
      %v382 = vpop.f32.mrb[0].mxu0
      %v383 = vadd.f32 0.0, %v382
      %v384 = vpop.f32.mrb[0].mxu0
      %v385 = vpop.f32.mrb[0].mxu0
      %v386 = vadd.f32 0.0, %v385
      %v387 = vpop.f32.mrb[0].mxu0
      %388 = vmatprep.mubr.bf16.mxu0 0
      %389 = vmatmul.mubr.bf16.gmra.mrb[0].mxu0 %v262
      %v390 = vpop.f32.mrb[0].mxu0
      %v391 = vadd.f32 0.0, %v390
      %v392 = vpop.f32.mrb[0].mxu0
      %v393 = vpop.f32.mrb[0].mxu0
      %v394 = vadd.f32 0.0, %v393
      %v395 = vpop.f32.mrb[0].mxu0
      %396 = vmatprep.mubr.bf16.mxu0 0
      %397 = vmatmul.mubr.bf16.gmra.mrb[0].mxu0 %v263
      %v398 = vpop.f32.mrb[0].mxu0
      %v399 = vadd.f32 0.0, %v398
      %v400 = vpop.f32.mrb[0].mxu0
      %v401 = vpop.f32.mrb[0].mxu0
      %v402 = vadd.f32 0.0, %v401
      %v403 = vpop.f32.mrb[0].mxu0
      %404 = vmatprep.mubr.bf16.mxu0 0
      %405 = vmatmul.mubr.bf16.gmra.mrb[0].mxu0 %v264
      %v406 = vpop.f32.mrb[0].mxu0
      %v407 = vadd.f32 0.0, %v406
      %v408 = vpop.f32.mrb[0].mxu0
      %v409 = vpop.f32.mrb[0].mxu0
      %v410 = vadd.f32 0.0, %v409
      %v411 = vpop.f32.mrb[0].mxu0
      %412 = vmatprep.mubr.bf16.mxu0 0
      %413 = vmatmul.mubr.bf16.gmra.mrb[0].mxu0 %v265
      %v414 = vpop.f32.mrb[0].mxu0
      %v415 = vadd.f32 0.0, %v414
      %v416 = vpop.f32.mrb[0].mxu0
      %v417 = vpop.f32.mrb[0].mxu0
      %v418 = vadd.f32 0.0, %v417
      %v419 = vpop.f32.mrb[0].mxu0
      %420 = vmatprep.mubr.bf16.mxu0 0
      %421 = vmatmul.mubr.bf16.gmra.mrb[0].mxu0 %v266
      %v422 = vpop.f32.mrb[0].mxu0
      %v423 = vadd.f32 0.0, %v422
      %v424 = vpop.f32.mrb[0].mxu0
      %v425 = vpop.f32.mrb[0].mxu0
      %v426 = vadd.f32 0.0, %v425
      %v427 = vpop.f32.mrb[0].mxu0
      %428 = vmatprep.mubr.bf16.mxu0 0
      %429 = vmatmul.mubr.bf16.gmra.mrb[0].mxu0 %v267
      %v430 = vpop.f32.mrb[0].mxu0
      %v431 = vadd.f32 0.0, %v430
      %v432 = vpop.f32.mrb[0].mxu0
      %v433 = vpop.f32.mrb[0].mxu0
      %v434 = vadd.f32 0.0, %v433
      %v435 = vpop.f32.mrb[0].mxu0
      %436 = vmatprep.mubr.bf16.mxu0 0
      %437 = vmatmul.mubr.bf16.gmra.mrb[0].mxu0 %v268
      %v438 = vpop.f32.mrb[0].mxu0
      %v439 = vadd.f32 0.0, %v438
      %v440 = vpop.f32.mrb[0].mxu0
      %v441 = vpop.f32.mrb[0].mxu0
      %v442 = vadd.f32 0.0, %v441
      %v443 = vpop.f32.mrb[0].mxu0
      %444 = vmatprep.mubr.bf16.mxu0 0
      %445 = vmatmul.mubr.bf16.gmra.mrb[0].mxu0 %v269
      %v446 = vpop.f32.mrb[0].mxu0
      %v447 = vadd.f32 0.0, %v446
      %v448 = vpop.f32.mrb[0].mxu0
      %v449 = vpop.f32.mrb[0].mxu0
      %v450 = vadd.f32 0.0, %v449
      %v451 = vpop.f32.mrb[0].mxu0
      %452 = vmatprep.mubr.bf16.mxu0 0
      %453 = vmatmul.mubr.bf16.gmra.mrb[0].mxu0 %v270
      %v454 = vpop.f32.mrb[0].mxu0
      %v455 = vadd.f32 0.0, %v454
      %v456 = vpop.f32.mrb[0].mxu0
      %v457 = vpop.f32.mrb[0].mxu0
      %v458 = vadd.f32 0.0, %v457
      %v459 = vpop.f32.mrb[0].mxu0
      %460 = vmatprep.mubr.bf16.mxu0 0
      %461 = vmatmul.mubr.bf16.gmra.mrb[0].mxu0 %v271
      %v462 = vpop.f32.mrb[0].mxu0
      %v463 = vadd.f32 0.0, %v462
      %v464 = vpop.f32.mrb[0].mxu0
      %v465 = vpop.f32.mrb[0].mxu0
      %v466 = vadd.f32 0.0, %v465
      %v467 = vpop.f32.mrb[0].mxu0
      %468 = vmatprep.mubr.bf16.mxu0 0
      %469 = vmatmul.mubr.bf16.gmra.mrb[0].mxu0 %v272
      %v470 = vpop.f32.mrb[0].mxu0
      %v471 = vadd.f32 0.0, %v470
      %v472 = vpop.f32.mrb[0].mxu0
      %v473 = vpop.f32.mrb[0].mxu0
      %v474 = vadd.f32 0.0, %v473
      %v475 = vpop.f32.mrb[0].mxu0
      %476 = vmatprep.mubr.bf16.mxu0 0
      %477 = vmatmul.mubr.bf16.gmra.mrb[0].mxu0 %v273
      %v478 = vpop.f32.mrb[0].mxu0
      %v479 = vadd.f32 0.0, %v478
      %v480 = vpop.f32.mrb[0].mxu0
      %v481 = vpop.f32.mrb[0].mxu0
      %v482 = vadd.f32 0.0, %v481
      %v483 = vpop.f32.mrb[0].mxu0
      %484 = vmatprep.mubr.bf16.mxu0 0
      %485 = vmatmul.mubr.bf16.gmra.mrb[0].mxu0 %v274
      %v486 = vpop.f32.mrb[0].mxu0
      %v487 = vadd.f32 0.0, %v486
      %v488 = vpop.f32.mrb[0].mxu0
      %v489 = vpop.f32.mrb[0].mxu0
      %v490 = vadd.f32 0.0, %v489
      %v491 = vpop.f32.mrb[0].mxu0
      %492 = vmatprep.mubr.bf16.mxu0 0
      %493 = vmatmul.mubr.bf16.gmra.mrb[0].mxu0 %v275
      %v494 = vpop.f32.mrb[0].mxu0
      %v495 = vadd.f32 0.0, %v494
      %v496 = vpop.f32.mrb[0].mxu0
      %v497 = vpop.f32.mrb[0].mxu0
      %v498 = vadd.f32 0.0, %v497
      %v499 = vpop.f32.mrb[0].mxu0
      %500 = vdwg.mxu0
      %v501 = vpack.c.bf16 %v378, %v375
      %v502 = vpack.c.bf16 %v386, %v383
      %v503 = vpack.c.bf16 %v394, %v391
      %v504 = vpack.c.bf16 %v402, %v399
      %v505 = vpack.c.bf16 %v410, %v407
      %v506 = vpack.c.bf16 %v418, %v415
      %v507 = vpack.c.bf16 %v426, %v423
      %v508 = vpack.c.bf16 %v434, %v431
      %v509 = vpack.c.bf16 %v442, %v439
      %v510 = vpack.c.bf16 %v450, %v447
      %v511 = vpack.c.bf16 %v458, %v455
      %v512 = vpack.c.bf16 %v466, %v463
      %v513 = vpack.c.bf16 %v474, %v471
      %v514 = vpack.c.bf16 %v482, %v479
      %v515 = vpack.c.bf16 %v490, %v487
      %v516 = vpack.c.bf16 %v498, %v495
      %v533 = vunpack.c.l.b16 %v501
      %v534 = vunpack.c.h.b16 %v501
      %v535 = vunpack.c.l.b16 %v502
      %v536 = vunpack.c.h.b16 %v502
      %v537 = vunpack.c.l.b16 %v503
      %v538 = vunpack.c.h.b16 %v503
      %v539 = vunpack.c.l.b16 %v504
      %v540 = vunpack.c.h.b16 %v504
      %v541 = vunpack.c.l.b16 %v505
      %v542 = vunpack.c.h.b16 %v505
      %v543 = vunpack.c.l.b16 %v506
      %v544 = vunpack.c.h.b16 %v506
      %v545 = vunpack.c.l.b16 %v507
      %v546 = vunpack.c.h.b16 %v507
      %v547 = vunpack.c.l.b16 %v508
      %v548 = vunpack.c.h.b16 %v508
      %v549 = vunpack.c.l.b16 %v509
      %v550 = vunpack.c.h.b16 %v509
      %v551 = vunpack.c.l.b16 %v510
      %v552 = vunpack.c.h.b16 %v510
      %v553 = vunpack.c.l.b16 %v511
      %v554 = vunpack.c.h.b16 %v511
      %v555 = vunpack.c.l.b16 %v512
      %v556 = vunpack.c.h.b16 %v512
      %v557 = vunpack.c.l.b16 %v513
      %v558 = vunpack.c.h.b16 %v513
      %v559 = vunpack.c.l.b16 %v514
      %v560 = vunpack.c.h.b16 %v514
      %v561 = vunpack.c.l.b16 %v515
      %v562 = vunpack.c.h.b16 %v515
      %v563 = vunpack.c.l.b16 %v516
      %v564 = vunpack.c.h.b16 %v516
      %v565 = vpack.c.b16 %v533, %v533
      %v566 = vpack.c.b16 %v534, %v534
      %v567 = vpack.c.b16 %v535, %v535
      %v568 = vpack.c.b16 %v536, %v536
      %v569 = vpack.c.b16 %v537, %v537
      %v570 = vpack.c.b16 %v538, %v538
      %v571 = vpack.c.b16 %v539, %v539
      %v572 = vpack.c.b16 %v540, %v540
      %v573 = vpack.c.b16 %v541, %v541
      %v574 = vpack.c.b16 %v542, %v542
      %v575 = vpack.c.b16 %v543, %v543
      %v576 = vpack.c.b16 %v544, %v544
      %v577 = vpack.c.b16 %v545, %v545
      %v578 = vpack.c.b16 %v546, %v546
      %v579 = vpack.c.b16 %v547, %v547
      %v580 = vpack.c.b16 %v548, %v548
      %v581 = vpack.c.b16 %v549, %v549
      %v582 = vpack.c.b16 %v550, %v550
      %v583 = vpack.c.b16 %v551, %v551
      %v584 = vpack.c.b16 %v552, %v552
      %v585 = vpack.c.b16 %v553, %v553
      %v586 = vpack.c.b16 %v554, %v554
      %v587 = vpack.c.b16 %v555, %v555
      %v588 = vpack.c.b16 %v556, %v556
      %v589 = vpack.c.b16 %v557, %v557
      %v590 = vpack.c.b16 %v558, %v558
      %v591 = vpack.c.b16 %v559, %v559
      %v592 = vpack.c.b16 %v560, %v560
      %v593 = vpack.c.b16 %v561, %v561
      %v594 = vpack.c.b16 %v562, %v562
      %v595 = vpack.c.b16 %v563, %v563
      %v596 = vpack.c.b16 %v564, %v564
      %629 = vst [vmem:[%s145] sm:$0xf] %v565
      %630 = vst [vmem:[%s145 + $0x4] sm:$0xf] %v566
      %631 = vst [vmem:[%s145 + $0x8] sm:$0xf] %v567
      %632 = vst [vmem:[%s145 + $0xc] sm:$0xf] %v568
      %633 = vst [vmem:[%s145 + $0x10] sm:$0xf] %v569
      %634 = vst [vmem:[%s145 + $0x14] sm:$0xf] %v570
      %635 = vst [vmem:[%s145 + $0x18] sm:$0xf] %v571
      %636 = vst [vmem:[%s145 + $0x1c] sm:$0xf] %v572
      %637 = vst [vmem:[%s145 + $0x20] sm:$0xf] %v573
      %638 = vst [vmem:[%s145 + $0x24] sm:$0xf] %v574
      %639 = vst [vmem:[%s145 + $0x28] sm:$0xf] %v575
      %640 = vst [vmem:[%s145 + $0x2c] sm:$0xf] %v576
      %641 = vst [vmem:[%s145 + $0x30] sm:$0xf] %v577
      %642 = vst [vmem:[%s145 + $0x34] sm:$0xf] %v578
      %643 = vst [vmem:[%s145 + $0x38] sm:$0xf] %v579
      %644 = vst [vmem:[%s145 + $0x3c] sm:$0xf] %v580
      %645 = vst [vmem:[%s145 + $0x40] sm:$0xf] %v581
      %646 = vst [vmem:[%s145 + $0x44] sm:$0xf] %v582
      %647 = vst [vmem:[%s145 + $0x48] sm:$0xf] %v583
      %648 = vst [vmem:[%s145 + $0x4c] sm:$0xf] %v584
      %649 = vst [vmem:[%s145 + $0x50] sm:$0xf] %v585
      %650 = vst [vmem:[%s145 + $0x54] sm:$0xf] %v586
      %651 = vst [vmem:[%s145 + $0x58] sm:$0xf] %v587
      %652 = vst [vmem:[%s145 + $0x5c] sm:$0xf] %v588
      %653 = vst [vmem:[%s145 + $0x60] sm:$0xf] %v589
      %654 = vst [vmem:[%s145 + $0x64] sm:$0xf] %v590
      %655 = vst [vmem:[%s145 + $0x68] sm:$0xf] %v591
      %656 = vst [vmem:[%s145 + $0x6c] sm:$0xf] %v592
      %657 = vst [vmem:[%s145 + $0x70] sm:$0xf] %v593
      %658 = vst [vmem:[%s145 + $0x74] sm:$0xf] %v594
      %659 = vst [vmem:[%s145 + $0x78] sm:$0xf] %v595
      %660 = vst [vmem:[%s145 + $0x7c] sm:$0xf] %v596
      %s661 = smul.u32 32, %s13
      %p662 = scmp.lt.s32.totalorder %s661, 63
      %s663 = scalar_select %p662, %s661, 63
      %s664 = smul.addr %s663, 4
      %s665 = scalar_lea.vmem %s2, %s664
      // Predicated region
      $region29: #{gcn_forward.3} parent=27 // pred_check
        %p666 = pneg %p78
      $region30: #{gcn_forward.3} parent=27 // pred_check_branch
        %668 = sbr.rel (%p666) target = $region32
      $region31: #{gcn_forward.3} parent=27 // pred_region
        %s669 = smul.u32 32, %s13
      $region32: #{gcn_forward.3} parent=27 // pred_fallthru
        _
    $region28: #{gcn_forward.3} parent=5 // pred_fallthru
      _
    %p670 = scmp.le.s32.totalorder 2, %s8
    // Predicated region
    $region33: #{gcn_forward.3} parent=5 // pred_check
      %p671 = pneg %p670
    $region34: #{gcn_forward.3} parent=5 // pred_check_branch
      %673 = sbr.rel (%p671) target = $region36
    $region35: #{gcn_forward.3} parent=5 // pred_region
      %s674 = ssub.s32 %s8, 2
      // Predicated region
      $region37: #{gcn_forward.3} parent=35 // pred_check
        %p675 = pneg %p84
      $region38: #{gcn_forward.3} parent=35 // pred_check_branch
        %677 = sbr.rel (%p675) target = $region40
      $region39: #{gcn_forward.3} parent=35 // pred_region
        %s678 = smul.u32 32, %s14
        %p679 = scmp.lt.s32.totalorder %s678, 63
        %s680 = scalar_select %p679, %s678, 63
        %s681 = smul.addr %s680, 4
        %s682 = scalar_lea.vmem %s2, %s681
      $region40: #{gcn_forward.3} parent=35 // pred_fallthru
        _
    $region36: #{gcn_forward.3} parent=5 // pred_fallthru
      _
  $region6: #{gcn_forward.3} parent=0 // loop_footer
    %s12 = sadd.s32 1, %s8
  $region7: #{gcn_forward.3} parent=0 // loop_footer_branch
    %7 = sbr.rel target = $region3
  $region8: #{gcn_forward.3} parent=0 // loop_exit
    _

// kernel: gcn_forward.5
$region0: #{gcn_forward.5}
  #allocation0 [shape = 'u32[]', space=smem, size = 0x4, offset = 0x4, fixed_abs, tag = 'smem constant byte address 0x4 - core index']
  #allocation1 [shape = 'u32[144,128]{1,0:T(1,128)}', space=vmem, size = 0x12000, scoped, tag = 'internal scratch']
  #allocation2 [shape = 'f32[256,128]{1,0:T(8,128)}', space=vmem, size = 0x20000, scoped, tag = 'scratch operand']
  %s0 = inlined_call_operand.vmem [shape: bf16[512,512], index: 0, kind: input, shape index: {}]
  %s1 = inlined_call_operand.vmem [shape: bf16[512,128], index: 1, kind: input, shape index: {}]
  %s2 = inlined_call_operand.vmem [shape: f32[1,128], index: 2, kind: input, shape index: {}]
  %s3 = inlined_call_operand.vmem [shape: f32[512,128], index: 3, kind: output, shape index: {}]
  %s4 = sld [smem:[#allocation0]]
  $region91: #{gcn_forward.5} parent=0
    _
  %s6 = ssub.s32 1, %s4
  %s7 = scalar_select 0, %s6, %s4
  $region1: #{gcn_forward.5} parent=0
    #allocation3 [shape = 'u8[262144]{0}', space=vmem, size = 0x40000, scoped, tag = 'input window, operand 0']
    loop: start=0, step=1, limit=6
    $region2: #{gcn_forward.5} parent=1 // loop_pre_header
      _
    $region3: #{gcn_forward.5} parent=1 // loop_header
      %s9 = sphi 0, %s13
      %p10 = scmp.ge.s32.totalorder %s9, 6
      %s16 = sphi 0, %s28
      %s17 = sphi 0, %s24
      %s18 = sphi 0, %s16
      %s19 = sphi 0, %s17
      %s20 = sphi 0, %s18
      %s21 = sphi 0, %s19
      %s33 = sphi 0, %s35
      %s36 = sphi 0, %s33
      %s37 = sphi 0, %s36
      %s53 = sphi 0, %s37
      %s59 = sphi 0, %s61
      %s62 = sphi 0, %s59
      %s63 = sphi 0, %s62
      %s79 = sphi 0, %s63
      %s83 = sphi 0, %s83
      %s85 = sphi 0, %s83
      %s86 = sphi 0, %s85
      %s100 = sphi 0, %s86
      %s106 = sphi 0, %s108
      %s109 = sphi 0, %s106
      %s110 = sphi 0, %s109
      %s126 = sphi 0, %s110
    $region4: #{gcn_forward.5} parent=1 // loop_header_branch
      %12 = sbr.rel (%p10) target = $region8
    $region5: #{gcn_forward.5} parent=1 // loop_body
      %s14 = ssub.s32 %s9, 1
      %s15 = ssub.s32 %s9, 2
      %s22 = sadd.s32 1, %s17
      %p23 = scmp.ge.s32.totalorder %s22, 2
      %s24 = scalar_select %p23, 0, %s22
      %s25 = sadd.s32 1, %s16
      %s26 = scalar_select %p23, %s25, %s16
      %p27 = scmp.ge.s32.totalorder %s26, 2
      %s28 = scalar_select %p27, 0, %s26
      %s29 = ssub.s32 %s16, %s28
      %s30 = ssub.s32 %s17, %s24
      %s31 = sor.u32 %s29, %s30
      %p32 = scmp.eq.s32.totalorder %s31, 0
      %s34 = sadd.s32 %s33, 1
      %s35 = scalar_select %p32, %s33, %s34
      %p38 = pneg %p32
      %p39 = scmp.eq.s32.totalorder %s9, 3
      %p40 = por %p38, %p39
      %p41 = scmp.ne.s32.totalorder %s33, %s36
      %p42 = scmp.eq.s32.totalorder %s9, 0
      %p43 = por %p41, %p42
      %p44 = scmp.ne.s32.totalorder %s33, %s36
      %p45 = scmp.eq.s32.totalorder %s14, 3
      %p46 = por %p44, %p45
      %p47 = scmp.ne.s32.totalorder %s36, %s37
      %p48 = scmp.eq.s32.totalorder %s14, 0
      %p49 = por %p47, %p48
      %p50 = scmp.ne.s32.totalorder %s36, %s37
      %p51 = scmp.eq.s32.totalorder %s15, 3
      %p52 = por %p50, %p51
      %p54 = scmp.ne.s32.totalorder %s37, %s53
      %p55 = scmp.eq.s32.totalorder %s15, 0
      %p56 = por %p54, %p55
      %s57 = ssub.s32 %s17, %s24
      %p58 = scmp.eq.s32.totalorder %s57, 0
      %s60 = sadd.s32 %s59, 1
      %s61 = scalar_select %p58, %s59, %s60
      %p64 = pneg %p58
      %p65 = scmp.eq.s32.totalorder %s9, 3
      %p66 = por %p64, %p65
      %p67 = scmp.ne.s32.totalorder %s59, %s62
      %p68 = scmp.eq.s32.totalorder %s9, 0
      %p69 = por %p67, %p68
      %p70 = scmp.ne.s32.totalorder %s59, %s62
      %p71 = scmp.eq.s32.totalorder %s14, 3
      %p72 = por %p70, %p71
      %p73 = scmp.ne.s32.totalorder %s62, %s63
      %p74 = scmp.eq.s32.totalorder %s14, 0
      %p75 = por %p73, %p74
      %p76 = scmp.ne.s32.totalorder %s62, %s63
      %p77 = scmp.eq.s32.totalorder %s15, 3
      %p78 = por %p76, %p77
      %p80 = scmp.ne.s32.totalorder %s63, %s79
      %p81 = scmp.eq.s32.totalorder %s15, 0
      %p82 = por %p80, %p81
      %s84 = sadd.s32 %s83, 1
      %p87 = scmp.eq.s32.totalorder %s9, 3
      %p88 = scmp.ne.s32.totalorder %s83, %s85
      %p89 = scmp.eq.s32.totalorder %s9, 0
      %p90 = por %p88, %p89
      %p91 = scmp.ne.s32.totalorder %s83, %s85
      %p92 = scmp.eq.s32.totalorder %s14, 3
      %p93 = por %p91, %p92
      %p94 = scmp.ne.s32.totalorder %s85, %s86
      %p95 = scmp.eq.s32.totalorder %s14, 0
      %p96 = por %p94, %p95
      %p97 = scmp.ne.s32.totalorder %s85, %s86
      %p98 = scmp.eq.s32.totalorder %s15, 3
      %p99 = por %p97, %p98
      %p101 = scmp.ne.s32.totalorder %s86, %s100
      %p102 = scmp.eq.s32.totalorder %s15, 0
      %p103 = por %p101, %p102
      %s104 = ssub.s32 %s16, %s28
      %p105 = scmp.eq.s32.totalorder %s104, 0
      %s107 = sadd.s32 %s106, 1
      %s108 = scalar_select %p105, %s106, %s107
      %p111 = pneg %p105
      %p112 = scmp.eq.s32.totalorder %s9, 3
      %p113 = por %p111, %p112
      %p114 = scmp.ne.s32.totalorder %s106, %s109
      %p115 = scmp.eq.s32.totalorder %s9, 0
      %p116 = por %p114, %p115
      %p117 = scmp.ne.s32.totalorder %s106, %s109
      %p118 = scmp.eq.s32.totalorder %s14, 3
      %p119 = por %p117, %p118
      %p120 = scmp.ne.s32.totalorder %s109, %s110
      %p121 = scmp.eq.s32.totalorder %s14, 0
      %p122 = por %p120, %p121
      %p123 = scmp.ne.s32.totalorder %s109, %s110
      %p124 = scmp.eq.s32.totalorder %s15, 3
      %p125 = por %p123, %p124
      %p127 = scmp.ne.s32.totalorder %s110, %s126
      %p128 = scmp.eq.s32.totalorder %s15, 0
      %p129 = por %p127, %p128
      %p130 = scmp.le.s32.totalorder 1, %s9
      %p131 = scmp.lt.s32.totalorder %s9, 5
      %p132 = pnand %p130, %p131
      %p133 = pneg %p132
      // Predicated region
      $region9: #{gcn_forward.5} parent=5 // pred_check
        _
      $region10: #{gcn_forward.5} parent=5 // pred_check_branch
        %135 = sbr.rel (%p132) target = $region12
      $region11: #{gcn_forward.5} parent=5 // pred_region
        %s136 = ssub.s32 %s9, 1
        // Predicated region
        $region13: #{gcn_forward.5} parent=11 // pred_check
          %p137 = pneg %p96
        $region14: #{gcn_forward.5} parent=11 // pred_check_branch
          %139 = sbr.rel (%p137) target = $region16
        $region15: #{gcn_forward.5} parent=11 // pred_region
          _
        $region16: #{gcn_forward.5} parent=11 // pred_fallthru
          _
      $region12: #{gcn_forward.5} parent=5 // pred_fallthru
        _
      %p140 = scmp.lt.s32.totalorder %s9, 4
      // Predicated region
      $region17: #{gcn_forward.5} parent=5 // pred_check
        %p141 = pneg %p140
      $region18: #{gcn_forward.5} parent=5 // pred_check_branch
        %143 = sbr.rel (%p141) target = $region20
      $region19: #{gcn_forward.5} parent=5 // pred_region
        // Predicated region
        $region21: #{gcn_forward.5} parent=19 // pred_check
          %p144 = pneg %p43
        $region22: #{gcn_forward.5} parent=19 // pred_check_branch
          %146 = sbr.rel (%p144) target = $region24
        $region23: #{gcn_forward.5} parent=19 // pred_region
          %s147 = sand.u32 %s33, 1
          %s148 = sand.u32 %s33, 1
          %s149 = smul.addr %s148, 256
          %s150 = scalar_lea.vmem [#allocation3], %s149
          %s151 = smul.u32 32, %s16
          %s152 = smul.u32 2, %s17
          %s153 = smul.addr %s151, 4
          %s154 = sadd.s32 %s152, %s153
          %s155 = smul.addr %s154, 4
          %s156 = scalar_lea.vmem %s0, %s155
          // Predicated region
          $region25: #{gcn_forward.5} parent=23 // pred_check
            _
          $region26: #{gcn_forward.5} parent=23 // pred_check_branch
            %158 = sbr.rel (0) target = $region28
          $region27: #{gcn_forward.5} parent=23 // pred_region
            // Predicated region
            $region29: #{gcn_forward.5} parent=27 // pred_check
              _
            $region30: #{gcn_forward.5} parent=27 // pred_check_branch
              %160 = sbr.rel (0) target = $region32
            $region31: #{gcn_forward.5} parent=27 // pred_region
              // Predicated region
              $region44: #{gcn_forward.5} parent=31 // pred_check
                _
              $region45: #{gcn_forward.5} parent=31 // pred_check_branch
                %237 = sbr.rel (0) target = $region47
              $region46: #{gcn_forward.5} parent=31 // pred_region
                loop: start=0, step=1, limit=1
                $region48: #{gcn_forward.5} parent=46 // loop_pre_header
                  _
                $region49: #{gcn_forward.5} parent=46 // loop_header
                  %s239 = sphi 0, %s243
                  %p240 = scmp.ge.s32.totalorder %s239, 1
                  %s244 = sphi %s156, %s156
                  %s245 = sphi %s150, %s150
                $region50: #{gcn_forward.5} parent=46 // loop_header_branch
                  %242 = sbr.rel (%p240) target = $region54
                $region51: #{gcn_forward.5} parent=46 // loop_body
                  %v246 = vld [vmem:[%s244] sm:$0xff]
                  %247 = vst [vmem:[%s245] sm:$0xff] %v246
                  %v248 = vld [vmem:[%s244 + $0x10] sm:$0xff]
                  %249 = vst [vmem:[%s245 + $0x8] sm:$0xff] %v248
                  %v250 = vld [vmem:[%s244 + $0x20] sm:$0xff]
                  %251 = vst [vmem:[%s245 + $0x10] sm:$0xff] %v250
                  %v252 = vld [vmem:[%s244 + $0x30] sm:$0xff]
                  %253 = vst [vmem:[%s245 + $0x18] sm:$0xff] %v252
                  %v254 = vld [vmem:[%s244 + $0x40] sm:$0xff]
                  %255 = vst [vmem:[%s245 + $0x20] sm:$0xff] %v254
                  %v256 = vld [vmem:[%s244 + $0x50] sm:$0xff]
                  %257 = vst [vmem:[%s245 + $0x28] sm:$0xff] %v256
                  %v258 = vld [vmem:[%s244 + $0x60] sm:$0xff]
                  %259 = vst [vmem:[%s245 + $0x30] sm:$0xff] %v258
                  %v260 = vld [vmem:[%s244 + $0x70] sm:$0xff]
                  %261 = vst [vmem:[%s245 + $0x38] sm:$0xff] %v260
                  %v262 = vld [vmem:[%s244 + $0x80] sm:$0xff]
                  %263 = vst [vmem:[%s245 + $0x40] sm:$0xff] %v262
                  %v264 = vld [vmem:[%s244 + $0x90] sm:$0xff]
                  %265 = vst [vmem:[%s245 + $0x48] sm:$0xff] %v264
                  %v266 = vld [vmem:[%s244 + $0xa0] sm:$0xff]
                  %267 = vst [vmem:[%s245 + $0x50] sm:$0xff] %v266
                  %v268 = vld [vmem:[%s244 + $0xb0] sm:$0xff]
                  %269 = vst [vmem:[%s245 + $0x58] sm:$0xff] %v268
                  %v270 = vld [vmem:[%s244 + $0xc0] sm:$0xff]
                  %271 = vst [vmem:[%s245 + $0x60] sm:$0xff] %v270
                  %v272 = vld [vmem:[%s244 + $0xd0] sm:$0xff]
                  %273 = vst [vmem:[%s245 + $0x68] sm:$0xff] %v272
                  %v274 = vld [vmem:[%s244 + $0xe0] sm:$0xff]
                  %275 = vst [vmem:[%s245 + $0x70] sm:$0xff] %v274
                  %v276 = vld [vmem:[%s244 + $0xf0] sm:$0xff]
                  %277 = vst [vmem:[%s245 + $0x78] sm:$0xff] %v276
                  %v278 = vld [vmem:[%s244 + $0x100] sm:$0xff]
                  %279 = vst [vmem:[%s245 + $0x80] sm:$0xff] %v278
                  %v280 = vld [vmem:[%s244 + $0x110] sm:$0xff]
                  %281 = vst [vmem:[%s245 + $0x88] sm:$0xff] %v280
                  %v282 = vld [vmem:[%s244 + $0x120] sm:$0xff]
                  %283 = vst [vmem:[%s245 + $0x90] sm:$0xff] %v282
                  %v284 = vld [vmem:[%s244 + $0x130] sm:$0xff]
                  %285 = vst [vmem:[%s245 + $0x98] sm:$0xff] %v284
                  %v286 = vld [vmem:[%s244 + $0x140] sm:$0xff]
                  %287 = vst [vmem:[%s245 + $0xa0] sm:$0xff] %v286
                  %v288 = vld [vmem:[%s244 + $0x150] sm:$0xff]
                  %289 = vst [vmem:[%s245 + $0xa8] sm:$0xff] %v288
                  %v290 = vld [vmem:[%s244 + $0x160] sm:$0xff]
                  %291 = vst [vmem:[%s245 + $0xb0] sm:$0xff] %v290
                  %v292 = vld [vmem:[%s244 + $0x170] sm:$0xff]
                  %293 = vst [vmem:[%s245 + $0xb8] sm:$0xff] %v292
                  %v294 = vld [vmem:[%s244 + $0x180] sm:$0xff]
                  %295 = vst [vmem:[%s245 + $0xc0] sm:$0xff] %v294
                  %v296 = vld [vmem:[%s244 + $0x190] sm:$0xff]
                  %297 = vst [vmem:[%s245 + $0xc8] sm:$0xff] %v296
                  %v298 = vld [vmem:[%s244 + $0x1a0] sm:$0xff]
                  %299 = vst [vmem:[%s245 + $0xd0] sm:$0xff] %v298
                  %v300 = vld [vmem:[%s244 + $0x1b0] sm:$0xff]
                  %301 = vst [vmem:[%s245 + $0xd8] sm:$0xff] %v300
                  %v302 = vld [vmem:[%s244 + $0x1c0] sm:$0xff]
                  %303 = vst [vmem:[%s245 + $0xe0] sm:$0xff] %v302
                  %v304 = vld [vmem:[%s244 + $0x1d0] sm:$0xff]
                  %305 = vst [vmem:[%s245 + $0xe8] sm:$0xff] %v304
                  %v306 = vld [vmem:[%s244 + $0x1e0] sm:$0xff]
                  %307 = vst [vmem:[%s245 + $0xf0] sm:$0xff] %v306
                  %v308 = vld [vmem:[%s244 + $0x1f0] sm:$0xff]
                  %309 = vst [vmem:[%s245 + $0xf8] sm:$0xff] %v308
                $region52: #{gcn_forward.5} parent=46 // loop_footer
                  %s243 = sadd.s32 1, %s239
                $region53: #{gcn_forward.5} parent=46 // loop_footer_branch
                  %238 = sbr.rel target = $region49
                $region54: #{gcn_forward.5} parent=46 // loop_exit
                  _
              $region47: #{gcn_forward.5} parent=31 // pred_fallthru
                _
              // Predicated region
              $region55: #{gcn_forward.5} parent=31 // pred_check
                _
              $region56: #{gcn_forward.5} parent=31 // pred_check_branch
                %311 = sbr.rel target = $region58
              $region57: #{gcn_forward.5} parent=31 // pred_region
                _
              $region58: #{gcn_forward.5} parent=31 // pred_fallthru
                _
            $region32: #{gcn_forward.5} parent=27 // pred_fallthru
              _
            // Predicated region
            $region33: #{gcn_forward.5} parent=27 // pred_check
              _
            $region34: #{gcn_forward.5} parent=27 // pred_check_branch
              %162 = sbr.rel target = $region36
            $region35: #{gcn_forward.5} parent=27 // pred_region
              loop: start=0, step=1, limit=1
              $region37: #{gcn_forward.5} parent=35 // loop_pre_header
                _
              $region38: #{gcn_forward.5} parent=35 // loop_header
                %s165 = sphi 0, %s169
                %p166 = scmp.ge.s32.totalorder %s165, 1
                %s170 = sphi %s156, %s156
                %s171 = sphi %s150, %s150
              $region39: #{gcn_forward.5} parent=35 // loop_header_branch
                %168 = sbr.rel (%p166) target = $region43
              $region40: #{gcn_forward.5} parent=35 // loop_body
                %v172 = vld [vmem:[%s170] sm:$0xff]
                %173 = vst [vmem:[%s171] sm:$0xff] %v172
                %v174 = vld [vmem:[%s170 + $0x10] sm:$0xff]
                %175 = vst [vmem:[%s171 + $0x8] sm:$0xff] %v174
                %v176 = vld [vmem:[%s170 + $0x20] sm:$0xff]
                %177 = vst [vmem:[%s171 + $0x10] sm:$0xff] %v176
                %v178 = vld [vmem:[%s170 + $0x30] sm:$0xff]
                %179 = vst [vmem:[%s171 + $0x18] sm:$0xff] %v178
                %v180 = vld [vmem:[%s170 + $0x40] sm:$0xff]
                %181 = vst [vmem:[%s171 + $0x20] sm:$0xff] %v180
                %v182 = vld [vmem:[%s170 + $0x50] sm:$0xff]
                %183 = vst [vmem:[%s171 + $0x28] sm:$0xff] %v182
                %v184 = vld [vmem:[%s170 + $0x60] sm:$0xff]
                %185 = vst [vmem:[%s171 + $0x30] sm:$0xff] %v184
                %v186 = vld [vmem:[%s170 + $0x70] sm:$0xff]
                %187 = vst [vmem:[%s171 + $0x38] sm:$0xff] %v186
                %v188 = vld [vmem:[%s170 + $0x80] sm:$0xff]
                %189 = vst [vmem:[%s171 + $0x40] sm:$0xff] %v188
                %v190 = vld [vmem:[%s170 + $0x90] sm:$0xff]
                %191 = vst [vmem:[%s171 + $0x48] sm:$0xff] %v190
                %v192 = vld [vmem:[%s170 + $0xa0] sm:$0xff]
                %193 = vst [vmem:[%s171 + $0x50] sm:$0xff] %v192
                %v194 = vld [vmem:[%s170 + $0xb0] sm:$0xff]
                %195 = vst [vmem:[%s171 + $0x58] sm:$0xff] %v194
                %v196 = vld [vmem:[%s170 + $0xc0] sm:$0xff]
                %197 = vst [vmem:[%s171 + $0x60] sm:$0xff] %v196
                %v198 = vld [vmem:[%s170 + $0xd0] sm:$0xff]
                %199 = vst [vmem:[%s171 + $0x68] sm:$0xff] %v198
                %v200 = vld [vmem:[%s170 + $0xe0] sm:$0xff]
                %201 = vst [vmem:[%s171 + $0x70] sm:$0xff] %v200
                %v202 = vld [vmem:[%s170 + $0xf0] sm:$0xff]
                %203 = vst [vmem:[%s171 + $0x78] sm:$0xff] %v202
                %v204 = vld [vmem:[%s170 + $0x100] sm:$0xff]
                %205 = vst [vmem:[%s171 + $0x80] sm:$0xff] %v204
                %v206 = vld [vmem:[%s170 + $0x110] sm:$0xff]
                %207 = vst [vmem:[%s171 + $0x88] sm:$0xff] %v206
                %v208 = vld [vmem:[%s170 + $0x120] sm:$0xff]
                %209 = vst [vmem:[%s171 + $0x90] sm:$0xff] %v208
                %v210 = vld [vmem:[%s170 + $0x130] sm:$0xff]
                %211 = vst [vmem:[%s171 + $0x98] sm:$0xff] %v210
                %v212 = vld [vmem:[%s170 + $0x140] sm:$0xff]
                %213 = vst [vmem:[%s171 + $0xa0] sm:$0xff] %v212
                %v214 = vld [vmem:[%s170 + $0x150] sm:$0xff]
                %215 = vst [vmem:[%s171 + $0xa8] sm:$0xff] %v214
                %v216 = vld [vmem:[%s170 + $0x160] sm:$0xff]
                %217 = vst [vmem:[%s171 + $0xb0] sm:$0xff] %v216
                %v218 = vld [vmem:[%s170 + $0x170] sm:$0xff]
                %219 = vst [vmem:[%s171 + $0xb8] sm:$0xff] %v218
                %v220 = vld [vmem:[%s170 + $0x180] sm:$0xff]
                %221 = vst [vmem:[%s171 + $0xc0] sm:$0xff] %v220
                %v222 = vld [vmem:[%s170 + $0x190] sm:$0xff]
                %223 = vst [vmem:[%s171 + $0xc8] sm:$0xff] %v222
                %v224 = vld [vmem:[%s170 + $0x1a0] sm:$0xff]
                %225 = vst [vmem:[%s171 + $0xd0] sm:$0xff] %v224
                %v226 = vld [vmem:[%s170 + $0x1b0] sm:$0xff]
                %227 = vst [vmem:[%s171 + $0xd8] sm:$0xff] %v226
                %v228 = vld [vmem:[%s170 + $0x1c0] sm:$0xff]
                %229 = vst [vmem:[%s171 + $0xe0] sm:$0xff] %v228
                %v230 = vld [vmem:[%s170 + $0x1d0] sm:$0xff]
                %231 = vst [vmem:[%s171 + $0xe8] sm:$0xff] %v230
                %v232 = vld [vmem:[%s170 + $0x1e0] sm:$0xff]
                %233 = vst [vmem:[%s171 + $0xf0] sm:$0xff] %v232
                %v234 = vld [vmem:[%s170 + $0x1f0] sm:$0xff]
                %235 = vst [vmem:[%s171 + $0xf8] sm:$0xff] %v234
              $region41: #{gcn_forward.5} parent=35 // loop_footer
                %s169 = sadd.s32 1, %s165
              $region42: #{gcn_forward.5} parent=35 // loop_footer_branch
                %164 = sbr.rel target = $region38
              $region43: #{gcn_forward.5} parent=35 // loop_exit
                _
            $region36: #{gcn_forward.5} parent=27 // pred_fallthru
              _
          $region28: #{gcn_forward.5} parent=23 // pred_fallthru
            _
          %312 = vnop
        $region24: #{gcn_forward.5} parent=19 // pred_fallthru
          _
        // Predicated region
        $region59: #{gcn_forward.5} parent=19 // pred_check
          %p313 = pneg %p69
        $region60: #{gcn_forward.5} parent=19 // pred_check_branch
          %315 = sbr.rel (%p313) target = $region62
        $region61: #{gcn_forward.5} parent=19 // pred_region
          %s316 = smul.u32 32, %s17
          %p317 = scmp.lt.s32.totalorder %s316, 63
          %s318 = scalar_select %p317, %s316, 63
          %s319 = smul.addr %s318, 4
          %s320 = scalar_lea.vmem %s1, %s319
          %s321 = smul.u32 32, %s17
        $region62: #{gcn_forward.5} parent=19 // pred_fallthru
          _
      $region20: #{gcn_forward.5} parent=5 // pred_fallthru
        _
      %p322 = scmp.le.s32.totalorder 1, %s9
      %p323 = scmp.lt.s32.totalorder %s9, 5
      %p324 = pnand %p322, %p323
      %p325 = pneg %p324
      // Predicated region
      $region63: #{gcn_forward.5} parent=5 // pred_check
        _
      $region64: #{gcn_forward.5} parent=5 // pred_check_branch
        %327 = sbr.rel (%p324) target = $region66
      $region65: #{gcn_forward.5} parent=5 // pred_region
        %s328 = ssub.s32 %s9, 1
        %s329 = sand.u32 %s36, 1
        %s330 = sand.u32 %s36, 1
        %s331 = smul.addr %s330, 256
        %s332 = scalar_lea.vmem [#allocation3], %s331
        // Predicated region
        $region67: #{gcn_forward.5} parent=65 // pred_check
          %p333 = pneg %p49
        $region68: #{gcn_forward.5} parent=65 // pred_check_branch
          %335 = sbr.rel (%p333) target = $region70
        $region69: #{gcn_forward.5} parent=65 // pred_region
          _
        $region70: #{gcn_forward.5} parent=65 // pred_fallthru
          _
        %s336 = sand.u32 %s36, 1
        %s337 = sand.u32 %s36, 1
        %s338 = smul.addr %s337, 256
        %s339 = scalar_lea.vmem [#allocation3], %s338
        %p340 = pneg %p49
        %p341 = pneg %p46
        %s342 = smul.u32 32, %s19
        %p343 = scmp.lt.s32.totalorder %s342, 63
        %s344 = scalar_select %p343, %s342, 63
        %s345 = smul.addr %s344, 4
        %s346 = scalar_lea.vmem %s1, %s345
        %p347 = pneg %p75
        %p348 = pneg %p72
        %p349 = pneg %p96
        %p350 = pneg %p93
        %p351 = pneg %p122
        %p352 = pneg %p119
        %s353 = smul.u32 32, %s18
        %p354 = scmp.lt.s32.totalorder %s353, 63
        %s355 = scalar_select %p354, %s353, 63
        %s356 = smul.addr %s355, 8
        %s357 = scalar_lea.vmem %s3, %s356
        %s358 = smul.u32 32, %s18
        %s359 = smul.u32 2, %s19
        %s360 = smul.u32 32, %s19
        %p361 = scmp.lt.s32.totalorder %s360, 63
        %s362 = scalar_select %p361, %s360, 63
        %s363 = smul.addr %s362, 4
        %s364 = scalar_lea.vmem %s1, %s363
        %s365 = smul.u32 32, %s19
        %s366 = smul.u32 32, %s18
        %p367 = scmp.lt.s32.totalorder %s366, 63
        %s368 = scalar_select %p367, %s366, 63
        %s369 = smul.addr %s368, 8
        %s370 = scalar_lea.vmem %s3, %s369
        %s371 = smul.u32 32, %s18
        %p373 = scmp.eq.s32.totalorder %s19, 0
        // Predicated region
        $region71: #{gcn_forward.5} parent=65 // pred_check
          %p374 = pneg %p373
        $region72: #{gcn_forward.5} parent=65 // pred_check_branch
          %376 = sbr.rel (%p374) target = $region74
        $region73: #{gcn_forward.5} parent=65 // pred_region
          %377 = vst [vmem:[#allocation2] sm:$0xff] 0.0
          %378 = vst [vmem:[#allocation2 + $0x8] sm:$0xff] 0.0
          %379 = vst [vmem:[#allocation2 + $0x10] sm:$0xff] 0.0
          %380 = vst [vmem:[#allocation2 + $0x18] sm:$0xff] 0.0
          %381 = vst [vmem:[#allocation2 + $0x20] sm:$0xff] 0.0
          %382 = vst [vmem:[#allocation2 + $0x28] sm:$0xff] 0.0
          %383 = vst [vmem:[#allocation2 + $0x30] sm:$0xff] 0.0
          %384 = vst [vmem:[#allocation2 + $0x38] sm:$0xff] 0.0
          %385 = vst [vmem:[#allocation2 + $0x40] sm:$0xff] 0.0
          %386 = vst [vmem:[#allocation2 + $0x48] sm:$0xff] 0.0
          %387 = vst [vmem:[#allocation2 + $0x50] sm:$0xff] 0.0
          %388 = vst [vmem:[#allocation2 + $0x58] sm:$0xff] 0.0
          %389 = vst [vmem:[#allocation2 + $0x60] sm:$0xff] 0.0
          %390 = vst [vmem:[#allocation2 + $0x68] sm:$0xff] 0.0
          %391 = vst [vmem:[#allocation2 + $0x70] sm:$0xff] 0.0
          %392 = vst [vmem:[#allocation2 + $0x78] sm:$0xff] 0.0
          %393 = vst [vmem:[#allocation2 + $0x80] sm:$0xff] 0.0
          %394 = vst [vmem:[#allocation2 + $0x88] sm:$0xff] 0.0
          %395 = vst [vmem:[#allocation2 + $0x90] sm:$0xff] 0.0
          %396 = vst [vmem:[#allocation2 + $0x98] sm:$0xff] 0.0
          %397 = vst [vmem:[#allocation2 + $0xa0] sm:$0xff] 0.0
          %398 = vst [vmem:[#allocation2 + $0xa8] sm:$0xff] 0.0
          %399 = vst [vmem:[#allocation2 + $0xb0] sm:$0xff] 0.0
          %400 = vst [vmem:[#allocation2 + $0xb8] sm:$0xff] 0.0
          %401 = vst [vmem:[#allocation2 + $0xc0] sm:$0xff] 0.0
          %402 = vst [vmem:[#allocation2 + $0xc8] sm:$0xff] 0.0
          %403 = vst [vmem:[#allocation2 + $0xd0] sm:$0xff] 0.0
          %404 = vst [vmem:[#allocation2 + $0xd8] sm:$0xff] 0.0
          %405 = vst [vmem:[#allocation2 + $0xe0] sm:$0xff] 0.0
          %406 = vst [vmem:[#allocation2 + $0xe8] sm:$0xff] 0.0
          %407 = vst [vmem:[#allocation2 + $0xf0] sm:$0xff] 0.0
          %408 = vst [vmem:[#allocation2 + $0xf8] sm:$0xff] 0.0
        $region74: #{gcn_forward.5} parent=65 // pred_fallthru
          _
        %v409 = vld [vmem:[#allocation2] sm:$0xff]
        %v410 = vld [vmem:[#allocation2 + $0x8] sm:$0xff]
        %v411 = vld [vmem:[#allocation2 + $0x10] sm:$0xff]
        %v412 = vld [vmem:[#allocation2 + $0x18] sm:$0xff]
        %v413 = vld [vmem:[#allocation2 + $0x20] sm:$0xff]
        %v414 = vld [vmem:[#allocation2 + $0x28] sm:$0xff]
        %v415 = vld [vmem:[#allocation2 + $0x30] sm:$0xff]
        %v416 = vld [vmem:[#allocation2 + $0x38] sm:$0xff]
        %v417 = vld [vmem:[#allocation2 + $0x40] sm:$0xff]
        %v418 = vld [vmem:[#allocation2 + $0x48] sm:$0xff]
        %v419 = vld [vmem:[#allocation2 + $0x50] sm:$0xff]
        %v420 = vld [vmem:[#allocation2 + $0x58] sm:$0xff]
        %v421 = vld [vmem:[#allocation2 + $0x60] sm:$0xff]
        %v422 = vld [vmem:[#allocation2 + $0x68] sm:$0xff]
        %v423 = vld [vmem:[#allocation2 + $0x70] sm:$0xff]
        %v424 = vld [vmem:[#allocation2 + $0x78] sm:$0xff]
        %v425 = vld [vmem:[#allocation2 + $0x80] sm:$0xff]
        %v426 = vld [vmem:[#allocation2 + $0x88] sm:$0xff]
        %v427 = vld [vmem:[#allocation2 + $0x90] sm:$0xff]
        %v428 = vld [vmem:[#allocation2 + $0x98] sm:$0xff]
        %v429 = vld [vmem:[#allocation2 + $0xa0] sm:$0xff]
        %v430 = vld [vmem:[#allocation2 + $0xa8] sm:$0xff]
        %v431 = vld [vmem:[#allocation2 + $0xb0] sm:$0xff]
        %v432 = vld [vmem:[#allocation2 + $0xb8] sm:$0xff]
        %v433 = vld [vmem:[#allocation2 + $0xc0] sm:$0xff]
        %v434 = vld [vmem:[#allocation2 + $0xc8] sm:$0xff]
        %v435 = vld [vmem:[#allocation2 + $0xd0] sm:$0xff]
        %v436 = vld [vmem:[#allocation2 + $0xd8] sm:$0xff]
        %v437 = vld [vmem:[#allocation2 + $0xe0] sm:$0xff]
        %v438 = vld [vmem:[#allocation2 + $0xe8] sm:$0xff]
        %v439 = vld [vmem:[#allocation2 + $0xf0] sm:$0xff]
        %v440 = vld [vmem:[#allocation2 + $0xf8] sm:$0xff]
        %v441 = vld [vmem:[%s332] sm:$0xff]
        %v442 = vld [vmem:[%s332 + $0x8] sm:$0xff]
        %v443 = vld [vmem:[%s332 + $0x10] sm:$0xff]
        %v444 = vld [vmem:[%s332 + $0x18] sm:$0xff]
        %v445 = vld [vmem:[%s332 + $0x20] sm:$0xff]
        %v446 = vld [vmem:[%s332 + $0x28] sm:$0xff]
        %v447 = vld [vmem:[%s332 + $0x30] sm:$0xff]
        %v448 = vld [vmem:[%s332 + $0x38] sm:$0xff]
        %v449 = vld [vmem:[%s332 + $0x40] sm:$0xff]
        %v450 = vld [vmem:[%s332 + $0x48] sm:$0xff]
        %v451 = vld [vmem:[%s332 + $0x50] sm:$0xff]
        %v452 = vld [vmem:[%s332 + $0x58] sm:$0xff]
        %v453 = vld [vmem:[%s332 + $0x60] sm:$0xff]
        %v454 = vld [vmem:[%s332 + $0x68] sm:$0xff]
        %v455 = vld [vmem:[%s332 + $0x70] sm:$0xff]
        %v456 = vld [vmem:[%s332 + $0x78] sm:$0xff]
        %v457 = vld [vmem:[%s332 + $0x80] sm:$0xff]
        %v458 = vld [vmem:[%s332 + $0x88] sm:$0xff]
        %v459 = vld [vmem:[%s332 + $0x90] sm:$0xff]
        %v460 = vld [vmem:[%s332 + $0x98] sm:$0xff]
        %v461 = vld [vmem:[%s332 + $0xa0] sm:$0xff]
        %v462 = vld [vmem:[%s332 + $0xa8] sm:$0xff]
        %v463 = vld [vmem:[%s332 + $0xb0] sm:$0xff]
        %v464 = vld [vmem:[%s332 + $0xb8] sm:$0xff]
        %v465 = vld [vmem:[%s332 + $0xc0] sm:$0xff]
        %v466 = vld [vmem:[%s332 + $0xc8] sm:$0xff]
        %v467 = vld [vmem:[%s332 + $0xd0] sm:$0xff]
        %v468 = vld [vmem:[%s332 + $0xd8] sm:$0xff]
        %v469 = vld [vmem:[%s332 + $0xe0] sm:$0xff]
        %v470 = vld [vmem:[%s332 + $0xe8] sm:$0xff]
        %v471 = vld [vmem:[%s332 + $0xf0] sm:$0xff]
        %v472 = vld [vmem:[%s332 + $0xf8] sm:$0xff]
        %v473 = vld [vmem:[%s364] sm:$0xf]
        %v474 = vld [vmem:[%s364 + $0x4] sm:$0xf]
        %v475 = vld [vmem:[%s364 + $0x8] sm:$0xf]
        %v476 = vld [vmem:[%s364 + $0xc] sm:$0xf]
        %v477 = vld [vmem:[%s364 + $0x10] sm:$0xf]
        %v478 = vld [vmem:[%s364 + $0x14] sm:$0xf]
        %v479 = vld [vmem:[%s364 + $0x18] sm:$0xf]
        %v480 = vld [vmem:[%s364 + $0x1c] sm:$0xf]
        %v481 = vld [vmem:[%s364 + $0x20] sm:$0xf]
        %v482 = vld [vmem:[%s364 + $0x24] sm:$0xf]
        %v483 = vld [vmem:[%s364 + $0x28] sm:$0xf]
        %v484 = vld [vmem:[%s364 + $0x2c] sm:$0xf]
        %v485 = vld [vmem:[%s364 + $0x30] sm:$0xf]
        %v486 = vld [vmem:[%s364 + $0x34] sm:$0xf]
        %v487 = vld [vmem:[%s364 + $0x38] sm:$0xf]
        %v488 = vld [vmem:[%s364 + $0x3c] sm:$0xf]
        %v489 = vld [vmem:[%s364 + $0x40] sm:$0xf]
        %v490 = vld [vmem:[%s364 + $0x44] sm:$0xf]
        %v491 = vld [vmem:[%s364 + $0x48] sm:$0xf]
        %v492 = vld [vmem:[%s364 + $0x4c] sm:$0xf]
        %v493 = vld [vmem:[%s364 + $0x50] sm:$0xf]
        %v494 = vld [vmem:[%s364 + $0x54] sm:$0xf]
        %v495 = vld [vmem:[%s364 + $0x58] sm:$0xf]
        %v496 = vld [vmem:[%s364 + $0x5c] sm:$0xf]
        %v497 = vld [vmem:[%s364 + $0x60] sm:$0xf]
        %v498 = vld [vmem:[%s364 + $0x64] sm:$0xf]
        %v499 = vld [vmem:[%s364 + $0x68] sm:$0xf]
        %v500 = vld [vmem:[%s364 + $0x6c] sm:$0xf]
        %v501 = vld [vmem:[%s364 + $0x70] sm:$0xf]
        %v502 = vld [vmem:[%s364 + $0x74] sm:$0xf]
        %v503 = vld [vmem:[%s364 + $0x78] sm:$0xf]
        %v504 = vld [vmem:[%s364 + $0x7c] sm:$0xf]
        %v537 = vunpack.c.l.b16 %v441
        %v538 = vunpack.c.h.b16 %v441
        %v539 = vunpack.c.l.b16 %v442
        %v540 = vunpack.c.h.b16 %v442
        %v541 = vunpack.c.l.b16 %v443
        %v542 = vunpack.c.h.b16 %v443
        %v543 = vunpack.c.l.b16 %v444
        %v544 = vunpack.c.h.b16 %v444
        %v545 = vunpack.c.l.b16 %v445
        %v546 = vunpack.c.h.b16 %v445
        %v547 = vunpack.c.l.b16 %v446
        %v548 = vunpack.c.h.b16 %v446
        %v549 = vunpack.c.l.b16 %v447
        %v550 = vunpack.c.h.b16 %v447
        %v551 = vunpack.c.l.b16 %v448
        %v552 = vunpack.c.h.b16 %v448
        %v553 = vunpack.c.l.b16 %v449
        %v554 = vunpack.c.h.b16 %v449
        %v555 = vunpack.c.l.b16 %v450
        %v556 = vunpack.c.h.b16 %v450
        %v557 = vunpack.c.l.b16 %v451
        %v558 = vunpack.c.h.b16 %v451
        %v559 = vunpack.c.l.b16 %v452
        %v560 = vunpack.c.h.b16 %v452
        %v561 = vunpack.c.l.b16 %v453
        %v562 = vunpack.c.h.b16 %v453
        %v563 = vunpack.c.l.b16 %v454
        %v564 = vunpack.c.h.b16 %v454
        %v565 = vunpack.c.l.b16 %v455
        %v566 = vunpack.c.h.b16 %v455
        %v567 = vunpack.c.l.b16 %v456
        %v568 = vunpack.c.h.b16 %v456
        %v569 = vunpack.c.l.b16 %v457
        %v570 = vunpack.c.h.b16 %v457
        %v571 = vunpack.c.l.b16 %v458
        %v572 = vunpack.c.h.b16 %v458
        %v573 = vunpack.c.l.b16 %v459
        %v574 = vunpack.c.h.b16 %v459
        %v575 = vunpack.c.l.b16 %v460
        %v576 = vunpack.c.h.b16 %v460
        %v577 = vunpack.c.l.b16 %v461
        %v578 = vunpack.c.h.b16 %v461
        %v579 = vunpack.c.l.b16 %v462
        %v580 = vunpack.c.h.b16 %v462
        %v581 = vunpack.c.l.b16 %v463
        %v582 = vunpack.c.h.b16 %v463
        %v583 = vunpack.c.l.b16 %v464
        %v584 = vunpack.c.h.b16 %v464
        %v585 = vunpack.c.l.b16 %v465
        %v586 = vunpack.c.h.b16 %v465
        %v587 = vunpack.c.l.b16 %v466
        %v588 = vunpack.c.h.b16 %v466
        %v589 = vunpack.c.l.b16 %v467
        %v590 = vunpack.c.h.b16 %v467
        %v591 = vunpack.c.l.b16 %v468
        %v592 = vunpack.c.h.b16 %v468
        %v593 = vunpack.c.l.b16 %v469
        %v594 = vunpack.c.h.b16 %v469
        %v595 = vunpack.c.l.b16 %v470
        %v596 = vunpack.c.h.b16 %v470
        %v597 = vunpack.c.l.b16 %v471
        %v598 = vunpack.c.h.b16 %v471
        %v599 = vunpack.c.l.b16 %v472
        %v600 = vunpack.c.h.b16 %v472
        %v601 = vpack.c.b16 %v539, %v537
        %v602 = vpack.c.b16 %v540, %v538
        %v603 = vpack.c.b16 %v543, %v541
        %v604 = vpack.c.b16 %v544, %v542
        %v605 = vpack.c.b16 %v547, %v545
        %v606 = vpack.c.b16 %v548, %v546
        %v607 = vpack.c.b16 %v551, %v549
        %v608 = vpack.c.b16 %v552, %v550
        %v609 = vpack.c.b16 %v555, %v553
        %v610 = vpack.c.b16 %v556, %v554
        %v611 = vpack.c.b16 %v559, %v557
        %v612 = vpack.c.b16 %v560, %v558
        %v613 = vpack.c.b16 %v563, %v561
        %v614 = vpack.c.b16 %v564, %v562
        %v615 = vpack.c.b16 %v567, %v565
        %v616 = vpack.c.b16 %v568, %v566
        %v617 = vpack.c.b16 %v571, %v569
        %v618 = vpack.c.b16 %v572, %v570
        %v619 = vpack.c.b16 %v575, %v573
        %v620 = vpack.c.b16 %v576, %v574
        %v621 = vpack.c.b16 %v579, %v577
        %v622 = vpack.c.b16 %v580, %v578
        %v623 = vpack.c.b16 %v583, %v581
        %v624 = vpack.c.b16 %v584, %v582
        %v625 = vpack.c.b16 %v587, %v585
        %v626 = vpack.c.b16 %v588, %v586
        %v627 = vpack.c.b16 %v591, %v589
        %v628 = vpack.c.b16 %v592, %v590
        %v629 = vpack.c.b16 %v595, %v593
        %v630 = vpack.c.b16 %v596, %v594
        %v631 = vpack.c.b16 %v599, %v597
        %v632 = vpack.c.b16 %v600, %v598
        %v697 = vunpack.c.l.b16 %v473
        %v698 = vunpack.c.l.b16 %v474
        %v699 = vunpack.c.l.b16 %v475
        %v700 = vunpack.c.l.b16 %v476
        %v701 = vunpack.c.l.b16 %v477
        %v702 = vunpack.c.l.b16 %v478
        %v703 = vunpack.c.l.b16 %v479
        %v704 = vunpack.c.l.b16 %v480
        %v705 = vunpack.c.l.b16 %v481
        %v706 = vunpack.c.l.b16 %v482
        %v707 = vunpack.c.l.b16 %v483
        %v708 = vunpack.c.l.b16 %v484
        %v709 = vunpack.c.l.b16 %v485
        %v710 = vunpack.c.l.b16 %v486
        %v711 = vunpack.c.l.b16 %v487
        %v712 = vunpack.c.l.b16 %v488
        %v713 = vunpack.c.l.b16 %v489
        %v714 = vunpack.c.l.b16 %v490
        %v715 = vunpack.c.l.b16 %v491
        %v716 = vunpack.c.l.b16 %v492
        %v717 = vunpack.c.l.b16 %v493
        %v718 = vunpack.c.l.b16 %v494
        %v719 = vunpack.c.l.b16 %v495
        %v720 = vunpack.c.l.b16 %v496
        %v721 = vunpack.c.l.b16 %v497
        %v722 = vunpack.c.l.b16 %v498
        %v723 = vunpack.c.l.b16 %v499
        %v724 = vunpack.c.l.b16 %v500
        %v725 = vunpack.c.l.b16 %v501
        %v726 = vunpack.c.l.b16 %v502
        %v727 = vunpack.c.l.b16 %v503
        %v728 = vunpack.c.l.b16 %v504
        %v729 = vpack.c.b16 %v698, %v697
        %v730 = vpack.c.b16 %v700, %v699
        %v731 = vpack.c.b16 %v702, %v701
        %v732 = vpack.c.b16 %v704, %v703
        %v733 = vpack.c.b16 %v706, %v705
        %v734 = vpack.c.b16 %v708, %v707
        %v735 = vpack.c.b16 %v710, %v709
        %v736 = vpack.c.b16 %v712, %v711
        %v737 = vpack.c.b16 %v714, %v713
        %v738 = vpack.c.b16 %v716, %v715
        %v739 = vpack.c.b16 %v718, %v717
        %v740 = vpack.c.b16 %v720, %v719
        %v741 = vpack.c.b16 %v722, %v721
        %v742 = vpack.c.b16 %v724, %v723
        %v743 = vpack.c.b16 %v726, %v725
        %v744 = vpack.c.b16 %v728, %v727
        %761 = vmatprep.subr.bf16.mxu0 0
        %762 = vmatpush1.bf16.msra.mxu0 %v729
        %763 = vmatprep.subr.bf16.mxu0 0
        %764 = vmatpush1.bf16.msra.mxu0 %v730
        %765 = vmatprep.subr.bf16.mxu0 0
        %766 = vmatpush1.bf16.msra.mxu0 %v731
        %767 = vmatprep.subr.bf16.mxu0 0
        %768 = vmatpush1.bf16.msra.mxu0 %v732
        %769 = vmatprep.subr.bf16.mxu0 0
        %770 = vmatpush1.bf16.msra.mxu0 %v733
        %771 = vmatprep.subr.bf16.mxu0 0
        %772 = vmatpush1.bf16.msra.mxu0 %v734
        %773 = vmatprep.subr.bf16.mxu0 0
        %774 = vmatpush1.bf16.msra.mxu0 %v735
        %775 = vmatprep.subr.bf16.mxu0 0
        %776 = vmatpush1.bf16.msra.mxu0 %v736
        %777 = vmatprep.subr.bf16.mxu0 0
        %778 = vmatpush1.bf16.msra.mxu0 %v737
        %779 = vmatprep.subr.bf16.mxu0 0
        %780 = vmatpush1.bf16.msra.mxu0 %v738
        %781 = vmatprep.subr.bf16.mxu0 0
        %782 = vmatpush1.bf16.msra.mxu0 %v739
        %783 = vmatprep.subr.bf16.mxu0 0
        %784 = vmatpush1.bf16.msra.mxu0 %v740
        %785 = vmatprep.subr.bf16.mxu0 0
        %786 = vmatpush1.bf16.msra.mxu0 %v741
        %787 = vmatprep.subr.bf16.mxu0 0
        %788 = vmatpush1.bf16.msra.mxu0 %v742
        %789 = vmatprep.subr.bf16.mxu0 0
        %790 = vmatpush1.bf16.msra.mxu0 %v743
        %791 = vmatprep.subr.bf16.mxu0 0
        %792 = vmatpush1.bf16.msra.mxu0 %v744
        %793 = vmatprep.mubr.bf16.mxu0 %v602
        %794 = vmatmul.mubr.bf16.gmra.mrb[0].mxu0 %v601
        %v795 = vpop.f32.mrb[0].mxu0
        %v796 = vadd.f32 0.0, %v795
        %v797 = vpop.f32.mrb[0].mxu0
        %v798 = vpop.f32.mrb[0].mxu0
        %v799 = vadd.f32 0.0, %v798
        %v800 = vpop.f32.mrb[0].mxu0
        %801 = vmatprep.mubr.bf16.mxu0 %v604
        %802 = vmatmul.mubr.bf16.gmra.mrb[0].mxu0 %v603
        %v803 = vpop.f32.mrb[0].mxu0
        %v804 = vadd.f32 0.0, %v803
        %v805 = vpop.f32.mrb[0].mxu0
        %v806 = vpop.f32.mrb[0].mxu0
        %v807 = vadd.f32 0.0, %v806
        %v808 = vpop.f32.mrb[0].mxu0
        %809 = vmatprep.mubr.bf16.mxu0 %v606
        %810 = vmatmul.mubr.bf16.gmra.mrb[0].mxu0 %v605
        %v811 = vpop.f32.mrb[0].mxu0
        %v812 = vadd.f32 0.0, %v811
        %v813 = vpop.f32.mrb[0].mxu0
        %v814 = vpop.f32.mrb[0].mxu0
        %v815 = vadd.f32 0.0, %v814
        %v816 = vpop.f32.mrb[0].mxu0
        %817 = vmatprep.mubr.bf16.mxu0 %v608
        %818 = vmatmul.mubr.bf16.gmra.mrb[0].mxu0 %v607
        %v819 = vpop.f32.mrb[0].mxu0
        %v820 = vadd.f32 0.0, %v819
        %v821 = vpop.f32.mrb[0].mxu0
        %v822 = vpop.f32.mrb[0].mxu0
        %v823 = vadd.f32 0.0, %v822
        %v824 = vpop.f32.mrb[0].mxu0
        %825 = vmatprep.mubr.bf16.mxu0 %v610
        %826 = vmatmul.mubr.bf16.gmra.mrb[0].mxu0 %v609
        %v827 = vpop.f32.mrb[0].mxu0
        %v828 = vadd.f32 0.0, %v827
        %v829 = vpop.f32.mrb[0].mxu0
        %v830 = vpop.f32.mrb[0].mxu0
        %v831 = vadd.f32 0.0, %v830
        %v832 = vpop.f32.mrb[0].mxu0
        %833 = vmatprep.mubr.bf16.mxu0 %v612
        %834 = vmatmul.mubr.bf16.gmra.mrb[0].mxu0 %v611
        %v835 = vpop.f32.mrb[0].mxu0
        %v836 = vadd.f32 0.0, %v835
        %v837 = vpop.f32.mrb[0].mxu0
        %v838 = vpop.f32.mrb[0].mxu0
        %v839 = vadd.f32 0.0, %v838
        %v840 = vpop.f32.mrb[0].mxu0
        %841 = vmatprep.mubr.bf16.mxu0 %v614
        %842 = vmatmul.mubr.bf16.gmra.mrb[0].mxu0 %v613
        %v843 = vpop.f32.mrb[0].mxu0
        %v844 = vadd.f32 0.0, %v843
        %v845 = vpop.f32.mrb[0].mxu0
        %v846 = vpop.f32.mrb[0].mxu0
        %v847 = vadd.f32 0.0, %v846
        %v848 = vpop.f32.mrb[0].mxu0
        %849 = vmatprep.mubr.bf16.mxu0 %v616
        %850 = vmatmul.mubr.bf16.gmra.mrb[0].mxu0 %v615
        %v851 = vpop.f32.mrb[0].mxu0
        %v852 = vadd.f32 0.0, %v851
        %v853 = vpop.f32.mrb[0].mxu0
        %v854 = vpop.f32.mrb[0].mxu0
        %v855 = vadd.f32 0.0, %v854
        %v856 = vpop.f32.mrb[0].mxu0
        %857 = vmatprep.mubr.bf16.mxu0 %v618
        %858 = vmatmul.mubr.bf16.gmra.mrb[0].mxu0 %v617
        %v859 = vpop.f32.mrb[0].mxu0
        %v860 = vadd.f32 0.0, %v859
        %v861 = vpop.f32.mrb[0].mxu0
        %v862 = vpop.f32.mrb[0].mxu0
        %v863 = vadd.f32 0.0, %v862
        %v864 = vpop.f32.mrb[0].mxu0
        %865 = vmatprep.mubr.bf16.mxu0 %v620
        %866 = vmatmul.mubr.bf16.gmra.mrb[0].mxu0 %v619
        %v867 = vpop.f32.mrb[0].mxu0
        %v868 = vadd.f32 0.0, %v867
        %v869 = vpop.f32.mrb[0].mxu0
        %v870 = vpop.f32.mrb[0].mxu0
        %v871 = vadd.f32 0.0, %v870
        %v872 = vpop.f32.mrb[0].mxu0
        %873 = vmatprep.mubr.bf16.mxu0 %v622
        %874 = vmatmul.mubr.bf16.gmra.mrb[0].mxu0 %v621
        %v875 = vpop.f32.mrb[0].mxu0
        %v876 = vadd.f32 0.0, %v875
        %v877 = vpop.f32.mrb[0].mxu0
        %v878 = vpop.f32.mrb[0].mxu0
        %v879 = vadd.f32 0.0, %v878
        %v880 = vpop.f32.mrb[0].mxu0
        %881 = vmatprep.mubr.bf16.mxu0 %v624
        %882 = vmatmul.mubr.bf16.gmra.mrb[0].mxu0 %v623
        %v883 = vpop.f32.mrb[0].mxu0
        %v884 = vadd.f32 0.0, %v883
        %v885 = vpop.f32.mrb[0].mxu0
        %v886 = vpop.f32.mrb[0].mxu0
        %v887 = vadd.f32 0.0, %v886
        %v888 = vpop.f32.mrb[0].mxu0
        %889 = vmatprep.mubr.bf16.mxu0 %v626
        %890 = vmatmul.mubr.bf16.gmra.mrb[0].mxu0 %v625
        %v891 = vpop.f32.mrb[0].mxu0
        %v892 = vadd.f32 0.0, %v891
        %v893 = vpop.f32.mrb[0].mxu0
        %v894 = vpop.f32.mrb[0].mxu0
        %v895 = vadd.f32 0.0, %v894
        %v896 = vpop.f32.mrb[0].mxu0
        %897 = vmatprep.mubr.bf16.mxu0 %v628
        %898 = vmatmul.mubr.bf16.gmra.mrb[0].mxu0 %v627
        %v899 = vpop.f32.mrb[0].mxu0
        %v900 = vadd.f32 0.0, %v899
        %v901 = vpop.f32.mrb[0].mxu0
        %v902 = vpop.f32.mrb[0].mxu0
        %v903 = vadd.f32 0.0, %v902
        %v904 = vpop.f32.mrb[0].mxu0
        %905 = vmatprep.mubr.bf16.mxu0 %v630
        %906 = vmatmul.mubr.bf16.gmra.mrb[0].mxu0 %v629
        %v907 = vpop.f32.mrb[0].mxu0
        %v908 = vadd.f32 0.0, %v907
        %v909 = vpop.f32.mrb[0].mxu0
        %v910 = vpop.f32.mrb[0].mxu0
        %v911 = vadd.f32 0.0, %v910
        %v912 = vpop.f32.mrb[0].mxu0
        %913 = vmatprep.mubr.bf16.mxu0 %v632
        %914 = vmatmul.mubr.bf16.gmra.mrb[0].mxu0 %v631
        %v915 = vpop.f32.mrb[0].mxu0
        %v916 = vadd.f32 0.0, %v915
        %v917 = vpop.f32.mrb[0].mxu0
        %v918 = vpop.f32.mrb[0].mxu0
        %v919 = vadd.f32 0.0, %v918
        %v920 = vpop.f32.mrb[0].mxu0
        %921 = vdwg.mxu0
        %v922 = vadd.f32 %v409, %v796
        %v923 = vadd.f32 %v410, %v799
        %v924 = vadd.f32 %v411, %v804
        %v925 = vadd.f32 %v412, %v807
        %v926 = vadd.f32 %v413, %v812
        %v927 = vadd.f32 %v414, %v815
        %v928 = vadd.f32 %v415, %v820
        %v929 = vadd.f32 %v416, %v823
        %v930 = vadd.f32 %v417, %v828
        %v931 = vadd.f32 %v418, %v831
        %v932 = vadd.f32 %v419, %v836
        %v933 = vadd.f32 %v420, %v839
        %v934 = vadd.f32 %v421, %v844
        %v935 = vadd.f32 %v422, %v847
        %v936 = vadd.f32 %v423, %v852
        %v937 = vadd.f32 %v424, %v855
        %v938 = vadd.f32 %v425, %v860
        %v939 = vadd.f32 %v426, %v863
        %v940 = vadd.f32 %v427, %v868
        %v941 = vadd.f32 %v428, %v871
        %v942 = vadd.f32 %v429, %v876
        %v943 = vadd.f32 %v430, %v879
        %v944 = vadd.f32 %v431, %v884
        %v945 = vadd.f32 %v432, %v887
        %v946 = vadd.f32 %v433, %v892
        %v947 = vadd.f32 %v434, %v895
        %v948 = vadd.f32 %v435, %v900
        %v949 = vadd.f32 %v436, %v903
        %v950 = vadd.f32 %v437, %v908
        %v951 = vadd.f32 %v438, %v911
        %v952 = vadd.f32 %v439, %v916
        %v953 = vadd.f32 %v440, %v919
        %954 = vst [vmem:[#allocation2] sm:$0xff] %v922
        %955 = vst [vmem:[#allocation2 + $0x8] sm:$0xff] %v923
        %956 = vst [vmem:[#allocation2 + $0x10] sm:$0xff] %v924
        %957 = vst [vmem:[#allocation2 + $0x18] sm:$0xff] %v925
        %958 = vst [vmem:[#allocation2 + $0x20] sm:$0xff] %v926
        %959 = vst [vmem:[#allocation2 + $0x28] sm:$0xff] %v927
        %960 = vst [vmem:[#allocation2 + $0x30] sm:$0xff] %v928
        %961 = vst [vmem:[#allocation2 + $0x38] sm:$0xff] %v929
        %962 = vst [vmem:[#allocation2 + $0x40] sm:$0xff] %v930
        %963 = vst [vmem:[#allocation2 + $0x48] sm:$0xff] %v931
        %964 = vst [vmem:[#allocation2 + $0x50] sm:$0xff] %v932
        %965 = vst [vmem:[#allocation2 + $0x58] sm:$0xff] %v933
        %966 = vst [vmem:[#allocation2 + $0x60] sm:$0xff] %v934
        %967 = vst [vmem:[#allocation2 + $0x68] sm:$0xff] %v935
        %968 = vst [vmem:[#allocation2 + $0x70] sm:$0xff] %v936
        %969 = vst [vmem:[#allocation2 + $0x78] sm:$0xff] %v937
        %970 = vst [vmem:[#allocation2 + $0x80] sm:$0xff] %v938
        %971 = vst [vmem:[#allocation2 + $0x88] sm:$0xff] %v939
        %972 = vst [vmem:[#allocation2 + $0x90] sm:$0xff] %v940
        %973 = vst [vmem:[#allocation2 + $0x98] sm:$0xff] %v941
        %974 = vst [vmem:[#allocation2 + $0xa0] sm:$0xff] %v942
        %975 = vst [vmem:[#allocation2 + $0xa8] sm:$0xff] %v943
        %976 = vst [vmem:[#allocation2 + $0xb0] sm:$0xff] %v944
        %977 = vst [vmem:[#allocation2 + $0xb8] sm:$0xff] %v945
        %978 = vst [vmem:[#allocation2 + $0xc0] sm:$0xff] %v946
        %979 = vst [vmem:[#allocation2 + $0xc8] sm:$0xff] %v947
        %980 = vst [vmem:[#allocation2 + $0xd0] sm:$0xff] %v948
        %981 = vst [vmem:[#allocation2 + $0xd8] sm:$0xff] %v949
        %982 = vst [vmem:[#allocation2 + $0xe0] sm:$0xff] %v950
        %983 = vst [vmem:[#allocation2 + $0xe8] sm:$0xff] %v951
        %984 = vst [vmem:[#allocation2 + $0xf0] sm:$0xff] %v952
        %985 = vst [vmem:[#allocation2 + $0xf8] sm:$0xff] %v953
        %p986 = scmp.eq.s32.totalorder %s19, 1
        // Predicated region
        $region75: #{gcn_forward.5} parent=65 // pred_check
          %p987 = pneg %p986
        $region76: #{gcn_forward.5} parent=65 // pred_check_branch
          %989 = sbr.rel (%p987) target = $region78
        $region77: #{gcn_forward.5} parent=65 // pred_region
          %v990 = vld [vmem:[#allocation2] sm:$0xff]
          %v991 = vld [vmem:[#allocation2 + $0x8] sm:$0xff]
          %v992 = vld [vmem:[#allocation2 + $0x10] sm:$0xff]
          %v993 = vld [vmem:[#allocation2 + $0x18] sm:$0xff]
          %v994 = vld [vmem:[#allocation2 + $0x20] sm:$0xff]
          %v995 = vld [vmem:[#allocation2 + $0x28] sm:$0xff]
          %v996 = vld [vmem:[#allocation2 + $0x30] sm:$0xff]
          %v997 = vld [vmem:[#allocation2 + $0x38] sm:$0xff]
          %v998 = vld [vmem:[#allocation2 + $0x40] sm:$0xff]
          %v999 = vld [vmem:[#allocation2 + $0x48] sm:$0xff]
          %v1000 = vld [vmem:[#allocation2 + $0x50] sm:$0xff]
          %v1001 = vld [vmem:[#allocation2 + $0x58] sm:$0xff]
          %v1002 = vld [vmem:[#allocation2 + $0x60] sm:$0xff]
          %v1003 = vld [vmem:[#allocation2 + $0x68] sm:$0xff]
          %v1004 = vld [vmem:[#allocation2 + $0x70] sm:$0xff]
          %v1005 = vld [vmem:[#allocation2 + $0x78] sm:$0xff]
          %v1006 = vld [vmem:[#allocation2 + $0x80] sm:$0xff]
          %v1007 = vld [vmem:[#allocation2 + $0x88] sm:$0xff]
          %v1008 = vld [vmem:[#allocation2 + $0x90] sm:$0xff]
          %v1009 = vld [vmem:[#allocation2 + $0x98] sm:$0xff]
          %v1010 = vld [vmem:[#allocation2 + $0xa0] sm:$0xff]
          %v1011 = vld [vmem:[#allocation2 + $0xa8] sm:$0xff]
          %v1012 = vld [vmem:[#allocation2 + $0xb0] sm:$0xff]
          %v1013 = vld [vmem:[#allocation2 + $0xb8] sm:$0xff]
          %v1014 = vld [vmem:[#allocation2 + $0xc0] sm:$0xff]
          %v1015 = vld [vmem:[#allocation2 + $0xc8] sm:$0xff]
          %v1016 = vld [vmem:[#allocation2 + $0xd0] sm:$0xff]
          %v1017 = vld [vmem:[#allocation2 + $0xd8] sm:$0xff]
          %v1018 = vld [vmem:[#allocation2 + $0xe0] sm:$0xff]
          %v1019 = vld [vmem:[#allocation2 + $0xe8] sm:$0xff]
          %v1020 = vld [vmem:[#allocation2 + $0xf0] sm:$0xff]
          %v1021 = vld [vmem:[#allocation2 + $0xf8] sm:$0xff]
          %v1022 = vld [vmem:[%s2] sm:$0x1]
          %v1024 = vlaneseq
          %v1025 = vshrl.u32 %v1024, 7
          %v1026 = vsub.s32 0, %v1025
          %v1027 = vrot.slane %v1022, %v1026
          %v1029 = vadd.f32 %v990, %v1027
          %v1030 = vadd.f32 %v991, %v1027
          %v1031 = vadd.f32 %v992, %v1027
          %v1032 = vadd.f32 %v993, %v1027
          %v1033 = vadd.f32 %v994, %v1027
          %v1034 = vadd.f32 %v995, %v1027
          %v1035 = vadd.f32 %v996, %v1027
          %v1036 = vadd.f32 %v997, %v1027
          %v1037 = vadd.f32 %v998, %v1027
          %v1038 = vadd.f32 %v999, %v1027
          %v1039 = vadd.f32 %v1000, %v1027
          %v1040 = vadd.f32 %v1001, %v1027
          %v1041 = vadd.f32 %v1002, %v1027
          %v1042 = vadd.f32 %v1003, %v1027
          %v1043 = vadd.f32 %v1004, %v1027
          %v1044 = vadd.f32 %v1005, %v1027
          %v1045 = vadd.f32 %v1006, %v1027
          %v1046 = vadd.f32 %v1007, %v1027
          %v1047 = vadd.f32 %v1008, %v1027
          %v1048 = vadd.f32 %v1009, %v1027
          %v1049 = vadd.f32 %v1010, %v1027
          %v1050 = vadd.f32 %v1011, %v1027
          %v1051 = vadd.f32 %v1012, %v1027
          %v1052 = vadd.f32 %v1013, %v1027
          %v1053 = vadd.f32 %v1014, %v1027
          %v1054 = vadd.f32 %v1015, %v1027
          %v1055 = vadd.f32 %v1016, %v1027
          %v1056 = vadd.f32 %v1017, %v1027
          %v1057 = vadd.f32 %v1018, %v1027
          %v1058 = vadd.f32 %v1019, %v1027
          %v1059 = vadd.f32 %v1020, %v1027
          %v1060 = vadd.f32 %v1021, %v1027
          %1061 = vst [vmem:[%s370] sm:$0xff] %v1029
          %1062 = vst [vmem:[%s370 + $0x8] sm:$0xff] %v1030
          %1063 = vst [vmem:[%s370 + $0x10] sm:$0xff] %v1031
          %1064 = vst [vmem:[%s370 + $0x18] sm:$0xff] %v1032
          %1065 = vst [vmem:[%s370 + $0x20] sm:$0xff] %v1033
          %1066 = vst [vmem:[%s370 + $0x28] sm:$0xff] %v1034
          %1067 = vst [vmem:[%s370 + $0x30] sm:$0xff] %v1035
          %1068 = vst [vmem:[%s370 + $0x38] sm:$0xff] %v1036
          %1069 = vst [vmem:[%s370 + $0x40] sm:$0xff] %v1037
          %1070 = vst [vmem:[%s370 + $0x48] sm:$0xff] %v1038
          %1071 = vst [vmem:[%s370 + $0x50] sm:$0xff] %v1039
          %1072 = vst [vmem:[%s370 + $0x58] sm:$0xff] %v1040
          %1073 = vst [vmem:[%s370 + $0x60] sm:$0xff] %v1041
          %1074 = vst [vmem:[%s370 + $0x68] sm:$0xff] %v1042
          %1075 = vst [vmem:[%s370 + $0x70] sm:$0xff] %v1043
          %1076 = vst [vmem:[%s370 + $0x78] sm:$0xff] %v1044
          %1077 = vst [vmem:[%s370 + $0x80] sm:$0xff] %v1045
          %1078 = vst [vmem:[%s370 + $0x88] sm:$0xff] %v1046
          %1079 = vst [vmem:[%s370 + $0x90] sm:$0xff] %v1047
          %1080 = vst [vmem:[%s370 + $0x98] sm:$0xff] %v1048
          %1081 = vst [vmem:[%s370 + $0xa0] sm:$0xff] %v1049
          %1082 = vst [vmem:[%s370 + $0xa8] sm:$0xff] %v1050
          %1083 = vst [vmem:[%s370 + $0xb0] sm:$0xff] %v1051
          %1084 = vst [vmem:[%s370 + $0xb8] sm:$0xff] %v1052
          %1085 = vst [vmem:[%s370 + $0xc0] sm:$0xff] %v1053
          %1086 = vst [vmem:[%s370 + $0xc8] sm:$0xff] %v1054
          %1087 = vst [vmem:[%s370 + $0xd0] sm:$0xff] %v1055
          %1088 = vst [vmem:[%s370 + $0xd8] sm:$0xff] %v1056
          %1089 = vst [vmem:[%s370 + $0xe0] sm:$0xff] %v1057
          %1090 = vst [vmem:[%s370 + $0xe8] sm:$0xff] %v1058
          %1091 = vst [vmem:[%s370 + $0xf0] sm:$0xff] %v1059
          %1092 = vst [vmem:[%s370 + $0xf8] sm:$0xff] %v1060
        $region78: #{gcn_forward.5} parent=65 // pred_fallthru
          _
        %s1093 = smul.u32 32, %s18
        %p1094 = scmp.lt.s32.totalorder %s1093, 63
        %s1095 = scalar_select %p1094, %s1093, 63
        %s1096 = smul.addr %s1095, 8
        %s1097 = scalar_lea.vmem %s3, %s1096
        // Predicated region
        $region79: #{gcn_forward.5} parent=65 // pred_check
          %p1098 = pneg %p119
        $region80: #{gcn_forward.5} parent=65 // pred_check_branch
          %1100 = sbr.rel (%p1098) target = $region82
        $region81: #{gcn_forward.5} parent=65 // pred_region
          %s1101 = smul.u32 32, %s18
        $region82: #{gcn_forward.5} parent=65 // pred_fallthru
          _
      $region66: #{gcn_forward.5} parent=5 // pred_fallthru
        _
      %p1102 = scmp.le.s32.totalorder 2, %s9
      // Predicated region
      $region83: #{gcn_forward.5} parent=5 // pred_check
        %p1103 = pneg %p1102
      $region84: #{gcn_forward.5} parent=5 // pred_check_branch
        %1105 = sbr.rel (%p1103) target = $region86
      $region85: #{gcn_forward.5} parent=5 // pred_region
        %s1106 = ssub.s32 %s9, 2
        // Predicated region
        $region87: #{gcn_forward.5} parent=85 // pred_check
          %p1107 = pneg %p125
        $region88: #{gcn_forward.5} parent=85 // pred_check_branch
          %1109 = sbr.rel (%p1107) target = $region90
        $region89: #{gcn_forward.5} parent=85 // pred_region
          %s1110 = smul.u32 32, %s20
          %p1111 = scmp.lt.s32.totalorder %s1110, 63
          %s1112 = scalar_select %p1111, %s1110, 63
          %s1113 = smul.addr %s1112, 8
          %s1114 = scalar_lea.vmem %s3, %s1113
        $region90: #{gcn_forward.5} parent=85 // pred_fallthru
          _
      $region86: #{gcn_forward.5} parent=5 // pred_fallthru
        _
    $region6: #{gcn_forward.5} parent=1 // loop_footer
      %s13 = sadd.s32 1, %s9
    $region7: #{gcn_forward.5} parent=1 // loop_footer_branch
      %8 = sbr.rel target = $region3
    $region8: #{gcn_forward.5} parent=1 // loop_exit
      _

// kernel: gcn_forward.4
$region0: #{gcn_forward.4}
  #allocation0 [shape = 'u32[]', space=smem, size = 0x4, offset = 0x4, fixed_abs, tag = 'smem constant byte address 0x4 - core index']
  #allocation1 [shape = 'u32[144,128]{1,0:T(1,128)}', space=vmem, size = 0x12000, scoped, tag = 'internal scratch']
  #allocation2 [shape = 'f32[256,128]{1,0:T(8,128)}', space=vmem, size = 0x20000, scoped, tag = 'scratch operand']
  %s0 = inlined_call_operand.vmem [shape: bf16[512,512], index: 0, kind: input, shape index: {}]
  %s1 = inlined_call_operand.vmem [shape: bf16[512,128], index: 1, kind: input, shape index: {}]
  %s2 = inlined_call_operand.vmem [shape: f32[1,128], index: 2, kind: input, shape index: {}]
  %s3 = inlined_call_operand.vmem [shape: bf16[128,128], index: 3, kind: input, shape index: {}]
  %s4 = inlined_call_operand.vmem [shape: bf16[512,128], index: 4, kind: output, shape index: {}]
  %s5 = sld [smem:[#allocation0]]
  $region95: #{gcn_forward.4} parent=0
    _
  %s7 = ssub.s32 1, %s5
  %s8 = scalar_select 0, %s7, %s5
  $region1: #{gcn_forward.4} parent=0
    #allocation3 [shape = 'u8[262144]{0}', space=vmem, size = 0x40000, scoped, tag = 'input window, operand 0']
    loop: start=0, step=1, limit=6
    $region2: #{gcn_forward.4} parent=1 // loop_pre_header
      _
    $region3: #{gcn_forward.4} parent=1 // loop_header
      %s10 = sphi 0, %s14
      %p11 = scmp.ge.s32.totalorder %s10, 6
      %s17 = sphi 0, %s29
      %s18 = sphi 0, %s25
      %s19 = sphi 0, %s17
      %s20 = sphi 0, %s18
      %s21 = sphi 0, %s19
      %s22 = sphi 0, %s20
      %s34 = sphi 0, %s36
      %s37 = sphi 0, %s34
      %s38 = sphi 0, %s37
      %s54 = sphi 0, %s38
      %s60 = sphi 0, %s62
      %s63 = sphi 0, %s60
      %s64 = sphi 0, %s63
      %s80 = sphi 0, %s64
      %s84 = sphi 0, %s84
      %s86 = sphi 0, %s84
      %s87 = sphi 0, %s86
      %s101 = sphi 0, %s87
      %s105 = sphi 0, %s105
      %s107 = sphi 0, %s105
      %s108 = sphi 0, %s107
      %s122 = sphi 0, %s108
      %s128 = sphi 0, %s130
      %s131 = sphi 0, %s128
      %s132 = sphi 0, %s131
      %s148 = sphi 0, %s132
    $region4: #{gcn_forward.4} parent=1 // loop_header_branch
      %13 = sbr.rel (%p11) target = $region8
    $region5: #{gcn_forward.4} parent=1 // loop_body
      %s15 = ssub.s32 %s10, 1
      %s16 = ssub.s32 %s10, 2
      %s23 = sadd.s32 1, %s18
      %p24 = scmp.ge.s32.totalorder %s23, 2
      %s25 = scalar_select %p24, 0, %s23
      %s26 = sadd.s32 1, %s17
      %s27 = scalar_select %p24, %s26, %s17
      %p28 = scmp.ge.s32.totalorder %s27, 2
      %s29 = scalar_select %p28, 0, %s27
      %s30 = ssub.s32 %s17, %s29
      %s31 = ssub.s32 %s18, %s25
      %s32 = sor.u32 %s30, %s31
      %p33 = scmp.eq.s32.totalorder %s32, 0
      %s35 = sadd.s32 %s34, 1
      %s36 = scalar_select %p33, %s34, %s35
      %p39 = pneg %p33
      %p40 = scmp.eq.s32.totalorder %s10, 3
      %p41 = por %p39, %p40
      %p42 = scmp.ne.s32.totalorder %s34, %s37
      %p43 = scmp.eq.s32.totalorder %s10, 0
      %p44 = por %p42, %p43
      %p45 = scmp.ne.s32.totalorder %s34, %s37
      %p46 = scmp.eq.s32.totalorder %s15, 3
      %p47 = por %p45, %p46
      %p48 = scmp.ne.s32.totalorder %s37, %s38
      %p49 = scmp.eq.s32.totalorder %s15, 0
      %p50 = por %p48, %p49
      %p51 = scmp.ne.s32.totalorder %s37, %s38
      %p52 = scmp.eq.s32.totalorder %s16, 3
      %p53 = por %p51, %p52
      %p55 = scmp.ne.s32.totalorder %s38, %s54
      %p56 = scmp.eq.s32.totalorder %s16, 0
      %p57 = por %p55, %p56
      %s58 = ssub.s32 %s18, %s25
      %p59 = scmp.eq.s32.totalorder %s58, 0
      %s61 = sadd.s32 %s60, 1
      %s62 = scalar_select %p59, %s60, %s61
      %p65 = pneg %p59
      %p66 = scmp.eq.s32.totalorder %s10, 3
      %p67 = por %p65, %p66
      %p68 = scmp.ne.s32.totalorder %s60, %s63
      %p69 = scmp.eq.s32.totalorder %s10, 0
      %p70 = por %p68, %p69
      %p71 = scmp.ne.s32.totalorder %s60, %s63
      %p72 = scmp.eq.s32.totalorder %s15, 3
      %p73 = por %p71, %p72
      %p74 = scmp.ne.s32.totalorder %s63, %s64
      %p75 = scmp.eq.s32.totalorder %s15, 0
      %p76 = por %p74, %p75
      %p77 = scmp.ne.s32.totalorder %s63, %s64
      %p78 = scmp.eq.s32.totalorder %s16, 3
      %p79 = por %p77, %p78
      %p81 = scmp.ne.s32.totalorder %s64, %s80
      %p82 = scmp.eq.s32.totalorder %s16, 0
      %p83 = por %p81, %p82
      %s85 = sadd.s32 %s84, 1
      %p88 = scmp.eq.s32.totalorder %s10, 3
      %p89 = scmp.ne.s32.totalorder %s84, %s86
      %p90 = scmp.eq.s32.totalorder %s10, 0
      %p91 = por %p89, %p90
      %p92 = scmp.ne.s32.totalorder %s84, %s86
      %p93 = scmp.eq.s32.totalorder %s15, 3
      %p94 = por %p92, %p93
      %p95 = scmp.ne.s32.totalorder %s86, %s87
      %p96 = scmp.eq.s32.totalorder %s15, 0
      %p97 = por %p95, %p96
      %p98 = scmp.ne.s32.totalorder %s86, %s87
      %p99 = scmp.eq.s32.totalorder %s16, 3
      %p100 = por %p98, %p99
      %p102 = scmp.ne.s32.totalorder %s87, %s101
      %p103 = scmp.eq.s32.totalorder %s16, 0
      %p104 = por %p102, %p103
      %s106 = sadd.s32 %s105, 1
      %p109 = scmp.eq.s32.totalorder %s10, 3
      %p110 = scmp.ne.s32.totalorder %s105, %s107
      %p111 = scmp.eq.s32.totalorder %s10, 0
      %p112 = por %p110, %p111
      %p113 = scmp.ne.s32.totalorder %s105, %s107
      %p114 = scmp.eq.s32.totalorder %s15, 3
      %p115 = por %p113, %p114
      %p116 = scmp.ne.s32.totalorder %s107, %s108
      %p117 = scmp.eq.s32.totalorder %s15, 0
      %p118 = por %p116, %p117
      %p119 = scmp.ne.s32.totalorder %s107, %s108
      %p120 = scmp.eq.s32.totalorder %s16, 3
      %p121 = por %p119, %p120
      %p123 = scmp.ne.s32.totalorder %s108, %s122
      %p124 = scmp.eq.s32.totalorder %s16, 0
      %p125 = por %p123, %p124
      %s126 = ssub.s32 %s17, %s29
      %p127 = scmp.eq.s32.totalorder %s126, 0
      %s129 = sadd.s32 %s128, 1
      %s130 = scalar_select %p127, %s128, %s129
      %p133 = pneg %p127
      %p134 = scmp.eq.s32.totalorder %s10, 3
      %p135 = por %p133, %p134
      %p136 = scmp.ne.s32.totalorder %s128, %s131
      %p137 = scmp.eq.s32.totalorder %s10, 0
      %p138 = por %p136, %p137
      %p139 = scmp.ne.s32.totalorder %s128, %s131
      %p140 = scmp.eq.s32.totalorder %s15, 3
      %p141 = por %p139, %p140
      %p142 = scmp.ne.s32.totalorder %s131, %s132
      %p143 = scmp.eq.s32.totalorder %s15, 0
      %p144 = por %p142, %p143
      %p145 = scmp.ne.s32.totalorder %s131, %s132
      %p146 = scmp.eq.s32.totalorder %s16, 3
      %p147 = por %p145, %p146
      %p149 = scmp.ne.s32.totalorder %s132, %s148
      %p150 = scmp.eq.s32.totalorder %s16, 0
      %p151 = por %p149, %p150
      %p152 = scmp.le.s32.totalorder 1, %s10
      %p153 = scmp.lt.s32.totalorder %s10, 5
      %p154 = pnand %p152, %p153
      %p155 = pneg %p154
      // Predicated region
      $region9: #{gcn_forward.4} parent=5 // pred_check
        _
      $region10: #{gcn_forward.4} parent=5 // pred_check_branch
        %157 = sbr.rel (%p154) target = $region12
      $region11: #{gcn_forward.4} parent=5 // pred_region
        %s158 = ssub.s32 %s10, 1
        // Predicated region
        $region13: #{gcn_forward.4} parent=11 // pred_check
          %p159 = pneg %p97
        $region14: #{gcn_forward.4} parent=11 // pred_check_branch
          %161 = sbr.rel (%p159) target = $region16
        $region15: #{gcn_forward.4} parent=11 // pred_region
          _
        $region16: #{gcn_forward.4} parent=11 // pred_fallthru
          _
        // Predicated region
        $region17: #{gcn_forward.4} parent=11 // pred_check
          %p162 = pneg %p118
        $region18: #{gcn_forward.4} parent=11 // pred_check_branch
          %164 = sbr.rel (%p162) target = $region20
        $region19: #{gcn_forward.4} parent=11 // pred_region
          _
        $region20: #{gcn_forward.4} parent=11 // pred_fallthru
          _
      $region12: #{gcn_forward.4} parent=5 // pred_fallthru
        _
      %p165 = scmp.lt.s32.totalorder %s10, 4
      // Predicated region
      $region21: #{gcn_forward.4} parent=5 // pred_check
        %p166 = pneg %p165
      $region22: #{gcn_forward.4} parent=5 // pred_check_branch
        %168 = sbr.rel (%p166) target = $region24
      $region23: #{gcn_forward.4} parent=5 // pred_region
        // Predicated region
        $region25: #{gcn_forward.4} parent=23 // pred_check
          %p169 = pneg %p44
        $region26: #{gcn_forward.4} parent=23 // pred_check_branch
          %171 = sbr.rel (%p169) target = $region28
        $region27: #{gcn_forward.4} parent=23 // pred_region
          %s172 = sand.u32 %s34, 1
          %s173 = sand.u32 %s34, 1
          %s174 = smul.addr %s173, 256
          %s175 = scalar_lea.vmem [#allocation3], %s174
          %s176 = smul.u32 32, %s17
          %s177 = smul.u32 2, %s18
          %s178 = smul.addr %s176, 4
          %s179 = sadd.s32 %s177, %s178
          %s180 = smul.addr %s179, 4
          %s181 = scalar_lea.vmem %s0, %s180
          // Predicated region
          $region29: #{gcn_forward.4} parent=27 // pred_check
            _
          $region30: #{gcn_forward.4} parent=27 // pred_check_branch
            %183 = sbr.rel (0) target = $region32
          $region31: #{gcn_forward.4} parent=27 // pred_region
            // Predicated region
            $region33: #{gcn_forward.4} parent=31 // pred_check
              _
            $region34: #{gcn_forward.4} parent=31 // pred_check_branch
              %185 = sbr.rel (0) target = $region36
            $region35: #{gcn_forward.4} parent=31 // pred_region
              // Predicated region
              $region48: #{gcn_forward.4} parent=35 // pred_check
                _
              $region49: #{gcn_forward.4} parent=35 // pred_check_branch
                %262 = sbr.rel (0) target = $region51
              $region50: #{gcn_forward.4} parent=35 // pred_region
                loop: start=0, step=1, limit=1
                $region52: #{gcn_forward.4} parent=50 // loop_pre_header
                  _
                $region53: #{gcn_forward.4} parent=50 // loop_header
                  %s264 = sphi 0, %s268
                  %p265 = scmp.ge.s32.totalorder %s264, 1
                  %s269 = sphi %s181, %s181
                  %s270 = sphi %s175, %s175
                $region54: #{gcn_forward.4} parent=50 // loop_header_branch
                  %267 = sbr.rel (%p265) target = $region58
                $region55: #{gcn_forward.4} parent=50 // loop_body
                  %v271 = vld [vmem:[%s269] sm:$0xff]
                  %272 = vst [vmem:[%s270] sm:$0xff] %v271
                  %v273 = vld [vmem:[%s269 + $0x10] sm:$0xff]
                  %274 = vst [vmem:[%s270 + $0x8] sm:$0xff] %v273
                  %v275 = vld [vmem:[%s269 + $0x20] sm:$0xff]
                  %276 = vst [vmem:[%s270 + $0x10] sm:$0xff] %v275
                  %v277 = vld [vmem:[%s269 + $0x30] sm:$0xff]
                  %278 = vst [vmem:[%s270 + $0x18] sm:$0xff] %v277
                  %v279 = vld [vmem:[%s269 + $0x40] sm:$0xff]
                  %280 = vst [vmem:[%s270 + $0x20] sm:$0xff] %v279
                  %v281 = vld [vmem:[%s269 + $0x50] sm:$0xff]
                  %282 = vst [vmem:[%s270 + $0x28] sm:$0xff] %v281
                  %v283 = vld [vmem:[%s269 + $0x60] sm:$0xff]
                  %284 = vst [vmem:[%s270 + $0x30] sm:$0xff] %v283
                  %v285 = vld [vmem:[%s269 + $0x70] sm:$0xff]
                  %286 = vst [vmem:[%s270 + $0x38] sm:$0xff] %v285
                  %v287 = vld [vmem:[%s269 + $0x80] sm:$0xff]
                  %288 = vst [vmem:[%s270 + $0x40] sm:$0xff] %v287
                  %v289 = vld [vmem:[%s269 + $0x90] sm:$0xff]
                  %290 = vst [vmem:[%s270 + $0x48] sm:$0xff] %v289
                  %v291 = vld [vmem:[%s269 + $0xa0] sm:$0xff]
                  %292 = vst [vmem:[%s270 + $0x50] sm:$0xff] %v291
                  %v293 = vld [vmem:[%s269 + $0xb0] sm:$0xff]
                  %294 = vst [vmem:[%s270 + $0x58] sm:$0xff] %v293
                  %v295 = vld [vmem:[%s269 + $0xc0] sm:$0xff]
                  %296 = vst [vmem:[%s270 + $0x60] sm:$0xff] %v295
                  %v297 = vld [vmem:[%s269 + $0xd0] sm:$0xff]
                  %298 = vst [vmem:[%s270 + $0x68] sm:$0xff] %v297
                  %v299 = vld [vmem:[%s269 + $0xe0] sm:$0xff]
                  %300 = vst [vmem:[%s270 + $0x70] sm:$0xff] %v299
                  %v301 = vld [vmem:[%s269 + $0xf0] sm:$0xff]
                  %302 = vst [vmem:[%s270 + $0x78] sm:$0xff] %v301
                  %v303 = vld [vmem:[%s269 + $0x100] sm:$0xff]
                  %304 = vst [vmem:[%s270 + $0x80] sm:$0xff] %v303
                  %v305 = vld [vmem:[%s269 + $0x110] sm:$0xff]
                  %306 = vst [vmem:[%s270 + $0x88] sm:$0xff] %v305
                  %v307 = vld [vmem:[%s269 + $0x120] sm:$0xff]
                  %308 = vst [vmem:[%s270 + $0x90] sm:$0xff] %v307
                  %v309 = vld [vmem:[%s269 + $0x130] sm:$0xff]
                  %310 = vst [vmem:[%s270 + $0x98] sm:$0xff] %v309
                  %v311 = vld [vmem:[%s269 + $0x140] sm:$0xff]
                  %312 = vst [vmem:[%s270 + $0xa0] sm:$0xff] %v311
                  %v313 = vld [vmem:[%s269 + $0x150] sm:$0xff]
                  %314 = vst [vmem:[%s270 + $0xa8] sm:$0xff] %v313
                  %v315 = vld [vmem:[%s269 + $0x160] sm:$0xff]
                  %316 = vst [vmem:[%s270 + $0xb0] sm:$0xff] %v315
                  %v317 = vld [vmem:[%s269 + $0x170] sm:$0xff]
                  %318 = vst [vmem:[%s270 + $0xb8] sm:$0xff] %v317
                  %v319 = vld [vmem:[%s269 + $0x180] sm:$0xff]
                  %320 = vst [vmem:[%s270 + $0xc0] sm:$0xff] %v319
                  %v321 = vld [vmem:[%s269 + $0x190] sm:$0xff]
                  %322 = vst [vmem:[%s270 + $0xc8] sm:$0xff] %v321
                  %v323 = vld [vmem:[%s269 + $0x1a0] sm:$0xff]
                  %324 = vst [vmem:[%s270 + $0xd0] sm:$0xff] %v323
                  %v325 = vld [vmem:[%s269 + $0x1b0] sm:$0xff]
                  %326 = vst [vmem:[%s270 + $0xd8] sm:$0xff] %v325
                  %v327 = vld [vmem:[%s269 + $0x1c0] sm:$0xff]
                  %328 = vst [vmem:[%s270 + $0xe0] sm:$0xff] %v327
                  %v329 = vld [vmem:[%s269 + $0x1d0] sm:$0xff]
                  %330 = vst [vmem:[%s270 + $0xe8] sm:$0xff] %v329
                  %v331 = vld [vmem:[%s269 + $0x1e0] sm:$0xff]
                  %332 = vst [vmem:[%s270 + $0xf0] sm:$0xff] %v331
                  %v333 = vld [vmem:[%s269 + $0x1f0] sm:$0xff]
                  %334 = vst [vmem:[%s270 + $0xf8] sm:$0xff] %v333
                $region56: #{gcn_forward.4} parent=50 // loop_footer
                  %s268 = sadd.s32 1, %s264
                $region57: #{gcn_forward.4} parent=50 // loop_footer_branch
                  %263 = sbr.rel target = $region53
                $region58: #{gcn_forward.4} parent=50 // loop_exit
                  _
              $region51: #{gcn_forward.4} parent=35 // pred_fallthru
                _
              // Predicated region
              $region59: #{gcn_forward.4} parent=35 // pred_check
                _
              $region60: #{gcn_forward.4} parent=35 // pred_check_branch
                %336 = sbr.rel target = $region62
              $region61: #{gcn_forward.4} parent=35 // pred_region
                _
              $region62: #{gcn_forward.4} parent=35 // pred_fallthru
                _
            $region36: #{gcn_forward.4} parent=31 // pred_fallthru
              _
            // Predicated region
            $region37: #{gcn_forward.4} parent=31 // pred_check
              _
            $region38: #{gcn_forward.4} parent=31 // pred_check_branch
              %187 = sbr.rel target = $region40
            $region39: #{gcn_forward.4} parent=31 // pred_region
              loop: start=0, step=1, limit=1
              $region41: #{gcn_forward.4} parent=39 // loop_pre_header
                _
              $region42: #{gcn_forward.4} parent=39 // loop_header
                %s190 = sphi 0, %s194
                %p191 = scmp.ge.s32.totalorder %s190, 1
                %s195 = sphi %s181, %s181
                %s196 = sphi %s175, %s175
              $region43: #{gcn_forward.4} parent=39 // loop_header_branch
                %193 = sbr.rel (%p191) target = $region47
              $region44: #{gcn_forward.4} parent=39 // loop_body
                %v197 = vld [vmem:[%s195] sm:$0xff]
                %198 = vst [vmem:[%s196] sm:$0xff] %v197
                %v199 = vld [vmem:[%s195 + $0x10] sm:$0xff]
                %200 = vst [vmem:[%s196 + $0x8] sm:$0xff] %v199
                %v201 = vld [vmem:[%s195 + $0x20] sm:$0xff]
                %202 = vst [vmem:[%s196 + $0x10] sm:$0xff] %v201
                %v203 = vld [vmem:[%s195 + $0x30] sm:$0xff]
                %204 = vst [vmem:[%s196 + $0x18] sm:$0xff] %v203
                %v205 = vld [vmem:[%s195 + $0x40] sm:$0xff]
                %206 = vst [vmem:[%s196 + $0x20] sm:$0xff] %v205
                %v207 = vld [vmem:[%s195 + $0x50] sm:$0xff]
                %208 = vst [vmem:[%s196 + $0x28] sm:$0xff] %v207
                %v209 = vld [vmem:[%s195 + $0x60] sm:$0xff]
                %210 = vst [vmem:[%s196 + $0x30] sm:$0xff] %v209
                %v211 = vld [vmem:[%s195 + $0x70] sm:$0xff]
                %212 = vst [vmem:[%s196 + $0x38] sm:$0xff] %v211
                %v213 = vld [vmem:[%s195 + $0x80] sm:$0xff]
                %214 = vst [vmem:[%s196 + $0x40] sm:$0xff] %v213
                %v215 = vld [vmem:[%s195 + $0x90] sm:$0xff]
                %216 = vst [vmem:[%s196 + $0x48] sm:$0xff] %v215
                %v217 = vld [vmem:[%s195 + $0xa0] sm:$0xff]
                %218 = vst [vmem:[%s196 + $0x50] sm:$0xff] %v217
                %v219 = vld [vmem:[%s195 + $0xb0] sm:$0xff]
                %220 = vst [vmem:[%s196 + $0x58] sm:$0xff] %v219
                %v221 = vld [vmem:[%s195 + $0xc0] sm:$0xff]
                %222 = vst [vmem:[%s196 + $0x60] sm:$0xff] %v221
                %v223 = vld [vmem:[%s195 + $0xd0] sm:$0xff]
                %224 = vst [vmem:[%s196 + $0x68] sm:$0xff] %v223
                %v225 = vld [vmem:[%s195 + $0xe0] sm:$0xff]
                %226 = vst [vmem:[%s196 + $0x70] sm:$0xff] %v225
                %v227 = vld [vmem:[%s195 + $0xf0] sm:$0xff]
                %228 = vst [vmem:[%s196 + $0x78] sm:$0xff] %v227
                %v229 = vld [vmem:[%s195 + $0x100] sm:$0xff]
                %230 = vst [vmem:[%s196 + $0x80] sm:$0xff] %v229
                %v231 = vld [vmem:[%s195 + $0x110] sm:$0xff]
                %232 = vst [vmem:[%s196 + $0x88] sm:$0xff] %v231
                %v233 = vld [vmem:[%s195 + $0x120] sm:$0xff]
                %234 = vst [vmem:[%s196 + $0x90] sm:$0xff] %v233
                %v235 = vld [vmem:[%s195 + $0x130] sm:$0xff]
                %236 = vst [vmem:[%s196 + $0x98] sm:$0xff] %v235
                %v237 = vld [vmem:[%s195 + $0x140] sm:$0xff]
                %238 = vst [vmem:[%s196 + $0xa0] sm:$0xff] %v237
                %v239 = vld [vmem:[%s195 + $0x150] sm:$0xff]
                %240 = vst [vmem:[%s196 + $0xa8] sm:$0xff] %v239
                %v241 = vld [vmem:[%s195 + $0x160] sm:$0xff]
                %242 = vst [vmem:[%s196 + $0xb0] sm:$0xff] %v241
                %v243 = vld [vmem:[%s195 + $0x170] sm:$0xff]
                %244 = vst [vmem:[%s196 + $0xb8] sm:$0xff] %v243
                %v245 = vld [vmem:[%s195 + $0x180] sm:$0xff]
                %246 = vst [vmem:[%s196 + $0xc0] sm:$0xff] %v245
                %v247 = vld [vmem:[%s195 + $0x190] sm:$0xff]
                %248 = vst [vmem:[%s196 + $0xc8] sm:$0xff] %v247
                %v249 = vld [vmem:[%s195 + $0x1a0] sm:$0xff]
                %250 = vst [vmem:[%s196 + $0xd0] sm:$0xff] %v249
                %v251 = vld [vmem:[%s195 + $0x1b0] sm:$0xff]
                %252 = vst [vmem:[%s196 + $0xd8] sm:$0xff] %v251
                %v253 = vld [vmem:[%s195 + $0x1c0] sm:$0xff]
                %254 = vst [vmem:[%s196 + $0xe0] sm:$0xff] %v253
                %v255 = vld [vmem:[%s195 + $0x1d0] sm:$0xff]
                %256 = vst [vmem:[%s196 + $0xe8] sm:$0xff] %v255
                %v257 = vld [vmem:[%s195 + $0x1e0] sm:$0xff]
                %258 = vst [vmem:[%s196 + $0xf0] sm:$0xff] %v257
                %v259 = vld [vmem:[%s195 + $0x1f0] sm:$0xff]
                %260 = vst [vmem:[%s196 + $0xf8] sm:$0xff] %v259
              $region45: #{gcn_forward.4} parent=39 // loop_footer
                %s194 = sadd.s32 1, %s190
              $region46: #{gcn_forward.4} parent=39 // loop_footer_branch
                %189 = sbr.rel target = $region42
              $region47: #{gcn_forward.4} parent=39 // loop_exit
                _
            $region40: #{gcn_forward.4} parent=31 // pred_fallthru
              _
          $region32: #{gcn_forward.4} parent=27 // pred_fallthru
            _
          %337 = vnop
        $region28: #{gcn_forward.4} parent=23 // pred_fallthru
          _
        // Predicated region
        $region63: #{gcn_forward.4} parent=23 // pred_check
          %p338 = pneg %p70
        $region64: #{gcn_forward.4} parent=23 // pred_check_branch
          %340 = sbr.rel (%p338) target = $region66
        $region65: #{gcn_forward.4} parent=23 // pred_region
          %s341 = smul.u32 32, %s18
          %p342 = scmp.lt.s32.totalorder %s341, 63
          %s343 = scalar_select %p342, %s341, 63
          %s344 = smul.addr %s343, 4
          %s345 = scalar_lea.vmem %s1, %s344
          %s346 = smul.u32 32, %s18
        $region66: #{gcn_forward.4} parent=23 // pred_fallthru
          _
      $region24: #{gcn_forward.4} parent=5 // pred_fallthru
        _
      %p347 = scmp.le.s32.totalorder 1, %s10
      %p348 = scmp.lt.s32.totalorder %s10, 5
      %p349 = pnand %p347, %p348
      %p350 = pneg %p349
      // Predicated region
      $region67: #{gcn_forward.4} parent=5 // pred_check
        _
      $region68: #{gcn_forward.4} parent=5 // pred_check_branch
        %352 = sbr.rel (%p349) target = $region70
      $region69: #{gcn_forward.4} parent=5 // pred_region
        %s353 = ssub.s32 %s10, 1
        %s354 = sand.u32 %s37, 1
        %s355 = sand.u32 %s37, 1
        %s356 = smul.addr %s355, 256
        %s357 = scalar_lea.vmem [#allocation3], %s356
        // Predicated region
        $region71: #{gcn_forward.4} parent=69 // pred_check
          %p358 = pneg %p50
        $region72: #{gcn_forward.4} parent=69 // pred_check_branch
          %360 = sbr.rel (%p358) target = $region74
        $region73: #{gcn_forward.4} parent=69 // pred_region
          _
        $region74: #{gcn_forward.4} parent=69 // pred_fallthru
          _
        %s361 = sand.u32 %s37, 1
        %s362 = sand.u32 %s37, 1
        %s363 = smul.addr %s362, 256
        %s364 = scalar_lea.vmem [#allocation3], %s363
        %p365 = pneg %p50
        %p366 = pneg %p47
        %s367 = smul.u32 32, %s20
        %p368 = scmp.lt.s32.totalorder %s367, 63
        %s369 = scalar_select %p368, %s367, 63
        %s370 = smul.addr %s369, 4
        %s371 = scalar_lea.vmem %s1, %s370
        %p372 = pneg %p76
        %p373 = pneg %p73
        %p374 = pneg %p97
        %p375 = pneg %p94
        %p376 = pneg %p118
        %p377 = pneg %p115
        %p378 = pneg %p144
        %p379 = pneg %p141
        %s380 = smul.u32 32, %s19
        %p381 = scmp.lt.s32.totalorder %s380, 63
        %s382 = scalar_select %p381, %s380, 63
        %s383 = smul.addr %s382, 4
        %s384 = scalar_lea.vmem %s4, %s383
        %s385 = smul.u32 32, %s19
        %s386 = smul.u32 2, %s20
        %s387 = smul.u32 32, %s20
        %p388 = scmp.lt.s32.totalorder %s387, 63
        %s389 = scalar_select %p388, %s387, 63
        %s390 = smul.addr %s389, 4
        %s391 = scalar_lea.vmem %s1, %s390
        %s392 = smul.u32 32, %s20
        %s393 = smul.u32 32, %s19
        %p394 = scmp.lt.s32.totalorder %s393, 63
        %s395 = scalar_select %p394, %s393, 63
        %s396 = smul.addr %s395, 4
        %s397 = scalar_lea.vmem %s4, %s396
        %s398 = smul.u32 32, %s19
        %p400 = scmp.eq.s32.totalorder %s20, 0
        // Predicated region
        $region75: #{gcn_forward.4} parent=69 // pred_check
          %p401 = pneg %p400
        $region76: #{gcn_forward.4} parent=69 // pred_check_branch
          %403 = sbr.rel (%p401) target = $region78
        $region77: #{gcn_forward.4} parent=69 // pred_region
          %404 = vst [vmem:[#allocation2] sm:$0xff] 0.0
          %405 = vst [vmem:[#allocation2 + $0x8] sm:$0xff] 0.0
          %406 = vst [vmem:[#allocation2 + $0x10] sm:$0xff] 0.0
          %407 = vst [vmem:[#allocation2 + $0x18] sm:$0xff] 0.0
          %408 = vst [vmem:[#allocation2 + $0x20] sm:$0xff] 0.0
          %409 = vst [vmem:[#allocation2 + $0x28] sm:$0xff] 0.0
          %410 = vst [vmem:[#allocation2 + $0x30] sm:$0xff] 0.0
          %411 = vst [vmem:[#allocation2 + $0x38] sm:$0xff] 0.0
          %412 = vst [vmem:[#allocation2 + $0x40] sm:$0xff] 0.0
          %413 = vst [vmem:[#allocation2 + $0x48] sm:$0xff] 0.0
          %414 = vst [vmem:[#allocation2 + $0x50] sm:$0xff] 0.0
          %415 = vst [vmem:[#allocation2 + $0x58] sm:$0xff] 0.0
          %416 = vst [vmem:[#allocation2 + $0x60] sm:$0xff] 0.0
          %417 = vst [vmem:[#allocation2 + $0x68] sm:$0xff] 0.0
          %418 = vst [vmem:[#allocation2 + $0x70] sm:$0xff] 0.0
          %419 = vst [vmem:[#allocation2 + $0x78] sm:$0xff] 0.0
          %420 = vst [vmem:[#allocation2 + $0x80] sm:$0xff] 0.0
          %421 = vst [vmem:[#allocation2 + $0x88] sm:$0xff] 0.0
          %422 = vst [vmem:[#allocation2 + $0x90] sm:$0xff] 0.0
          %423 = vst [vmem:[#allocation2 + $0x98] sm:$0xff] 0.0
          %424 = vst [vmem:[#allocation2 + $0xa0] sm:$0xff] 0.0
          %425 = vst [vmem:[#allocation2 + $0xa8] sm:$0xff] 0.0
          %426 = vst [vmem:[#allocation2 + $0xb0] sm:$0xff] 0.0
          %427 = vst [vmem:[#allocation2 + $0xb8] sm:$0xff] 0.0
          %428 = vst [vmem:[#allocation2 + $0xc0] sm:$0xff] 0.0
          %429 = vst [vmem:[#allocation2 + $0xc8] sm:$0xff] 0.0
          %430 = vst [vmem:[#allocation2 + $0xd0] sm:$0xff] 0.0
          %431 = vst [vmem:[#allocation2 + $0xd8] sm:$0xff] 0.0
          %432 = vst [vmem:[#allocation2 + $0xe0] sm:$0xff] 0.0
          %433 = vst [vmem:[#allocation2 + $0xe8] sm:$0xff] 0.0
          %434 = vst [vmem:[#allocation2 + $0xf0] sm:$0xff] 0.0
          %435 = vst [vmem:[#allocation2 + $0xf8] sm:$0xff] 0.0
        $region78: #{gcn_forward.4} parent=69 // pred_fallthru
          _
        %v436 = vld [vmem:[#allocation2] sm:$0xff]
        %v437 = vld [vmem:[#allocation2 + $0x8] sm:$0xff]
        %v438 = vld [vmem:[#allocation2 + $0x10] sm:$0xff]
        %v439 = vld [vmem:[#allocation2 + $0x18] sm:$0xff]
        %v440 = vld [vmem:[#allocation2 + $0x20] sm:$0xff]
        %v441 = vld [vmem:[#allocation2 + $0x28] sm:$0xff]
        %v442 = vld [vmem:[#allocation2 + $0x30] sm:$0xff]
        %v443 = vld [vmem:[#allocation2 + $0x38] sm:$0xff]
        %v444 = vld [vmem:[#allocation2 + $0x40] sm:$0xff]
        %v445 = vld [vmem:[#allocation2 + $0x48] sm:$0xff]
        %v446 = vld [vmem:[#allocation2 + $0x50] sm:$0xff]
        %v447 = vld [vmem:[#allocation2 + $0x58] sm:$0xff]
        %v448 = vld [vmem:[#allocation2 + $0x60] sm:$0xff]
        %v449 = vld [vmem:[#allocation2 + $0x68] sm:$0xff]
        %v450 = vld [vmem:[#allocation2 + $0x70] sm:$0xff]
        %v451 = vld [vmem:[#allocation2 + $0x78] sm:$0xff]
        %v452 = vld [vmem:[#allocation2 + $0x80] sm:$0xff]
        %v453 = vld [vmem:[#allocation2 + $0x88] sm:$0xff]
        %v454 = vld [vmem:[#allocation2 + $0x90] sm:$0xff]
        %v455 = vld [vmem:[#allocation2 + $0x98] sm:$0xff]
        %v456 = vld [vmem:[#allocation2 + $0xa0] sm:$0xff]
        %v457 = vld [vmem:[#allocation2 + $0xa8] sm:$0xff]
        %v458 = vld [vmem:[#allocation2 + $0xb0] sm:$0xff]
        %v459 = vld [vmem:[#allocation2 + $0xb8] sm:$0xff]
        %v460 = vld [vmem:[#allocation2 + $0xc0] sm:$0xff]
        %v461 = vld [vmem:[#allocation2 + $0xc8] sm:$0xff]
        %v462 = vld [vmem:[#allocation2 + $0xd0] sm:$0xff]
        %v463 = vld [vmem:[#allocation2 + $0xd8] sm:$0xff]
        %v464 = vld [vmem:[#allocation2 + $0xe0] sm:$0xff]
        %v465 = vld [vmem:[#allocation2 + $0xe8] sm:$0xff]
        %v466 = vld [vmem:[#allocation2 + $0xf0] sm:$0xff]
        %v467 = vld [vmem:[#allocation2 + $0xf8] sm:$0xff]
        %v468 = vld [vmem:[%s357] sm:$0xff]
        %v469 = vld [vmem:[%s357 + $0x8] sm:$0xff]
        %v470 = vld [vmem:[%s357 + $0x10] sm:$0xff]
        %v471 = vld [vmem:[%s357 + $0x18] sm:$0xff]
        %v472 = vld [vmem:[%s357 + $0x20] sm:$0xff]
        %v473 = vld [vmem:[%s357 + $0x28] sm:$0xff]
        %v474 = vld [vmem:[%s357 + $0x30] sm:$0xff]
        %v475 = vld [vmem:[%s357 + $0x38] sm:$0xff]
        %v476 = vld [vmem:[%s357 + $0x40] sm:$0xff]
        %v477 = vld [vmem:[%s357 + $0x48] sm:$0xff]
        %v478 = vld [vmem:[%s357 + $0x50] sm:$0xff]
        %v479 = vld [vmem:[%s357 + $0x58] sm:$0xff]
        %v480 = vld [vmem:[%s357 + $0x60] sm:$0xff]
        %v481 = vld [vmem:[%s357 + $0x68] sm:$0xff]
        %v482 = vld [vmem:[%s357 + $0x70] sm:$0xff]
        %v483 = vld [vmem:[%s357 + $0x78] sm:$0xff]
        %v484 = vld [vmem:[%s357 + $0x80] sm:$0xff]
        %v485 = vld [vmem:[%s357 + $0x88] sm:$0xff]
        %v486 = vld [vmem:[%s357 + $0x90] sm:$0xff]
        %v487 = vld [vmem:[%s357 + $0x98] sm:$0xff]
        %v488 = vld [vmem:[%s357 + $0xa0] sm:$0xff]
        %v489 = vld [vmem:[%s357 + $0xa8] sm:$0xff]
        %v490 = vld [vmem:[%s357 + $0xb0] sm:$0xff]
        %v491 = vld [vmem:[%s357 + $0xb8] sm:$0xff]
        %v492 = vld [vmem:[%s357 + $0xc0] sm:$0xff]
        %v493 = vld [vmem:[%s357 + $0xc8] sm:$0xff]
        %v494 = vld [vmem:[%s357 + $0xd0] sm:$0xff]
        %v495 = vld [vmem:[%s357 + $0xd8] sm:$0xff]
        %v496 = vld [vmem:[%s357 + $0xe0] sm:$0xff]
        %v497 = vld [vmem:[%s357 + $0xe8] sm:$0xff]
        %v498 = vld [vmem:[%s357 + $0xf0] sm:$0xff]
        %v499 = vld [vmem:[%s357 + $0xf8] sm:$0xff]
        %v500 = vld [vmem:[%s391] sm:$0xf]
        %v501 = vld [vmem:[%s391 + $0x4] sm:$0xf]
        %v502 = vld [vmem:[%s391 + $0x8] sm:$0xf]
        %v503 = vld [vmem:[%s391 + $0xc] sm:$0xf]
        %v504 = vld [vmem:[%s391 + $0x10] sm:$0xf]
        %v505 = vld [vmem:[%s391 + $0x14] sm:$0xf]
        %v506 = vld [vmem:[%s391 + $0x18] sm:$0xf]
        %v507 = vld [vmem:[%s391 + $0x1c] sm:$0xf]
        %v508 = vld [vmem:[%s391 + $0x20] sm:$0xf]
        %v509 = vld [vmem:[%s391 + $0x24] sm:$0xf]
        %v510 = vld [vmem:[%s391 + $0x28] sm:$0xf]
        %v511 = vld [vmem:[%s391 + $0x2c] sm:$0xf]
        %v512 = vld [vmem:[%s391 + $0x30] sm:$0xf]
        %v513 = vld [vmem:[%s391 + $0x34] sm:$0xf]
        %v514 = vld [vmem:[%s391 + $0x38] sm:$0xf]
        %v515 = vld [vmem:[%s391 + $0x3c] sm:$0xf]
        %v516 = vld [vmem:[%s391 + $0x40] sm:$0xf]
        %v517 = vld [vmem:[%s391 + $0x44] sm:$0xf]
        %v518 = vld [vmem:[%s391 + $0x48] sm:$0xf]
        %v519 = vld [vmem:[%s391 + $0x4c] sm:$0xf]
        %v520 = vld [vmem:[%s391 + $0x50] sm:$0xf]
        %v521 = vld [vmem:[%s391 + $0x54] sm:$0xf]
        %v522 = vld [vmem:[%s391 + $0x58] sm:$0xf]
        %v523 = vld [vmem:[%s391 + $0x5c] sm:$0xf]
        %v524 = vld [vmem:[%s391 + $0x60] sm:$0xf]
        %v525 = vld [vmem:[%s391 + $0x64] sm:$0xf]
        %v526 = vld [vmem:[%s391 + $0x68] sm:$0xf]
        %v527 = vld [vmem:[%s391 + $0x6c] sm:$0xf]
        %v528 = vld [vmem:[%s391 + $0x70] sm:$0xf]
        %v529 = vld [vmem:[%s391 + $0x74] sm:$0xf]
        %v530 = vld [vmem:[%s391 + $0x78] sm:$0xf]
        %v531 = vld [vmem:[%s391 + $0x7c] sm:$0xf]
        %v564 = vunpack.c.l.b16 %v468
        %v565 = vunpack.c.h.b16 %v468
        %v566 = vunpack.c.l.b16 %v469
        %v567 = vunpack.c.h.b16 %v469
        %v568 = vunpack.c.l.b16 %v470
        %v569 = vunpack.c.h.b16 %v470
        %v570 = vunpack.c.l.b16 %v471
        %v571 = vunpack.c.h.b16 %v471
        %v572 = vunpack.c.l.b16 %v472
        %v573 = vunpack.c.h.b16 %v472
        %v574 = vunpack.c.l.b16 %v473
        %v575 = vunpack.c.h.b16 %v473
        %v576 = vunpack.c.l.b16 %v474
        %v577 = vunpack.c.h.b16 %v474
        %v578 = vunpack.c.l.b16 %v475
        %v579 = vunpack.c.h.b16 %v475
        %v580 = vunpack.c.l.b16 %v476
        %v581 = vunpack.c.h.b16 %v476
        %v582 = vunpack.c.l.b16 %v477
        %v583 = vunpack.c.h.b16 %v477
        %v584 = vunpack.c.l.b16 %v478
        %v585 = vunpack.c.h.b16 %v478
        %v586 = vunpack.c.l.b16 %v479
        %v587 = vunpack.c.h.b16 %v479
        %v588 = vunpack.c.l.b16 %v480
        %v589 = vunpack.c.h.b16 %v480
        %v590 = vunpack.c.l.b16 %v481
        %v591 = vunpack.c.h.b16 %v481
        %v592 = vunpack.c.l.b16 %v482
        %v593 = vunpack.c.h.b16 %v482
        %v594 = vunpack.c.l.b16 %v483
        %v595 = vunpack.c.h.b16 %v483
        %v596 = vunpack.c.l.b16 %v484
        %v597 = vunpack.c.h.b16 %v484
        %v598 = vunpack.c.l.b16 %v485
        %v599 = vunpack.c.h.b16 %v485
        %v600 = vunpack.c.l.b16 %v486
        %v601 = vunpack.c.h.b16 %v486
        %v602 = vunpack.c.l.b16 %v487
        %v603 = vunpack.c.h.b16 %v487
        %v604 = vunpack.c.l.b16 %v488
        %v605 = vunpack.c.h.b16 %v488
        %v606 = vunpack.c.l.b16 %v489
        %v607 = vunpack.c.h.b16 %v489
        %v608 = vunpack.c.l.b16 %v490
        %v609 = vunpack.c.h.b16 %v490
        %v610 = vunpack.c.l.b16 %v491
        %v611 = vunpack.c.h.b16 %v491
        %v612 = vunpack.c.l.b16 %v492
        %v613 = vunpack.c.h.b16 %v492
        %v614 = vunpack.c.l.b16 %v493
        %v615 = vunpack.c.h.b16 %v493
        %v616 = vunpack.c.l.b16 %v494
        %v617 = vunpack.c.h.b16 %v494
        %v618 = vunpack.c.l.b16 %v495
        %v619 = vunpack.c.h.b16 %v495
        %v620 = vunpack.c.l.b16 %v496
        %v621 = vunpack.c.h.b16 %v496
        %v622 = vunpack.c.l.b16 %v497
        %v623 = vunpack.c.h.b16 %v497
        %v624 = vunpack.c.l.b16 %v498
        %v625 = vunpack.c.h.b16 %v498
        %v626 = vunpack.c.l.b16 %v499
        %v627 = vunpack.c.h.b16 %v499
        %v628 = vpack.c.b16 %v566, %v564
        %v629 = vpack.c.b16 %v567, %v565
        %v630 = vpack.c.b16 %v570, %v568
        %v631 = vpack.c.b16 %v571, %v569
        %v632 = vpack.c.b16 %v574, %v572
        %v633 = vpack.c.b16 %v575, %v573
        %v634 = vpack.c.b16 %v578, %v576
        %v635 = vpack.c.b16 %v579, %v577
        %v636 = vpack.c.b16 %v582, %v580
        %v637 = vpack.c.b16 %v583, %v581
        %v638 = vpack.c.b16 %v586, %v584
        %v639 = vpack.c.b16 %v587, %v585
        %v640 = vpack.c.b16 %v590, %v588
        %v641 = vpack.c.b16 %v591, %v589
        %v642 = vpack.c.b16 %v594, %v592
        %v643 = vpack.c.b16 %v595, %v593
        %v644 = vpack.c.b16 %v598, %v596
        %v645 = vpack.c.b16 %v599, %v597
        %v646 = vpack.c.b16 %v602, %v600
        %v647 = vpack.c.b16 %v603, %v601
        %v648 = vpack.c.b16 %v606, %v604
        %v649 = vpack.c.b16 %v607, %v605
        %v650 = vpack.c.b16 %v610, %v608
        %v651 = vpack.c.b16 %v611, %v609
        %v652 = vpack.c.b16 %v614, %v612
        %v653 = vpack.c.b16 %v615, %v613
        %v654 = vpack.c.b16 %v618, %v616
        %v655 = vpack.c.b16 %v619, %v617
        %v656 = vpack.c.b16 %v622, %v620
        %v657 = vpack.c.b16 %v623, %v621
        %v658 = vpack.c.b16 %v626, %v624
        %v659 = vpack.c.b16 %v627, %v625
        %v724 = vunpack.c.l.b16 %v500
        %v725 = vunpack.c.l.b16 %v501
        %v726 = vunpack.c.l.b16 %v502
        %v727 = vunpack.c.l.b16 %v503
        %v728 = vunpack.c.l.b16 %v504
        %v729 = vunpack.c.l.b16 %v505
        %v730 = vunpack.c.l.b16 %v506
        %v731 = vunpack.c.l.b16 %v507
        %v732 = vunpack.c.l.b16 %v508
        %v733 = vunpack.c.l.b16 %v509
        %v734 = vunpack.c.l.b16 %v510
        %v735 = vunpack.c.l.b16 %v511
        %v736 = vunpack.c.l.b16 %v512
        %v737 = vunpack.c.l.b16 %v513
        %v738 = vunpack.c.l.b16 %v514
        %v739 = vunpack.c.l.b16 %v515
        %v740 = vunpack.c.l.b16 %v516
        %v741 = vunpack.c.l.b16 %v517
        %v742 = vunpack.c.l.b16 %v518
        %v743 = vunpack.c.l.b16 %v519
        %v744 = vunpack.c.l.b16 %v520
        %v745 = vunpack.c.l.b16 %v521
        %v746 = vunpack.c.l.b16 %v522
        %v747 = vunpack.c.l.b16 %v523
        %v748 = vunpack.c.l.b16 %v524
        %v749 = vunpack.c.l.b16 %v525
        %v750 = vunpack.c.l.b16 %v526
        %v751 = vunpack.c.l.b16 %v527
        %v752 = vunpack.c.l.b16 %v528
        %v753 = vunpack.c.l.b16 %v529
        %v754 = vunpack.c.l.b16 %v530
        %v755 = vunpack.c.l.b16 %v531
        %v756 = vpack.c.b16 %v725, %v724
        %v757 = vpack.c.b16 %v727, %v726
        %v758 = vpack.c.b16 %v729, %v728
        %v759 = vpack.c.b16 %v731, %v730
        %v760 = vpack.c.b16 %v733, %v732
        %v761 = vpack.c.b16 %v735, %v734
        %v762 = vpack.c.b16 %v737, %v736
        %v763 = vpack.c.b16 %v739, %v738
        %v764 = vpack.c.b16 %v741, %v740
        %v765 = vpack.c.b16 %v743, %v742
        %v766 = vpack.c.b16 %v745, %v744
        %v767 = vpack.c.b16 %v747, %v746
        %v768 = vpack.c.b16 %v749, %v748
        %v769 = vpack.c.b16 %v751, %v750
        %v770 = vpack.c.b16 %v753, %v752
        %v771 = vpack.c.b16 %v755, %v754
        %788 = vmatprep.subr.bf16.mxu0 0
        %789 = vmatpush1.bf16.msra.mxu0 %v756
        %790 = vmatprep.subr.bf16.mxu0 0
        %791 = vmatpush1.bf16.msra.mxu0 %v757
        %792 = vmatprep.subr.bf16.mxu0 0
        %793 = vmatpush1.bf16.msra.mxu0 %v758
        %794 = vmatprep.subr.bf16.mxu0 0
        %795 = vmatpush1.bf16.msra.mxu0 %v759
        %796 = vmatprep.subr.bf16.mxu0 0
        %797 = vmatpush1.bf16.msra.mxu0 %v760
        %798 = vmatprep.subr.bf16.mxu0 0
        %799 = vmatpush1.bf16.msra.mxu0 %v761
        %800 = vmatprep.subr.bf16.mxu0 0
        %801 = vmatpush1.bf16.msra.mxu0 %v762
        %802 = vmatprep.subr.bf16.mxu0 0
        %803 = vmatpush1.bf16.msra.mxu0 %v763
        %804 = vmatprep.subr.bf16.mxu0 0
        %805 = vmatpush1.bf16.msra.mxu0 %v764
        %806 = vmatprep.subr.bf16.mxu0 0
        %807 = vmatpush1.bf16.msra.mxu0 %v765
        %808 = vmatprep.subr.bf16.mxu0 0
        %809 = vmatpush1.bf16.msra.mxu0 %v766
        %810 = vmatprep.subr.bf16.mxu0 0
        %811 = vmatpush1.bf16.msra.mxu0 %v767
        %812 = vmatprep.subr.bf16.mxu0 0
        %813 = vmatpush1.bf16.msra.mxu0 %v768
        %814 = vmatprep.subr.bf16.mxu0 0
        %815 = vmatpush1.bf16.msra.mxu0 %v769
        %816 = vmatprep.subr.bf16.mxu0 0
        %817 = vmatpush1.bf16.msra.mxu0 %v770
        %818 = vmatprep.subr.bf16.mxu0 0
        %819 = vmatpush1.bf16.msra.mxu0 %v771
        %820 = vmatprep.mubr.bf16.mxu0 %v629
        %821 = vmatmul.mubr.bf16.gmra.mrb[0].mxu0 %v628
        %v822 = vpop.f32.mrb[0].mxu0
        %v823 = vadd.f32 0.0, %v822
        %v824 = vpop.f32.mrb[0].mxu0
        %v825 = vpop.f32.mrb[0].mxu0
        %v826 = vadd.f32 0.0, %v825
        %v827 = vpop.f32.mrb[0].mxu0
        %828 = vmatprep.mubr.bf16.mxu0 %v631
        %829 = vmatmul.mubr.bf16.gmra.mrb[0].mxu0 %v630
        %v830 = vpop.f32.mrb[0].mxu0
        %v831 = vadd.f32 0.0, %v830
        %v832 = vpop.f32.mrb[0].mxu0
        %v833 = vpop.f32.mrb[0].mxu0
        %v834 = vadd.f32 0.0, %v833
        %v835 = vpop.f32.mrb[0].mxu0
        %836 = vmatprep.mubr.bf16.mxu0 %v633
        %837 = vmatmul.mubr.bf16.gmra.mrb[0].mxu0 %v632
        %v838 = vpop.f32.mrb[0].mxu0
        %v839 = vadd.f32 0.0, %v838
        %v840 = vpop.f32.mrb[0].mxu0
        %v841 = vpop.f32.mrb[0].mxu0
        %v842 = vadd.f32 0.0, %v841
        %v843 = vpop.f32.mrb[0].mxu0
        %844 = vmatprep.mubr.bf16.mxu0 %v635
        %845 = vmatmul.mubr.bf16.gmra.mrb[0].mxu0 %v634
        %v846 = vpop.f32.mrb[0].mxu0
        %v847 = vadd.f32 0.0, %v846
        %v848 = vpop.f32.mrb[0].mxu0
        %v849 = vpop.f32.mrb[0].mxu0
        %v850 = vadd.f32 0.0, %v849
        %v851 = vpop.f32.mrb[0].mxu0
        %852 = vmatprep.mubr.bf16.mxu0 %v637
        %853 = vmatmul.mubr.bf16.gmra.mrb[0].mxu0 %v636
        %v854 = vpop.f32.mrb[0].mxu0
        %v855 = vadd.f32 0.0, %v854
        %v856 = vpop.f32.mrb[0].mxu0
        %v857 = vpop.f32.mrb[0].mxu0
        %v858 = vadd.f32 0.0, %v857
        %v859 = vpop.f32.mrb[0].mxu0
        %860 = vmatprep.mubr.bf16.mxu0 %v639
        %861 = vmatmul.mubr.bf16.gmra.mrb[0].mxu0 %v638
        %v862 = vpop.f32.mrb[0].mxu0
        %v863 = vadd.f32 0.0, %v862
        %v864 = vpop.f32.mrb[0].mxu0
        %v865 = vpop.f32.mrb[0].mxu0
        %v866 = vadd.f32 0.0, %v865
        %v867 = vpop.f32.mrb[0].mxu0
        %868 = vmatprep.mubr.bf16.mxu0 %v641
        %869 = vmatmul.mubr.bf16.gmra.mrb[0].mxu0 %v640
        %v870 = vpop.f32.mrb[0].mxu0
        %v871 = vadd.f32 0.0, %v870
        %v872 = vpop.f32.mrb[0].mxu0
        %v873 = vpop.f32.mrb[0].mxu0
        %v874 = vadd.f32 0.0, %v873
        %v875 = vpop.f32.mrb[0].mxu0
        %876 = vmatprep.mubr.bf16.mxu0 %v643
        %877 = vmatmul.mubr.bf16.gmra.mrb[0].mxu0 %v642
        %v878 = vpop.f32.mrb[0].mxu0
        %v879 = vadd.f32 0.0, %v878
        %v880 = vpop.f32.mrb[0].mxu0
        %v881 = vpop.f32.mrb[0].mxu0
        %v882 = vadd.f32 0.0, %v881
        %v883 = vpop.f32.mrb[0].mxu0
        %884 = vmatprep.mubr.bf16.mxu0 %v645
        %885 = vmatmul.mubr.bf16.gmra.mrb[0].mxu0 %v644
        %v886 = vpop.f32.mrb[0].mxu0
        %v887 = vadd.f32 0.0, %v886
        %v888 = vpop.f32.mrb[0].mxu0
        %v889 = vpop.f32.mrb[0].mxu0
        %v890 = vadd.f32 0.0, %v889
        %v891 = vpop.f32.mrb[0].mxu0
        %892 = vmatprep.mubr.bf16.mxu0 %v647
        %893 = vmatmul.mubr.bf16.gmra.mrb[0].mxu0 %v646
        %v894 = vpop.f32.mrb[0].mxu0
        %v895 = vadd.f32 0.0, %v894
        %v896 = vpop.f32.mrb[0].mxu0
        %v897 = vpop.f32.mrb[0].mxu0
        %v898 = vadd.f32 0.0, %v897
        %v899 = vpop.f32.mrb[0].mxu0
        %900 = vmatprep.mubr.bf16.mxu0 %v649
        %901 = vmatmul.mubr.bf16.gmra.mrb[0].mxu0 %v648
        %v902 = vpop.f32.mrb[0].mxu0
        %v903 = vadd.f32 0.0, %v902
        %v904 = vpop.f32.mrb[0].mxu0
        %v905 = vpop.f32.mrb[0].mxu0
        %v906 = vadd.f32 0.0, %v905
        %v907 = vpop.f32.mrb[0].mxu0
        %908 = vmatprep.mubr.bf16.mxu0 %v651
        %909 = vmatmul.mubr.bf16.gmra.mrb[0].mxu0 %v650
        %v910 = vpop.f32.mrb[0].mxu0
        %v911 = vadd.f32 0.0, %v910
        %v912 = vpop.f32.mrb[0].mxu0
        %v913 = vpop.f32.mrb[0].mxu0
        %v914 = vadd.f32 0.0, %v913
        %v915 = vpop.f32.mrb[0].mxu0
        %916 = vmatprep.mubr.bf16.mxu0 %v653
        %917 = vmatmul.mubr.bf16.gmra.mrb[0].mxu0 %v652
        %v918 = vpop.f32.mrb[0].mxu0
        %v919 = vadd.f32 0.0, %v918
        %v920 = vpop.f32.mrb[0].mxu0
        %v921 = vpop.f32.mrb[0].mxu0
        %v922 = vadd.f32 0.0, %v921
        %v923 = vpop.f32.mrb[0].mxu0
        %924 = vmatprep.mubr.bf16.mxu0 %v655
        %925 = vmatmul.mubr.bf16.gmra.mrb[0].mxu0 %v654
        %v926 = vpop.f32.mrb[0].mxu0
        %v927 = vadd.f32 0.0, %v926
        %v928 = vpop.f32.mrb[0].mxu0
        %v929 = vpop.f32.mrb[0].mxu0
        %v930 = vadd.f32 0.0, %v929
        %v931 = vpop.f32.mrb[0].mxu0
        %932 = vmatprep.mubr.bf16.mxu0 %v657
        %933 = vmatmul.mubr.bf16.gmra.mrb[0].mxu0 %v656
        %v934 = vpop.f32.mrb[0].mxu0
        %v935 = vadd.f32 0.0, %v934
        %v936 = vpop.f32.mrb[0].mxu0
        %v937 = vpop.f32.mrb[0].mxu0
        %v938 = vadd.f32 0.0, %v937
        %v939 = vpop.f32.mrb[0].mxu0
        %940 = vmatprep.mubr.bf16.mxu0 %v659
        %941 = vmatmul.mubr.bf16.gmra.mrb[0].mxu0 %v658
        %v942 = vpop.f32.mrb[0].mxu0
        %v943 = vadd.f32 0.0, %v942
        %v944 = vpop.f32.mrb[0].mxu0
        %v945 = vpop.f32.mrb[0].mxu0
        %v946 = vadd.f32 0.0, %v945
        %v947 = vpop.f32.mrb[0].mxu0
        %948 = vdwg.mxu0
        %v949 = vadd.f32 %v436, %v823
        %v950 = vadd.f32 %v437, %v826
        %v951 = vadd.f32 %v438, %v831
        %v952 = vadd.f32 %v439, %v834
        %v953 = vadd.f32 %v440, %v839
        %v954 = vadd.f32 %v441, %v842
        %v955 = vadd.f32 %v442, %v847
        %v956 = vadd.f32 %v443, %v850
        %v957 = vadd.f32 %v444, %v855
        %v958 = vadd.f32 %v445, %v858
        %v959 = vadd.f32 %v446, %v863
        %v960 = vadd.f32 %v447, %v866
        %v961 = vadd.f32 %v448, %v871
        %v962 = vadd.f32 %v449, %v874
        %v963 = vadd.f32 %v450, %v879
        %v964 = vadd.f32 %v451, %v882
        %v965 = vadd.f32 %v452, %v887
        %v966 = vadd.f32 %v453, %v890
        %v967 = vadd.f32 %v454, %v895
        %v968 = vadd.f32 %v455, %v898
        %v969 = vadd.f32 %v456, %v903
        %v970 = vadd.f32 %v457, %v906
        %v971 = vadd.f32 %v458, %v911
        %v972 = vadd.f32 %v459, %v914
        %v973 = vadd.f32 %v460, %v919
        %v974 = vadd.f32 %v461, %v922
        %v975 = vadd.f32 %v462, %v927
        %v976 = vadd.f32 %v463, %v930
        %v977 = vadd.f32 %v464, %v935
        %v978 = vadd.f32 %v465, %v938
        %v979 = vadd.f32 %v466, %v943
        %v980 = vadd.f32 %v467, %v946
        %981 = vst [vmem:[#allocation2] sm:$0xff] %v949
        %982 = vst [vmem:[#allocation2 + $0x8] sm:$0xff] %v950
        %983 = vst [vmem:[#allocation2 + $0x10] sm:$0xff] %v951
        %984 = vst [vmem:[#allocation2 + $0x18] sm:$0xff] %v952
        %985 = vst [vmem:[#allocation2 + $0x20] sm:$0xff] %v953
        %986 = vst [vmem:[#allocation2 + $0x28] sm:$0xff] %v954
        %987 = vst [vmem:[#allocation2 + $0x30] sm:$0xff] %v955
        %988 = vst [vmem:[#allocation2 + $0x38] sm:$0xff] %v956
        %989 = vst [vmem:[#allocation2 + $0x40] sm:$0xff] %v957
        %990 = vst [vmem:[#allocation2 + $0x48] sm:$0xff] %v958
        %991 = vst [vmem:[#allocation2 + $0x50] sm:$0xff] %v959
        %992 = vst [vmem:[#allocation2 + $0x58] sm:$0xff] %v960
        %993 = vst [vmem:[#allocation2 + $0x60] sm:$0xff] %v961
        %994 = vst [vmem:[#allocation2 + $0x68] sm:$0xff] %v962
        %995 = vst [vmem:[#allocation2 + $0x70] sm:$0xff] %v963
        %996 = vst [vmem:[#allocation2 + $0x78] sm:$0xff] %v964
        %997 = vst [vmem:[#allocation2 + $0x80] sm:$0xff] %v965
        %998 = vst [vmem:[#allocation2 + $0x88] sm:$0xff] %v966
        %999 = vst [vmem:[#allocation2 + $0x90] sm:$0xff] %v967
        %1000 = vst [vmem:[#allocation2 + $0x98] sm:$0xff] %v968
        %1001 = vst [vmem:[#allocation2 + $0xa0] sm:$0xff] %v969
        %1002 = vst [vmem:[#allocation2 + $0xa8] sm:$0xff] %v970
        %1003 = vst [vmem:[#allocation2 + $0xb0] sm:$0xff] %v971
        %1004 = vst [vmem:[#allocation2 + $0xb8] sm:$0xff] %v972
        %1005 = vst [vmem:[#allocation2 + $0xc0] sm:$0xff] %v973
        %1006 = vst [vmem:[#allocation2 + $0xc8] sm:$0xff] %v974
        %1007 = vst [vmem:[#allocation2 + $0xd0] sm:$0xff] %v975
        %1008 = vst [vmem:[#allocation2 + $0xd8] sm:$0xff] %v976
        %1009 = vst [vmem:[#allocation2 + $0xe0] sm:$0xff] %v977
        %1010 = vst [vmem:[#allocation2 + $0xe8] sm:$0xff] %v978
        %1011 = vst [vmem:[#allocation2 + $0xf0] sm:$0xff] %v979
        %1012 = vst [vmem:[#allocation2 + $0xf8] sm:$0xff] %v980
        %p1013 = scmp.eq.s32.totalorder %s20, 1
        // Predicated region
        $region79: #{gcn_forward.4} parent=69 // pred_check
          %p1014 = pneg %p1013
        $region80: #{gcn_forward.4} parent=69 // pred_check_branch
          %1016 = sbr.rel (%p1014) target = $region82
        $region81: #{gcn_forward.4} parent=69 // pred_region
          %v1017 = vld [vmem:[#allocation2] sm:$0xff]
          %v1018 = vld [vmem:[#allocation2 + $0x8] sm:$0xff]
          %v1019 = vld [vmem:[#allocation2 + $0x10] sm:$0xff]
          %v1020 = vld [vmem:[#allocation2 + $0x18] sm:$0xff]
          %v1021 = vld [vmem:[#allocation2 + $0x20] sm:$0xff]
          %v1022 = vld [vmem:[#allocation2 + $0x28] sm:$0xff]
          %v1023 = vld [vmem:[#allocation2 + $0x30] sm:$0xff]
          %v1024 = vld [vmem:[#allocation2 + $0x38] sm:$0xff]
          %v1025 = vld [vmem:[#allocation2 + $0x40] sm:$0xff]
          %v1026 = vld [vmem:[#allocation2 + $0x48] sm:$0xff]
          %v1027 = vld [vmem:[#allocation2 + $0x50] sm:$0xff]
          %v1028 = vld [vmem:[#allocation2 + $0x58] sm:$0xff]
          %v1029 = vld [vmem:[#allocation2 + $0x60] sm:$0xff]
          %v1030 = vld [vmem:[#allocation2 + $0x68] sm:$0xff]
          %v1031 = vld [vmem:[#allocation2 + $0x70] sm:$0xff]
          %v1032 = vld [vmem:[#allocation2 + $0x78] sm:$0xff]
          %v1033 = vld [vmem:[#allocation2 + $0x80] sm:$0xff]
          %v1034 = vld [vmem:[#allocation2 + $0x88] sm:$0xff]
          %v1035 = vld [vmem:[#allocation2 + $0x90] sm:$0xff]
          %v1036 = vld [vmem:[#allocation2 + $0x98] sm:$0xff]
          %v1037 = vld [vmem:[#allocation2 + $0xa0] sm:$0xff]
          %v1038 = vld [vmem:[#allocation2 + $0xa8] sm:$0xff]
          %v1039 = vld [vmem:[#allocation2 + $0xb0] sm:$0xff]
          %v1040 = vld [vmem:[#allocation2 + $0xb8] sm:$0xff]
          %v1041 = vld [vmem:[#allocation2 + $0xc0] sm:$0xff]
          %v1042 = vld [vmem:[#allocation2 + $0xc8] sm:$0xff]
          %v1043 = vld [vmem:[#allocation2 + $0xd0] sm:$0xff]
          %v1044 = vld [vmem:[#allocation2 + $0xd8] sm:$0xff]
          %v1045 = vld [vmem:[#allocation2 + $0xe0] sm:$0xff]
          %v1046 = vld [vmem:[#allocation2 + $0xe8] sm:$0xff]
          %v1047 = vld [vmem:[#allocation2 + $0xf0] sm:$0xff]
          %v1048 = vld [vmem:[#allocation2 + $0xf8] sm:$0xff]
          %v1049 = vld [vmem:[%s2] sm:$0x1]
          %v1051 = vlaneseq
          %v1052 = vshrl.u32 %v1051, 7
          %v1053 = vsub.s32 0, %v1052
          %v1054 = vrot.slane %v1049, %v1053
          %v1056 = vadd.f32 %v1017, %v1054
          %v1057 = vadd.f32 %v1018, %v1054
          %v1058 = vadd.f32 %v1019, %v1054
          %v1059 = vadd.f32 %v1020, %v1054
          %v1060 = vadd.f32 %v1021, %v1054
          %v1061 = vadd.f32 %v1022, %v1054
          %v1062 = vadd.f32 %v1023, %v1054
          %v1063 = vadd.f32 %v1024, %v1054
          %v1064 = vadd.f32 %v1025, %v1054
          %v1065 = vadd.f32 %v1026, %v1054
          %v1066 = vadd.f32 %v1027, %v1054
          %v1067 = vadd.f32 %v1028, %v1054
          %v1068 = vadd.f32 %v1029, %v1054
          %v1069 = vadd.f32 %v1030, %v1054
          %v1070 = vadd.f32 %v1031, %v1054
          %v1071 = vadd.f32 %v1032, %v1054
          %v1072 = vadd.f32 %v1033, %v1054
          %v1073 = vadd.f32 %v1034, %v1054
          %v1074 = vadd.f32 %v1035, %v1054
          %v1075 = vadd.f32 %v1036, %v1054
          %v1076 = vadd.f32 %v1037, %v1054
          %v1077 = vadd.f32 %v1038, %v1054
          %v1078 = vadd.f32 %v1039, %v1054
          %v1079 = vadd.f32 %v1040, %v1054
          %v1080 = vadd.f32 %v1041, %v1054
          %v1081 = vadd.f32 %v1042, %v1054
          %v1082 = vadd.f32 %v1043, %v1054
          %v1083 = vadd.f32 %v1044, %v1054
          %v1084 = vadd.f32 %v1045, %v1054
          %v1085 = vadd.f32 %v1046, %v1054
          %v1086 = vadd.f32 %v1047, %v1054
          %v1087 = vadd.f32 %v1048, %v1054
          %v1088 = vmax.f32 %v1056, 0.0
          %v1089 = vmax.f32 %v1057, 0.0
          %v1090 = vmax.f32 %v1058, 0.0
          %v1091 = vmax.f32 %v1059, 0.0
          %v1092 = vmax.f32 %v1060, 0.0
          %v1093 = vmax.f32 %v1061, 0.0
          %v1094 = vmax.f32 %v1062, 0.0
          %v1095 = vmax.f32 %v1063, 0.0
          %v1096 = vmax.f32 %v1064, 0.0
          %v1097 = vmax.f32 %v1065, 0.0
          %v1098 = vmax.f32 %v1066, 0.0
          %v1099 = vmax.f32 %v1067, 0.0
          %v1100 = vmax.f32 %v1068, 0.0
          %v1101 = vmax.f32 %v1069, 0.0
          %v1102 = vmax.f32 %v1070, 0.0
          %v1103 = vmax.f32 %v1071, 0.0
          %v1104 = vmax.f32 %v1072, 0.0
          %v1105 = vmax.f32 %v1073, 0.0
          %v1106 = vmax.f32 %v1074, 0.0
          %v1107 = vmax.f32 %v1075, 0.0
          %v1108 = vmax.f32 %v1076, 0.0
          %v1109 = vmax.f32 %v1077, 0.0
          %v1110 = vmax.f32 %v1078, 0.0
          %v1111 = vmax.f32 %v1079, 0.0
          %v1112 = vmax.f32 %v1080, 0.0
          %v1113 = vmax.f32 %v1081, 0.0
          %v1114 = vmax.f32 %v1082, 0.0
          %v1115 = vmax.f32 %v1083, 0.0
          %v1116 = vmax.f32 %v1084, 0.0
          %v1117 = vmax.f32 %v1085, 0.0
          %v1118 = vmax.f32 %v1086, 0.0
          %v1119 = vmax.f32 %v1087, 0.0
          %v1120 = vpack.c.bf16 %v1089, %v1088
          %v1121 = vpack.c.bf16 %v1091, %v1090
          %v1122 = vpack.c.bf16 %v1093, %v1092
          %v1123 = vpack.c.bf16 %v1095, %v1094
          %v1124 = vpack.c.bf16 %v1097, %v1096
          %v1125 = vpack.c.bf16 %v1099, %v1098
          %v1126 = vpack.c.bf16 %v1101, %v1100
          %v1127 = vpack.c.bf16 %v1103, %v1102
          %v1128 = vpack.c.bf16 %v1105, %v1104
          %v1129 = vpack.c.bf16 %v1107, %v1106
          %v1130 = vpack.c.bf16 %v1109, %v1108
          %v1131 = vpack.c.bf16 %v1111, %v1110
          %v1132 = vpack.c.bf16 %v1113, %v1112
          %v1133 = vpack.c.bf16 %v1115, %v1114
          %v1134 = vpack.c.bf16 %v1117, %v1116
          %v1135 = vpack.c.bf16 %v1119, %v1118
          %v1136 = vld [vmem:[%s3] sm:$0xf]
          %v1137 = vld [vmem:[%s3 + $0x4] sm:$0xf]
          %v1138 = vld [vmem:[%s3 + $0x8] sm:$0xf]
          %v1139 = vld [vmem:[%s3 + $0xc] sm:$0xf]
          %v1140 = vld [vmem:[%s3 + $0x10] sm:$0xf]
          %v1141 = vld [vmem:[%s3 + $0x14] sm:$0xf]
          %v1142 = vld [vmem:[%s3 + $0x18] sm:$0xf]
          %v1143 = vld [vmem:[%s3 + $0x1c] sm:$0xf]
          %v1144 = vld [vmem:[%s3 + $0x20] sm:$0xf]
          %v1145 = vld [vmem:[%s3 + $0x24] sm:$0xf]
          %v1146 = vld [vmem:[%s3 + $0x28] sm:$0xf]
          %v1147 = vld [vmem:[%s3 + $0x2c] sm:$0xf]
          %v1148 = vld [vmem:[%s3 + $0x30] sm:$0xf]
          %v1149 = vld [vmem:[%s3 + $0x34] sm:$0xf]
          %v1150 = vld [vmem:[%s3 + $0x38] sm:$0xf]
          %v1151 = vld [vmem:[%s3 + $0x3c] sm:$0xf]
          %v1168 = vunpack.c.l.b16 %v1136
          %v1169 = vunpack.c.l.b16 %v1137
          %v1170 = vunpack.c.l.b16 %v1138
          %v1171 = vunpack.c.l.b16 %v1139
          %v1172 = vunpack.c.l.b16 %v1140
          %v1173 = vunpack.c.l.b16 %v1141
          %v1174 = vunpack.c.l.b16 %v1142
          %v1175 = vunpack.c.l.b16 %v1143
          %v1176 = vunpack.c.l.b16 %v1144
          %v1177 = vunpack.c.l.b16 %v1145
          %v1178 = vunpack.c.l.b16 %v1146
          %v1179 = vunpack.c.l.b16 %v1147
          %v1180 = vunpack.c.l.b16 %v1148
          %v1181 = vunpack.c.l.b16 %v1149
          %v1182 = vunpack.c.l.b16 %v1150
          %v1183 = vunpack.c.l.b16 %v1151
          %v1184 = vpack.c.b16 %v1169, %v1168
          %v1185 = vpack.c.b16 %v1171, %v1170
          %v1186 = vpack.c.b16 %v1173, %v1172
          %v1187 = vpack.c.b16 %v1175, %v1174
          %v1188 = vpack.c.b16 %v1177, %v1176
          %v1189 = vpack.c.b16 %v1179, %v1178
          %v1190 = vpack.c.b16 %v1181, %v1180
          %v1191 = vpack.c.b16 %v1183, %v1182
          %1200 = vmatprep.subr.bf16.mxu0 0
          %1201 = vmatpush1.bf16.msra.mxu0 %v1184
          %1202 = vmatprep.subr.bf16.mxu0 0
          %1203 = vmatpush1.bf16.msra.mxu0 %v1185
          %1204 = vmatprep.subr.bf16.mxu0 0
          %1205 = vmatpush1.bf16.msra.mxu0 %v1186
          %1206 = vmatprep.subr.bf16.mxu0 0
          %1207 = vmatpush1.bf16.msra.mxu0 %v1187
          %1208 = vmatprep.subr.bf16.mxu0 0
          %1209 = vmatpush1.bf16.msra.mxu0 %v1188
          %1210 = vmatprep.subr.bf16.mxu0 0
          %1211 = vmatpush1.bf16.msra.mxu0 %v1189
          %1212 = vmatprep.subr.bf16.mxu0 0
          %1213 = vmatpush1.bf16.msra.mxu0 %v1190
          %1214 = vmatprep.subr.bf16.mxu0 0
          %1215 = vmatpush1.bf16.msra.mxu0 %v1191
          %1216 = vmatprep.subr.bf16.mxu0 0
          %1217 = vmatpush1.bf16.msra.mxu0 0
          %1218 = vmatprep.subr.bf16.mxu0 0
          %1219 = vmatpush1.bf16.msra.mxu0 0
          %1220 = vmatprep.subr.bf16.mxu0 0
          %1221 = vmatpush1.bf16.msra.mxu0 0
          %1222 = vmatprep.subr.bf16.mxu0 0
          %1223 = vmatpush1.bf16.msra.mxu0 0
          %1224 = vmatprep.subr.bf16.mxu0 0
          %1225 = vmatpush1.bf16.msra.mxu0 0
          %1226 = vmatprep.subr.bf16.mxu0 0
          %1227 = vmatpush1.bf16.msra.mxu0 0
          %1228 = vmatprep.subr.bf16.mxu0 0
          %1229 = vmatpush1.bf16.msra.mxu0 0
          %1230 = vmatprep.subr.bf16.mxu0 0
          %1231 = vmatpush1.bf16.msra.mxu0 0
          %1232 = vmatprep.mubr.bf16.mxu0 0
          %1233 = vmatmul.mubr.bf16.gmra.mrb[0].mxu0 %v1120
          %v1234 = vpop.f32.mrb[0].mxu0
          %v1235 = vadd.f32 0.0, %v1234
          %v1236 = vpop.f32.mrb[0].mxu0
          %v1237 = vpop.f32.mrb[0].mxu0
          %v1238 = vadd.f32 0.0, %v1237
          %v1239 = vpop.f32.mrb[0].mxu0
          %1240 = vmatprep.mubr.bf16.mxu0 0
          %1241 = vmatmul.mubr.bf16.gmra.mrb[0].mxu0 %v1121
          %v1242 = vpop.f32.mrb[0].mxu0
          %v1243 = vadd.f32 0.0, %v1242
          %v1244 = vpop.f32.mrb[0].mxu0
          %v1245 = vpop.f32.mrb[0].mxu0
          %v1246 = vadd.f32 0.0, %v1245
          %v1247 = vpop.f32.mrb[0].mxu0
          %1248 = vmatprep.mubr.bf16.mxu0 0
          %1249 = vmatmul.mubr.bf16.gmra.mrb[0].mxu0 %v1122
          %v1250 = vpop.f32.mrb[0].mxu0
          %v1251 = vadd.f32 0.0, %v1250
          %v1252 = vpop.f32.mrb[0].mxu0
          %v1253 = vpop.f32.mrb[0].mxu0
          %v1254 = vadd.f32 0.0, %v1253
          %v1255 = vpop.f32.mrb[0].mxu0
          %1256 = vmatprep.mubr.bf16.mxu0 0
          %1257 = vmatmul.mubr.bf16.gmra.mrb[0].mxu0 %v1123
          %v1258 = vpop.f32.mrb[0].mxu0
          %v1259 = vadd.f32 0.0, %v1258
          %v1260 = vpop.f32.mrb[0].mxu0
          %v1261 = vpop.f32.mrb[0].mxu0
          %v1262 = vadd.f32 0.0, %v1261
          %v1263 = vpop.f32.mrb[0].mxu0
          %1264 = vmatprep.mubr.bf16.mxu0 0
          %1265 = vmatmul.mubr.bf16.gmra.mrb[0].mxu0 %v1124
          %v1266 = vpop.f32.mrb[0].mxu0
          %v1267 = vadd.f32 0.0, %v1266
          %v1268 = vpop.f32.mrb[0].mxu0
          %v1269 = vpop.f32.mrb[0].mxu0
          %v1270 = vadd.f32 0.0, %v1269
          %v1271 = vpop.f32.mrb[0].mxu0
          %1272 = vmatprep.mubr.bf16.mxu0 0
          %1273 = vmatmul.mubr.bf16.gmra.mrb[0].mxu0 %v1125
          %v1274 = vpop.f32.mrb[0].mxu0
          %v1275 = vadd.f32 0.0, %v1274
          %v1276 = vpop.f32.mrb[0].mxu0
          %v1277 = vpop.f32.mrb[0].mxu0
          %v1278 = vadd.f32 0.0, %v1277
          %v1279 = vpop.f32.mrb[0].mxu0
          %1280 = vmatprep.mubr.bf16.mxu0 0
          %1281 = vmatmul.mubr.bf16.gmra.mrb[0].mxu0 %v1126
          %v1282 = vpop.f32.mrb[0].mxu0
          %v1283 = vadd.f32 0.0, %v1282
          %v1284 = vpop.f32.mrb[0].mxu0
          %v1285 = vpop.f32.mrb[0].mxu0
          %v1286 = vadd.f32 0.0, %v1285
          %v1287 = vpop.f32.mrb[0].mxu0
          %1288 = vmatprep.mubr.bf16.mxu0 0
          %1289 = vmatmul.mubr.bf16.gmra.mrb[0].mxu0 %v1127
          %v1290 = vpop.f32.mrb[0].mxu0
          %v1291 = vadd.f32 0.0, %v1290
          %v1292 = vpop.f32.mrb[0].mxu0
          %v1293 = vpop.f32.mrb[0].mxu0
          %v1294 = vadd.f32 0.0, %v1293
          %v1295 = vpop.f32.mrb[0].mxu0
          %1296 = vmatprep.mubr.bf16.mxu0 0
          %1297 = vmatmul.mubr.bf16.gmra.mrb[0].mxu0 %v1128
          %v1298 = vpop.f32.mrb[0].mxu0
          %v1299 = vadd.f32 0.0, %v1298
          %v1300 = vpop.f32.mrb[0].mxu0
          %v1301 = vpop.f32.mrb[0].mxu0
          %v1302 = vadd.f32 0.0, %v1301
          %v1303 = vpop.f32.mrb[0].mxu0
          %1304 = vmatprep.mubr.bf16.mxu0 0
          %1305 = vmatmul.mubr.bf16.gmra.mrb[0].mxu0 %v1129
          %v1306 = vpop.f32.mrb[0].mxu0
          %v1307 = vadd.f32 0.0, %v1306
          %v1308 = vpop.f32.mrb[0].mxu0
          %v1309 = vpop.f32.mrb[0].mxu0
          %v1310 = vadd.f32 0.0, %v1309
          %v1311 = vpop.f32.mrb[0].mxu0
          %1312 = vmatprep.mubr.bf16.mxu0 0
          %1313 = vmatmul.mubr.bf16.gmra.mrb[0].mxu0 %v1130
          %v1314 = vpop.f32.mrb[0].mxu0
          %v1315 = vadd.f32 0.0, %v1314
          %v1316 = vpop.f32.mrb[0].mxu0
          %v1317 = vpop.f32.mrb[0].mxu0
          %v1318 = vadd.f32 0.0, %v1317
          %v1319 = vpop.f32.mrb[0].mxu0
          %1320 = vmatprep.mubr.bf16.mxu0 0
          %1321 = vmatmul.mubr.bf16.gmra.mrb[0].mxu0 %v1131
          %v1322 = vpop.f32.mrb[0].mxu0
          %v1323 = vadd.f32 0.0, %v1322
          %v1324 = vpop.f32.mrb[0].mxu0
          %v1325 = vpop.f32.mrb[0].mxu0
          %v1326 = vadd.f32 0.0, %v1325
          %v1327 = vpop.f32.mrb[0].mxu0
          %1328 = vmatprep.mubr.bf16.mxu0 0
          %1329 = vmatmul.mubr.bf16.gmra.mrb[0].mxu0 %v1132
          %v1330 = vpop.f32.mrb[0].mxu0
          %v1331 = vadd.f32 0.0, %v1330
          %v1332 = vpop.f32.mrb[0].mxu0
          %v1333 = vpop.f32.mrb[0].mxu0
          %v1334 = vadd.f32 0.0, %v1333
          %v1335 = vpop.f32.mrb[0].mxu0
          %1336 = vmatprep.mubr.bf16.mxu0 0
          %1337 = vmatmul.mubr.bf16.gmra.mrb[0].mxu0 %v1133
          %v1338 = vpop.f32.mrb[0].mxu0
          %v1339 = vadd.f32 0.0, %v1338
          %v1340 = vpop.f32.mrb[0].mxu0
          %v1341 = vpop.f32.mrb[0].mxu0
          %v1342 = vadd.f32 0.0, %v1341
          %v1343 = vpop.f32.mrb[0].mxu0
          %1344 = vmatprep.mubr.bf16.mxu0 0
          %1345 = vmatmul.mubr.bf16.gmra.mrb[0].mxu0 %v1134
          %v1346 = vpop.f32.mrb[0].mxu0
          %v1347 = vadd.f32 0.0, %v1346
          %v1348 = vpop.f32.mrb[0].mxu0
          %v1349 = vpop.f32.mrb[0].mxu0
          %v1350 = vadd.f32 0.0, %v1349
          %v1351 = vpop.f32.mrb[0].mxu0
          %1352 = vmatprep.mubr.bf16.mxu0 0
          %1353 = vmatmul.mubr.bf16.gmra.mrb[0].mxu0 %v1135
          %v1354 = vpop.f32.mrb[0].mxu0
          %v1355 = vadd.f32 0.0, %v1354
          %v1356 = vpop.f32.mrb[0].mxu0
          %v1357 = vpop.f32.mrb[0].mxu0
          %v1358 = vadd.f32 0.0, %v1357
          %v1359 = vpop.f32.mrb[0].mxu0
          %1360 = vdwg.mxu0
          %v1361 = vpack.c.bf16 %v1238, %v1235
          %v1362 = vpack.c.bf16 %v1246, %v1243
          %v1363 = vpack.c.bf16 %v1254, %v1251
          %v1364 = vpack.c.bf16 %v1262, %v1259
          %v1365 = vpack.c.bf16 %v1270, %v1267
          %v1366 = vpack.c.bf16 %v1278, %v1275
          %v1367 = vpack.c.bf16 %v1286, %v1283
          %v1368 = vpack.c.bf16 %v1294, %v1291
          %v1369 = vpack.c.bf16 %v1302, %v1299
          %v1370 = vpack.c.bf16 %v1310, %v1307
          %v1371 = vpack.c.bf16 %v1318, %v1315
          %v1372 = vpack.c.bf16 %v1326, %v1323
          %v1373 = vpack.c.bf16 %v1334, %v1331
          %v1374 = vpack.c.bf16 %v1342, %v1339
          %v1375 = vpack.c.bf16 %v1350, %v1347
          %v1376 = vpack.c.bf16 %v1358, %v1355
          %v1393 = vunpack.c.l.b16 %v1361
          %v1394 = vunpack.c.h.b16 %v1361
          %v1395 = vunpack.c.l.b16 %v1362
          %v1396 = vunpack.c.h.b16 %v1362
          %v1397 = vunpack.c.l.b16 %v1363
          %v1398 = vunpack.c.h.b16 %v1363
          %v1399 = vunpack.c.l.b16 %v1364
          %v1400 = vunpack.c.h.b16 %v1364
          %v1401 = vunpack.c.l.b16 %v1365
          %v1402 = vunpack.c.h.b16 %v1365
          %v1403 = vunpack.c.l.b16 %v1366
          %v1404 = vunpack.c.h.b16 %v1366
          %v1405 = vunpack.c.l.b16 %v1367
          %v1406 = vunpack.c.h.b16 %v1367
          %v1407 = vunpack.c.l.b16 %v1368
          %v1408 = vunpack.c.h.b16 %v1368
          %v1409 = vunpack.c.l.b16 %v1369
          %v1410 = vunpack.c.h.b16 %v1369
          %v1411 = vunpack.c.l.b16 %v1370
          %v1412 = vunpack.c.h.b16 %v1370
          %v1413 = vunpack.c.l.b16 %v1371
          %v1414 = vunpack.c.h.b16 %v1371
          %v1415 = vunpack.c.l.b16 %v1372
          %v1416 = vunpack.c.h.b16 %v1372
          %v1417 = vunpack.c.l.b16 %v1373
          %v1418 = vunpack.c.h.b16 %v1373
          %v1419 = vunpack.c.l.b16 %v1374
          %v1420 = vunpack.c.h.b16 %v1374
          %v1421 = vunpack.c.l.b16 %v1375
          %v1422 = vunpack.c.h.b16 %v1375
          %v1423 = vunpack.c.l.b16 %v1376
          %v1424 = vunpack.c.h.b16 %v1376
          %v1425 = vpack.c.b16 %v1393, %v1393
          %v1426 = vpack.c.b16 %v1394, %v1394
          %v1427 = vpack.c.b16 %v1395, %v1395
          %v1428 = vpack.c.b16 %v1396, %v1396
          %v1429 = vpack.c.b16 %v1397, %v1397
          %v1430 = vpack.c.b16 %v1398, %v1398
          %v1431 = vpack.c.b16 %v1399, %v1399
          %v1432 = vpack.c.b16 %v1400, %v1400
          %v1433 = vpack.c.b16 %v1401, %v1401
          %v1434 = vpack.c.b16 %v1402, %v1402
          %v1435 = vpack.c.b16 %v1403, %v1403
          %v1436 = vpack.c.b16 %v1404, %v1404
          %v1437 = vpack.c.b16 %v1405, %v1405
          %v1438 = vpack.c.b16 %v1406, %v1406
          %v1439 = vpack.c.b16 %v1407, %v1407
          %v1440 = vpack.c.b16 %v1408, %v1408
          %v1441 = vpack.c.b16 %v1409, %v1409
          %v1442 = vpack.c.b16 %v1410, %v1410
          %v1443 = vpack.c.b16 %v1411, %v1411
          %v1444 = vpack.c.b16 %v1412, %v1412
          %v1445 = vpack.c.b16 %v1413, %v1413
          %v1446 = vpack.c.b16 %v1414, %v1414
          %v1447 = vpack.c.b16 %v1415, %v1415
          %v1448 = vpack.c.b16 %v1416, %v1416
          %v1449 = vpack.c.b16 %v1417, %v1417
          %v1450 = vpack.c.b16 %v1418, %v1418
          %v1451 = vpack.c.b16 %v1419, %v1419
          %v1452 = vpack.c.b16 %v1420, %v1420
          %v1453 = vpack.c.b16 %v1421, %v1421
          %v1454 = vpack.c.b16 %v1422, %v1422
          %v1455 = vpack.c.b16 %v1423, %v1423
          %v1456 = vpack.c.b16 %v1424, %v1424
          %1489 = vst [vmem:[%s397] sm:$0xf] %v1425
          %1490 = vst [vmem:[%s397 + $0x4] sm:$0xf] %v1426
          %1491 = vst [vmem:[%s397 + $0x8] sm:$0xf] %v1427
          %1492 = vst [vmem:[%s397 + $0xc] sm:$0xf] %v1428
          %1493 = vst [vmem:[%s397 + $0x10] sm:$0xf] %v1429
          %1494 = vst [vmem:[%s397 + $0x14] sm:$0xf] %v1430
          %1495 = vst [vmem:[%s397 + $0x18] sm:$0xf] %v1431
          %1496 = vst [vmem:[%s397 + $0x1c] sm:$0xf] %v1432
          %1497 = vst [vmem:[%s397 + $0x20] sm:$0xf] %v1433
          %1498 = vst [vmem:[%s397 + $0x24] sm:$0xf] %v1434
          %1499 = vst [vmem:[%s397 + $0x28] sm:$0xf] %v1435
          %1500 = vst [vmem:[%s397 + $0x2c] sm:$0xf] %v1436
          %1501 = vst [vmem:[%s397 + $0x30] sm:$0xf] %v1437
          %1502 = vst [vmem:[%s397 + $0x34] sm:$0xf] %v1438
          %1503 = vst [vmem:[%s397 + $0x38] sm:$0xf] %v1439
          %1504 = vst [vmem:[%s397 + $0x3c] sm:$0xf] %v1440
          %1505 = vst [vmem:[%s397 + $0x40] sm:$0xf] %v1441
          %1506 = vst [vmem:[%s397 + $0x44] sm:$0xf] %v1442
          %1507 = vst [vmem:[%s397 + $0x48] sm:$0xf] %v1443
          %1508 = vst [vmem:[%s397 + $0x4c] sm:$0xf] %v1444
          %1509 = vst [vmem:[%s397 + $0x50] sm:$0xf] %v1445
          %1510 = vst [vmem:[%s397 + $0x54] sm:$0xf] %v1446
          %1511 = vst [vmem:[%s397 + $0x58] sm:$0xf] %v1447
          %1512 = vst [vmem:[%s397 + $0x5c] sm:$0xf] %v1448
          %1513 = vst [vmem:[%s397 + $0x60] sm:$0xf] %v1449
          %1514 = vst [vmem:[%s397 + $0x64] sm:$0xf] %v1450
          %1515 = vst [vmem:[%s397 + $0x68] sm:$0xf] %v1451
          %1516 = vst [vmem:[%s397 + $0x6c] sm:$0xf] %v1452
          %1517 = vst [vmem:[%s397 + $0x70] sm:$0xf] %v1453
          %1518 = vst [vmem:[%s397 + $0x74] sm:$0xf] %v1454
          %1519 = vst [vmem:[%s397 + $0x78] sm:$0xf] %v1455
          %1520 = vst [vmem:[%s397 + $0x7c] sm:$0xf] %v1456
        $region82: #{gcn_forward.4} parent=69 // pred_fallthru
          _
        %s1521 = smul.u32 32, %s19
        %p1522 = scmp.lt.s32.totalorder %s1521, 63
        %s1523 = scalar_select %p1522, %s1521, 63
        %s1524 = smul.addr %s1523, 4
        %s1525 = scalar_lea.vmem %s4, %s1524
        // Predicated region
        $region83: #{gcn_forward.4} parent=69 // pred_check
          %p1526 = pneg %p141
        $region84: #{gcn_forward.4} parent=69 // pred_check_branch
          %1528 = sbr.rel (%p1526) target = $region86
        $region85: #{gcn_forward.4} parent=69 // pred_region
          %s1529 = smul.u32 32, %s19
        $region86: #{gcn_forward.4} parent=69 // pred_fallthru
          _
      $region70: #{gcn_forward.4} parent=5 // pred_fallthru
        _
      %p1530 = scmp.le.s32.totalorder 2, %s10
      // Predicated region
      $region87: #{gcn_forward.4} parent=5 // pred_check
        %p1531 = pneg %p1530
      $region88: #{gcn_forward.4} parent=5 // pred_check_branch
        %1533 = sbr.rel (%p1531) target = $region90
      $region89: #{gcn_forward.4} parent=5 // pred_region
        %s1534 = ssub.s32 %s10, 2
        // Predicated region
        $region91: #{gcn_forward.4} parent=89 // pred_check
          %p1535 = pneg %p147
        $region92: #{gcn_forward.4} parent=89 // pred_check_branch
          %1537 = sbr.rel (%p1535) target = $region94
        $region93: #{gcn_forward.4} parent=89 // pred_region
          %s1538 = smul.u32 32, %s21
          %p1539 = scmp.lt.s32.totalorder %s1538, 63
          %s1540 = scalar_select %p1539, %s1538, 63
          %s1541 = smul.addr %s1540, 4
          %s1542 = scalar_lea.vmem %s4, %s1541
        $region94: #{gcn_forward.4} parent=89 // pred_fallthru
          _
      $region90: #{gcn_forward.4} parent=5 // pred_fallthru
        _
    $region6: #{gcn_forward.4} parent=1 // loop_footer
      %s14 = sadd.s32 1, %s10
    $region7: #{gcn_forward.4} parent=1 // loop_footer_branch
      %9 = sbr.rel target = $region3
    $region8: #{gcn_forward.4} parent=1 // loop_exit
      _

</llo_original>
